<compile_context>
chip_gen: v5e
topology: v5e:2x2
jax: 0.10.0
libtpu: 0.0.40
codegen_flags: <defaults>
</compile_context>

<pallas_src>
import functools

import jax
import jax.numpy as jnp
from jax.experimental import pallas as pl
from jax.experimental.pallas import tpu as pltpu


# ---------------------------------------------------------------------------
# Kernel 1: conv1 + bias + ReLU + 2x2 max-pool          (one view per grid step)
# ---------------------------------------------------------------------------
def _conv1_pool_kernel(p_ref, w_ref, b_ref, o_ref, *, B, H, W2, C1):
    # p_ref: (1, H*B*W2, 12)  rows ordered (h, b, w2), 3x4-window patches
    # w_ref: (1, 12, 2*C1)    pair-packed conv1 weights (lane blocks = w parity)
    # b_ref: (1, 1, 2*C1)     o_ref: (1, H//2, B*W2, C1)
    c = jnp.dot(p_ref[0], w_ref[0], preferred_element_type=jnp.float32)
    c = jnp.maximum(c + b_ref[0], 0.0)                      # (H*B*W2, 2*C1)
    # H-pool: rows group as (h2, hq, b*W2+w2); minor factor B*W2 is a multiple
    # of 8 so this reshape is tile aligned (no relayout).
    c = c.reshape(H // 2, 2, B * W2, 2 * C1)
    c = jnp.maximum(c[:, 0], c[:, 1])                       # (H2, B*W2, 2*C1)
    # W-pool: the two pool partners along W are the two lane blocks.
    o_ref[0] = jnp.maximum(c[..., :C1], c[..., C1:])        # (H2, B*W2, C1)


def conv1_block(patches1, w1p, b1p, *, B, H, W2, C1):
    V = patches1.shape[0]
    kern = functools.partial(_conv1_pool_kernel, B=B, H=H, W2=W2, C1=C1)
    return pl.pallas_call(
        kern,
        out_shape=jax.ShapeDtypeStruct((V, H // 2, B * W2, C1), jnp.float32),
        grid=(V,),
        in_specs=[
            pl.BlockSpec((1, H * B * W2, 12), lambda v: (v, 0, 0)),
            pl.BlockSpec((1, 12, 2 * C1), lambda v: (v, 0, 0)),
            pl.BlockSpec((1, 1, 2 * C1), lambda v: (v, 0, 0)),
        ],
        out_specs=pl.BlockSpec((1, H // 2, B * W2, C1), lambda v: (v, 0, 0, 0)),
        compiler_params=pltpu.CompilerParams(
            dimension_semantics=("parallel",)),
    )(patches1, w1p, b1p)


# ---------------------------------------------------------------------------
# Kernel 2: conv2 + bias + ReLU + 2x2 max-pool + per-view FC + ReLU
# ---------------------------------------------------------------------------
def _conv2_pool_fc_kernel(p_ref, w_ref, b_ref, fcw_ref, fcb_ref, o_ref,
                          *, B, H2, W4, C2):
    # p_ref:  (1, H2*W4*B, 12*C1)  rows ordered (h, w4, b)
    # w_ref:  (1, 12*C1, 2*C2)     pair-packed conv2 weights
    # b_ref:  (1, 1, 2*C2)
    # fcw_ref:(1, (H2//2)*C2, hidden)   fcb_ref: (1, 1, hidden)
    # o_ref:  (1, W4*B, hidden)    rows ordered (t=w4, b)  == time-major
    c = jnp.dot(p_ref[0], w_ref[0], preferred_element_type=jnp.float32)
    c = jnp.maximum(c + b_ref[0], 0.0)                      # (H2*W4*B, 2*C2)
    c = c.reshape(H2 // 2, 2, W4 * B, 2 * C2)               # tile-aligned split
    c = jnp.maximum(c[:, 0], c[:, 1])                       # H-pool
    pool = jnp.maximum(c[..., :C2], c[..., C2:])            # W-pool (H4,W4*B,C2)
    H4 = H2 // 2
    # Features ordered (h4, channel) == PyTorch permute(0,3,2,1)+flatten.
    feat = jnp.concatenate([pool[i] for i in range(H4)], axis=-1)  # (W4*B,H4*C2)
    y = jnp.dot(feat, fcw_ref[0], preferred_element_type=jnp.float32) + fcb_ref[0]
    o_ref[0] = jnp.maximum(y, 0.0)


def conv2_fc_block(patches2, w2p, b2p, fcw, fcb, *, B, H2, W4, C2, HID):
    V, _, K = patches2.shape
    kern = functools.partial(_conv2_pool_fc_kernel, B=B, H2=H2, W4=W4, C2=C2)
    return pl.pallas_call(
        kern,
        out_shape=jax.ShapeDtypeStruct((V, W4 * B, HID), jnp.float32),
        grid=(V,),
        in_specs=[
            pl.BlockSpec((1, H2 * W4 * B, K), lambda v: (v, 0, 0)),
            pl.BlockSpec((1, K, 2 * C2), lambda v: (v, 0, 0)),
            pl.BlockSpec((1, 1, 2 * C2), lambda v: (v, 0, 0)),
            pl.BlockSpec((1, (H2 // 2) * C2, HID), lambda v: (v, 0, 0)),
            pl.BlockSpec((1, 1, HID), lambda v: (v, 0, 0)),
        ],
        out_specs=pl.BlockSpec((1, W4 * B, HID), lambda v: (v, 0, 0)),
        compiler_params=pltpu.CompilerParams(
            dimension_semantics=("parallel",)),
    )(patches2, w2p, b2p, fcw, fcb)


# ---------------------------------------------------------------------------
# Kernel 3: 2-layer bidirectional GRU, both layers and both directions for one
# view in a single kernel.  PyTorch gate equations, h0 = 0, gates packed (r|z|n).
# ---------------------------------------------------------------------------
def _gru_direction(x_all, wih, whh, bih, bhh, *, reverse, T, B, HID):
    # x_all: (T*B, I) rows (t, b).  Input projection hoisted: one matmul for
    # all timesteps; the time loop has a single (B,H)@(H,3H) recurrent matmul.
    gi = jnp.dot(x_all, wih, preferred_element_type=jnp.float32) + bih
    h = jnp.zeros((B, HID), jnp.float32)
    outs = [None] * T
    steps = range(T - 1, -1, -1) if reverse else range(T)
    for t in steps:                                          # T tiny & static
        g = gi[t * B:(t + 1) * B, :]
        gh = jnp.dot(h, whh, preferred_element_type=jnp.float32) + bhh
        r = jax.nn.sigmoid(g[:, :HID] + gh[:, :HID])
        z = jax.nn.sigmoid(g[:, HID:2 * HID] + gh[:, HID:2 * HID])
        n = jnp.tanh(g[:, 2 * HID:] + r * gh[:, 2 * HID:])
        h = (1.0 - z) * n + z * h
        outs[t] = h
    return outs


def _bigru2_kernel(x_ref, wih1_ref, whh1_ref, bih1_ref, bhh1_ref,
                   wih2_ref, whh2_ref, bih2_ref, bhh2_ref,
                   o_ref, l1_ref, *, T, B, HID):
    # x_ref: (1, T*B, HID) rows (t, b).  l1_ref: VMEM scratch (T*B, 2*HID).
    x1 = x_ref[0]
    for d in range(2):                                       # 0 = fwd, 1 = bwd
        outs = _gru_direction(x1, wih1_ref[0, d], whh1_ref[0, d],
                              bih1_ref[0, d], bhh1_ref[0, d],
                              reverse=(d == 1), T=T, B=B, HID=HID)
        for t in range(T):
            l1_ref[t * B:(t + 1) * B, d * HID:(d + 1) * HID] = outs[t]
    # TODO(synk): inter-layer GRU dropout (p=0.25) omitted (eval-mode forward)
    x2 = l1_ref[...]                                         # (T*B, 2*HID)
    for d in range(2):
        outs = _gru_direction(x2, wih2_ref[0, d], whh2_ref[0, d],
                              bih2_ref[0, d], bhh2_ref[0, d],
                              reverse=(d == 1), T=T, B=B, HID=HID)
        for t in range(T):
            o_ref[0, t * B:(t + 1) * B, d * HID:(d + 1) * HID] = outs[t]


def bigru_block(x, g, *, T, B, HID):
    V = x.shape[0]
    kern = functools.partial(_bigru2_kernel, T=T, B=B, HID=HID)
    spec_wh = pl.BlockSpec((1, 2, HID, 3 * HID), lambda v: (v, 0, 0, 0))
    spec_w2 = pl.BlockSpec((1, 2, 2 * HID, 3 * HID), lambda v: (v, 0, 0, 0))
    spec_b = pl.BlockSpec((1, 2, 1, 3 * HID), lambda v: (v, 0, 0, 0))
    return pl.pallas_call(
        kern,
        out_shape=jax.ShapeDtypeStruct((V, T * B, 2 * HID), jnp.float32),
        grid=(V,),
        in_specs=[pl.BlockSpec((1, T * B, HID), lambda v: (v, 0, 0)),
                  spec_wh, spec_wh, spec_b, spec_b,
                  spec_w2, spec_wh, spec_b, spec_b],
        out_specs=pl.BlockSpec((1, T * B, 2 * HID), lambda v: (v, 0, 0)),
        scratch_shapes=[pltpu.VMEM((T * B, 2 * HID), jnp.float32)],
        compiler_params=pltpu.CompilerParams(
            dimension_semantics=("parallel",)),
    )(x, g["wih1"], g["whh1"], g["bih1"], g["bhh1"],
      g["wih2"], g["whh2"], g["bih2"], g["bhh2"])


# ---------------------------------------------------------------------------
# Kernel 4: view fusion (Linear + ReLU) + CTC classifier (Linear), fused.
# ---------------------------------------------------------------------------
def _head_kernel(g_ref, fw_ref, fb_ref, cw_ref, cb_ref, o_ref, *, V):
    feat = jnp.concatenate([g_ref[v] for v in range(V)], axis=-1)  # (T*B, V*2H)
    h = jnp.dot(feat, fw_ref[...], preferred_element_type=jnp.float32) + fb_ref[...]
    h = jnp.maximum(h, 0.0)
    # TODO(synk): Dropout(0.3) after fusion omitted (eval-mode forward)
    o_ref[...] = jnp.dot(h, cw_ref[...],
                         preferred_element_type=jnp.float32) + cb_ref[...]


def head_block(gru_out, fw, fb, cw, cb):
    V, R, _ = gru_out.shape
    nc = cw.shape[1]
    return pl.pallas_call(
        functools.partial(_head_kernel, V=V),
        out_shape=jax.ShapeDtypeStruct((R, nc), jnp.float32),
    )(gru_out, fw, fb, cw, cb)


# ---------------------------------------------------------------------------
# Glue: pair-packed conv weights and im2col patch construction (tiny tensors).
# ---------------------------------------------------------------------------
def _pack_conv_pair(w_hwio, b):
    # w_hwio: (3, 3, Cin, Cout) -> (12*Cin, 2*Cout); lane block p computes the
    # conv output at w = 2*w_half + p from a 3x4 input window.
    # NOTE: weights are HWIO; real PyTorch OIHW weights would need a transpose.
    Cin, Cout = w_hwio.shape[2], w_hwio.shape[3]
    zeros = jnp.zeros((Cin, Cout), w_hwio.dtype)
    cols = []
    for p in range(2):
        rows = []
        for dh in range(3):
            for dwp in range(4):
                kw = dwp - p
                rows.append(w_hwio[dh, kw] if 0 <= kw <= 2 else zeros)
        cols.append(jnp.concatenate(rows, axis=0))           # (12*Cin, Cout)
    wp = jnp.concatenate(cols, axis=1)                       # (12*Cin, 2*Cout)
    bp = jnp.concatenate([b, b], axis=0)[None, :]            # (1, 2*Cout)
    return wp, bp


def _im2col_pairs(xpad, h_out, w_half, row_perm):
    # xpad: (V, B, Hp, Wp, Cin) zero-padded input.  Each patch row covers a
    # 3x4 window; feature index = (dh*4 + dw)*Cin + cin.
    Cin = xpad.shape[-1]
    taps = [xpad[:, :, dh:dh + h_out, dwp:dwp + 2 * w_half:2, :]
            for dh in range(3) for dwp in range(4)]
    pat = jnp.stack(taps, axis=4)                 # (V, B, h_out, w_half, 12, Cin)
    pat = jnp.transpose(pat, row_perm + (4, 5))
    return pat.reshape(xpad.shape[0], -1, 12 * Cin)


# ---------------------------------------------------------------------------
# Deterministic parameter initialization (synthetic weights)
# ---------------------------------------------------------------------------
def _init_linear(key, fan_in, fan_out):
    kw, kb = jax.random.split(key)
    w = jax.random.normal(kw, (fan_in, fan_out), jnp.float32) * 0.08
    b = jax.random.normal(kb, (fan_out,), jnp.float32) * 0.02
    return w, b


def _init_gru_dir(key, input_size, hidden):
    k = jax.random.split(key, 4)
    # Packed PyTorch layout: wih == weight_ih.T, whh == weight_hh.T, with gate
    # (column) order (reset | update | new).
    return dict(
        wih=jax.random.normal(k[0], (input_size, 3 * hidden), jnp.float32) * 0.08,
        whh=jax.random.normal(k[1], (hidden, 3 * hidden), jnp.float32) * 0.08,
        bih=jax.random.normal(k[2], (3 * hidden,), jnp.float32) * 0.02,
        bhh=jax.random.normal(k[3], (3 * hidden,), jnp.float32) * 0.02,
    )


def init_params(key, num_views, num_chars, img_size, hidden):
    H, _ = img_size
    flattened = 64 * (H // 4)
    keys = jax.random.split(key, num_views + 1)
    views = []
    for v in range(num_views):
        kv = jax.random.split(keys[v], 8)
        conv1_w = jax.random.normal(kv[0], (3, 3, 1, 32), jnp.float32) * 0.2
        conv1_b = jax.random.normal(kv[1], (32,), jnp.float32) * 0.02
        conv2_w = jax.random.normal(kv[2], (3, 3, 32, 64), jnp.float32) * 0.05
        conv2_b = jax.random.normal(kv[3], (64,), jnp.float32) * 0.02
        fc_w, fc_b = _init_linear(kv[4], flattened, hidden)
        gru_l1 = dict(f=_init_gru_dir(kv[5], hidden, hidden),
                      b=_init_gru_dir(kv[6], hidden, hidden))
        k7 = jax.random.split(kv[7], 2)
        gru_l2 = dict(f=_init_gru_dir(k7[0], 2 * hidden, hidden),
                      b=_init_gru_dir(k7[1], 2 * hidden, hidden))
        views.append(dict(conv1_w=conv1_w, conv1_b=conv1_b,
                          conv2_w=conv2_w, conv2_b=conv2_b,
                          fc_w=fc_w, fc_b=fc_b,
                          gru_l1=gru_l1, gru_l2=gru_l2))
    kf, kc = jax.random.split(keys[-1])
    fusion_w, fusion_b = _init_linear(kf, 2 * hidden * num_views, 256)
    cls_w, cls_b = _init_linear(kc, 256, num_chars)
    return dict(views=views, fusion_w=fusion_w, fusion_b=fusion_b,
                cls_w=cls_w, cls_b=cls_b)


# ---------------------------------------------------------------------------
# Forward pass (eval mode: dropout no-op, CTC branch not taken)
# ---------------------------------------------------------------------------
def multiview_forward(params, x):
    # x: (B, num_views, 1, H, W)
    B, V, _, H, W = x.shape
    H2, W2, W4 = H // 2, W // 2, W // 4
    views = params["views"]
    C1 = views[0]["conv1_w"].shape[3]
    C2 = views[0]["conv2_w"].shape[3]
    HID = views[0]["fc_w"].shape[1]
    T = W4

    # ---- stack & pack per-view weights (KB-scale XLA work) -----------------
    w1p, b1p, w2p, b2p, fcw, fcb = [], [], [], [], [], []
    g = {k: [] for k in ("wih1", "whh1", "bih1", "bhh1",
                         "wih2", "whh2", "bih2", "bhh2")}
    for p in views:
        wp, bp = _pack_conv_pair(p["conv1_w"], p["conv1_b"])
        w1p.append(wp), b1p.append(bp)
        wp, bp = _pack_conv_pair(p["conv2_w"], p["conv2_b"])
        w2p.append(wp), b2p.append(bp)
        fcw.append(p["fc_w"]), fcb.append(p["fc_b"][None, :])
        for li, lp in ((1, p["gru_l1"]), (2, p["gru_l2"])):
            g[f"wih{li}"].append(jnp.stack([lp["f"]["wih"], lp["b"]["wih"]]))
            g[f"whh{li}"].append(jnp.stack([lp["f"]["whh"], lp["b"]["whh"]]))
            g[f"bih{li}"].append(jnp.stack([lp["f"]["bih"][None, :],
                                            lp["b"]["bih"][None, :]]))
            g[f"bhh{li}"].append(jnp.stack([lp["f"]["bhh"][None, :],
                                            lp["b"]["bhh"][None, :]]))
    w1p, b1p = jnp.stack(w1p), jnp.stack(b1p)
    w2p, b2p = jnp.stack(w2p), jnp.stack(b2p)
    fcw, fcb = jnp.stack(fcw), jnp.stack(fcb)
    g = {k: jnp.stack(v) for k, v in g.items()}

    # ---- conv block 1 (fused conv+ReLU+pool), grid over views --------------
    x_views = jnp.transpose(x[:, :, 0], (1, 0, 2, 3))               # (V,B,H,W)
    xpad = jnp.pad(x_views, ((0, 0), (0, 0), (1, 1), (1, 1)))[..., None]
    patches1 = _im2col_pairs(xpad, H, W2, (0, 2, 1, 3))             # rows (h,b,w2)
    p1 = conv1_block(patches1, w1p, b1p, B=B, H=H, W2=W2, C1=C1)    # (V,H2,B*W2,C1)

    # ---- conv block 2 + per-view FC (fused), grid over views ---------------
    p1 = p1.reshape(V, H2, B, W2, C1).transpose(0, 2, 1, 3, 4)      # (V,B,H2,W2,C1)
    p1pad = jnp.pad(p1, ((0, 0), (0, 0), (1, 1), (1, 1), (0, 0)))
    patches2 = _im2col_pairs(p1pad, H2, W4, (0, 2, 3, 1))           # rows (h,w4,b)
    fc_out = conv2_fc_block(patches2, w2p, b2p, fcw, fcb,
                            B=B, H2=H2, W4=W4, C2=C2, HID=HID)      # (V,T*B,HID)

    # ---- 2-layer bidirectional GRU (single kernel, grid over views) --------
    gru_out = bigru_block(fc_out, g, T=T, B=B, HID=HID)             # (V,T*B,2*HID)

    # ---- fused fusion MLP + classifier head ---------------------------------
    logits_tb = head_block(gru_out, params["fusion_w"],
                           params["fusion_b"][None, :],
                           params["cls_w"], params["cls_b"][None, :])  # (T*B,nc)

    # TODO(synk): CTC loss branch (targets is not None) not implemented;
    # returns logits like the PyTorch targets=None path.
    return jnp.transpose(logits_tb.reshape(T, B, -1), (1, 0, 2))    # (B, T, nc)


if __name__ == "__main__":
    B, V, C, H, W = 2, 2, 1, 16, 16
    hidden, num_chars = 32, 12

    key = jax.random.PRNGKey(0)
    kp, kx = jax.random.split(key)
    params = init_params(kp, num_views=V, num_chars=num_chars,
                         img_size=(H, W), hidden=hidden)
    x = jax.random.normal(kx, (B, V, C, H, W), jnp.float32)

    logits = jax.jit(multiview_forward)(params, x)
    logits = jax.block_until_ready(logits)

    assert logits.shape == (B, W // 4, num_chars), logits.shape
    assert bool(jnp.all(jnp.isfinite(logits)))
    print("KERNEL_OK")
</pallas_src>

<mosaic_0001>
module attributes {stable_mosaic.version = 11 : i64} {
  func.func @_conv1_pool_kernel(%arg0: i32, %arg1: memref<1x256x12xf32, #tpu.memory_space<vmem>>, %arg2: memref<1x12x64xf32, #tpu.memory_space<vmem>>, %arg3: memref<1x1x64xf32, #tpu.memory_space<vmem>>, %arg4: memref<1x8x16x32xf32, #tpu.memory_space<vmem>>) attributes {dimension_semantics = [#tpu.dimension_semantics<parallel>], iteration_bounds = array<i64: 2>, scalar_prefetch = 0 : i64, scratch_operands = 0 : i64, tpu.core_type = #tpu.core_type<tc>, window_params = [{transform_indices = @transform_0, window_bounds = array<i64: 1, 256, 12>}, {transform_indices = @transform_1, window_bounds = array<i64: 1, 12, 64>}, {transform_indices = @transform_2, window_bounds = array<i64: 1, 1, 64>}, {transform_indices = @transform_3, window_bounds = array<i64: 1, 8, 16, 32>}]} {
    %c0 = arith.constant 0 : index
    %c0_0 = arith.constant 0 : index
    %c0_1 = arith.constant 0 : index
    %0 = vector.load %arg1[%c0, %c0_0, %c0_1] : memref<1x256x12xf32, #tpu.memory_space<vmem>>, vector<1x256x12xf32>
    %1 = vector.shape_cast %0 : vector<1x256x12xf32> to vector<256x12xf32>
    %c0_2 = arith.constant 0 : index
    %c0_3 = arith.constant 0 : index
    %c0_4 = arith.constant 0 : index
    %2 = vector.load %arg2[%c0_2, %c0_3, %c0_4] : memref<1x12x64xf32, #tpu.memory_space<vmem>>, vector<1x12x64xf32>
    %3 = vector.shape_cast %2 : vector<1x12x64xf32> to vector<12x64xf32>
    %cst = arith.constant dense<0.000000e+00> : vector<256x64xf32>
    %4 = tpu.matmul %1, %3, %cst {dimension_numbers = #tpu.dot_dimension_numbers<[1], [0], [0], [1], [0, 0, 1, 1], [], []>} : vector<256x12xf32>, vector<12x64xf32>, vector<256x64xf32> -> vector<256x64xf32>
    %c0_5 = arith.constant 0 : index
    %c0_6 = arith.constant 0 : index
    %c0_7 = arith.constant 0 : index
    %5 = vector.load %arg3[%c0_5, %c0_6, %c0_7] : memref<1x1x64xf32, #tpu.memory_space<vmem>>, vector<1x1x64xf32>
    %6 = vector.shape_cast %5 : vector<1x1x64xf32> to vector<1x64xf32>
    %7 = vector.broadcast %6 : vector<1x64xf32> to vector<256x64xf32>
    %8 = arith.addf %4, %7 : vector<256x64xf32>
    %cst_8 = arith.constant 0.000000e+00 : f32
    %9 = vector.broadcast %cst_8 : f32 to vector<256x64xf32>
    %10 = arith.maximumf %8, %9 : vector<256x64xf32>
    %11 = vector.shape_cast %10 : vector<256x64xf32> to vector<8x2x16x64xf32>
    %12 = vector.extract_strided_slice %11 {offsets = [0, 0, 0, 0], sizes = [8, 1, 16, 64], strides = [1, 1, 1, 1]} : vector<8x2x16x64xf32> to vector<8x1x16x64xf32>
    %13 = vector.shape_cast %12 : vector<8x1x16x64xf32> to vector<8x16x64xf32>
    %14 = vector.extract_strided_slice %11 {offsets = [0, 1, 0, 0], sizes = [8, 1, 16, 64], strides = [1, 1, 1, 1]} : vector<8x2x16x64xf32> to vector<8x1x16x64xf32>
    %15 = vector.shape_cast %14 : vector<8x1x16x64xf32> to vector<8x16x64xf32>
    %16 = arith.maximumf %13, %15 : vector<8x16x64xf32>
    %17 = vector.extract_strided_slice %16 {offsets = [0, 0, 0], sizes = [8, 16, 32], strides = [1, 1, 1]} : vector<8x16x64xf32> to vector<8x16x32xf32>
    %18 = vector.extract_strided_slice %16 {offsets = [0, 0, 32], sizes = [8, 16, 32], strides = [1, 1, 1]} : vector<8x16x64xf32> to vector<8x16x32xf32>
    %19 = arith.maximumf %17, %18 : vector<8x16x32xf32>
    %c0_9 = arith.constant 0 : index
    %c0_10 = arith.constant 0 : index
    %c0_11 = arith.constant 0 : index
    %c0_12 = arith.constant 0 : index
    %20 = vector.load %arg4[%c0_9, %c0_10, %c0_11, %c0_12] : memref<1x8x16x32xf32, #tpu.memory_space<vmem>>, vector<1x8x16x32xf32>
    %21 = vector.shape_cast %20 : vector<1x8x16x32xf32> to vector<8x16x32xf32>
    %22 = vector.shape_cast %19 : vector<8x16x32xf32> to vector<1x8x16x32xf32>
    tpu.vector_store %arg4[%c0_9, %c0_10, %c0_11, %c0_12], %22 {strides = array<i32>} : memref<1x8x16x32xf32, #tpu.memory_space<vmem>>, vector<1x8x16x32xf32>,
    return
  }
  func.func @transform_0(%arg0: i32) -> (i32, i32, i32) {
    %c0_i32 = arith.constant 0 : i32
    %c0_i32_0 = arith.constant 0 : i32
    %c0_i32_1 = arith.constant 0 : i32
    return %arg0, %c0_i32, %c0_i32_0 : i32, i32, i32
  }
  func.func @transform_1(%arg0: i32) -> (i32, i32, i32) {
    %c0_i32 = arith.constant 0 : i32
    %c0_i32_0 = arith.constant 0 : i32
    %c0_i32_1 = arith.constant 0 : i32
    return %arg0, %c0_i32, %c0_i32_0 : i32, i32, i32
  }
  func.func @transform_2(%arg0: i32) -> (i32, i32, i32) {
    %c0_i32 = arith.constant 0 : i32
    %c0_i32_0 = arith.constant 0 : i32
    %c0_i32_1 = arith.constant 0 : i32
    return %arg0, %c0_i32, %c0_i32_0 : i32, i32, i32
  }
  func.func @transform_3(%arg0: i32) -> (i32, i32, i32, i32) {
    %c0_i32 = arith.constant 0 : i32
    %c0_i32_0 = arith.constant 0 : i32
    %c0_i32_1 = arith.constant 0 : i32
    %c0_i32_2 = arith.constant 0 : i32
    return %arg0, %c0_i32, %c0_i32_0, %c0_i32_1 : i32, i32, i32, i32
  }
}

module attributes {stable_mosaic.version = 11 : i64} {
  func.func @_conv2_pool_fc_kernel(%arg0: i32, %arg1: memref<1x64x384xf32, #tpu.memory_space<vmem>>, %arg2: memref<1x384x128xf32, #tpu.memory_space<vmem>>, %arg3: memref<1x1x128xf32, #tpu.memory_space<vmem>>, %arg4: memref<1x256x32xf32, #tpu.memory_space<vmem>>, %arg5: memref<1x1x32xf32, #tpu.memory_space<vmem>>, %arg6: memref<1x8x32xf32, #tpu.memory_space<vmem>>) attributes {dimension_semantics = [#tpu.dimension_semantics<parallel>], iteration_bounds = array<i64: 2>, scalar_prefetch = 0 : i64, scratch_operands = 0 : i64, tpu.core_type = #tpu.core_type<tc>, window_params = [{transform_indices = @transform_0, window_bounds = array<i64: 1, 64, 384>}, {transform_indices = @transform_1, window_bounds = array<i64: 1, 384, 128>}, {transform_indices = @transform_2, window_bounds = array<i64: 1, 1, 128>}, {transform_indices = @transform_3, window_bounds = array<i64: 1, 256, 32>}, {transform_indices = @transform_4, window_bounds = array<i64: 1, 1, 32>}, {transform_indices = @transform_5, window_bounds = array<i64: 1, 8, 32>}]} {
    %c0 = arith.constant 0 : index
    %c0_0 = arith.constant 0 : index
    %c0_1 = arith.constant 0 : index
    %0 = vector.load %arg1[%c0, %c0_0, %c0_1] : memref<1x64x384xf32, #tpu.memory_space<vmem>>, vector<1x64x384xf32>
    %1 = vector.shape_cast %0 : vector<1x64x384xf32> to vector<64x384xf32>
    %c0_2 = arith.constant 0 : index
    %c0_3 = arith.constant 0 : index
    %c0_4 = arith.constant 0 : index
    %2 = vector.load %arg2[%c0_2, %c0_3, %c0_4] : memref<1x384x128xf32, #tpu.memory_space<vmem>>, vector<1x384x128xf32>
    %3 = vector.shape_cast %2 : vector<1x384x128xf32> to vector<384x128xf32>
    %cst = arith.constant dense<0.000000e+00> : vector<64x128xf32>
    %4 = tpu.matmul %1, %3, %cst {dimension_numbers = #tpu.dot_dimension_numbers<[1], [0], [0], [1], [0, 0, 1, 1], [], []>} : vector<64x384xf32>, vector<384x128xf32>, vector<64x128xf32> -> vector<64x128xf32>
    %c0_5 = arith.constant 0 : index
    %c0_6 = arith.constant 0 : index
    %c0_7 = arith.constant 0 : index
    %5 = vector.load %arg3[%c0_5, %c0_6, %c0_7] : memref<1x1x128xf32, #tpu.memory_space<vmem>>, vector<1x1x128xf32>
    %6 = vector.shape_cast %5 : vector<1x1x128xf32> to vector<1x128xf32>
    %7 = vector.broadcast %6 : vector<1x128xf32> to vector<64x128xf32>
    %8 = arith.addf %4, %7 : vector<64x128xf32>
    %cst_8 = arith.constant 0.000000e+00 : f32
    %9 = vector.broadcast %cst_8 : f32 to vector<64x128xf32>
    %10 = arith.maximumf %8, %9 : vector<64x128xf32>
    %11 = vector.shape_cast %10 : vector<64x128xf32> to vector<4x2x8x128xf32>
    %12 = vector.extract_strided_slice %11 {offsets = [0, 0, 0, 0], sizes = [4, 1, 8, 128], strides = [1, 1, 1, 1]} : vector<4x2x8x128xf32> to vector<4x1x8x128xf32>
    %13 = vector.shape_cast %12 : vector<4x1x8x128xf32> to vector<4x8x128xf32>
    %14 = vector.extract_strided_slice %11 {offsets = [0, 1, 0, 0], sizes = [4, 1, 8, 128], strides = [1, 1, 1, 1]} : vector<4x2x8x128xf32> to vector<4x1x8x128xf32>
    %15 = vector.shape_cast %14 : vector<4x1x8x128xf32> to vector<4x8x128xf32>
    %16 = arith.maximumf %13, %15 : vector<4x8x128xf32>
    %17 = vector.extract_strided_slice %16 {offsets = [0, 0, 0], sizes = [4, 8, 64], strides = [1, 1, 1]} : vector<4x8x128xf32> to vector<4x8x64xf32>
    %18 = vector.extract_strided_slice %16 {offsets = [0, 0, 64], sizes = [4, 8, 64], strides = [1, 1, 1]} : vector<4x8x128xf32> to vector<4x8x64xf32>
    %19 = arith.maximumf %17, %18 : vector<4x8x64xf32>
    %20 = vector.extract_strided_slice %19 {offsets = [0, 0, 0], sizes = [1, 8, 64], strides = [1, 1, 1]} : vector<4x8x64xf32> to vector<1x8x64xf32>
    %21 = vector.shape_cast %20 : vector<1x8x64xf32> to vector<8x64xf32>
    %22 = vector.extract_strided_slice %19 {offsets = [1, 0, 0], sizes = [1, 8, 64], strides = [1, 1, 1]} : vector<4x8x64xf32> to vector<1x8x64xf32>
    %23 = vector.shape_cast %22 : vector<1x8x64xf32> to vector<8x64xf32>
    %24 = vector.extract_strided_slice %19 {offsets = [2, 0, 0], sizes = [1, 8, 64], strides = [1, 1, 1]} : vector<4x8x64xf32> to vector<1x8x64xf32>
    %25 = vector.shape_cast %24 : vector<1x8x64xf32> to vector<8x64xf32>
    %26 = vector.extract_strided_slice %19 {offsets = [3, 0, 0], sizes = [1, 8, 64], strides = [1, 1, 1]} : vector<4x8x64xf32> to vector<1x8x64xf32>
    %27 = vector.shape_cast %26 : vector<1x8x64xf32> to vector<8x64xf32>
    %28 = tpu.concatenate %21, %23, %25, %27 in 1 : vector<8x64xf32>, vector<8x64xf32>, vector<8x64xf32>, vector<8x64xf32> -> vector<8x256xf32>
    %c0_9 = arith.constant 0 : index
    %c0_10 = arith.constant 0 : index
    %c0_11 = arith.constant 0 : index
    %29 = vector.load %arg4[%c0_9, %c0_10, %c0_11] : memref<1x256x32xf32, #tpu.memory_space<vmem>>, vector<1x256x32xf32>
    %30 = vector.shape_cast %29 : vector<1x256x32xf32> to vector<256x32xf32>
    %cst_12 = arith.constant dense<0.000000e+00> : vector<8x32xf32>
    %31 = tpu.matmul %28, %30, %cst_12 {dimension_numbers = #tpu.dot_dimension_numbers<[1], [0], [0], [1], [0, 0, 1, 1], [], []>} : vector<8x256xf32>, vector<256x32xf32>, vector<8x32xf32> -> vector<8x32xf32>
    %c0_13 = arith.constant 0 : index
    %c0_14 = arith.constant 0 : index
    %c0_15 = arith.constant 0 : index
    %32 = vector.load %arg5[%c0_13, %c0_14, %c0_15] : memref<1x1x32xf32, #tpu.memory_space<vmem>>, vector<1x1x32xf32>
    %33 = vector.shape_cast %32 : vector<1x1x32xf32> to vector<1x32xf32>
    %34 = vector.broadcast %33 : vector<1x32xf32> to vector<8x32xf32>
    %35 = arith.addf %31, %34 : vector<8x32xf32>
    %cst_16 = arith.constant 0.000000e+00 : f32
    %36 = vector.broadcast %cst_16 : f32 to vector<8x32xf32>
    %37 = arith.maximumf %35, %36 : vector<8x32xf32>
    %c0_17 = arith.constant 0 : index
    %c0_18 = arith.constant 0 : index
    %c0_19 = arith.constant 0 : index
    %38 = vector.load %arg6[%c0_17, %c0_18, %c0_19] : memref<1x8x32xf32, #tpu.memory_space<vmem>>, vector<1x8x32xf32>
    %39 = vector.shape_cast %38 : vector<1x8x32xf32> to vector<8x32xf32>
    %40 = vector.shape_cast %37 : vector<8x32xf32> to vector<1x8x32xf32>
    tpu.vector_store %arg6[%c0_17, %c0_18, %c0_19], %40 {strides = array<i32>} : memref<1x8x32xf32, #tpu.memory_space<vmem>>, vector<1x8x32xf32>,
    return
  }
  func.func @transform_0(%arg0: i32) -> (i32, i32, i32) {
    %c0_i32 = arith.constant 0 : i32
    %c0_i32_0 = arith.constant 0 : i32
    %c0_i32_1 = arith.constant 0 : i32
    return %arg0, %c0_i32, %c0_i32_0 : i32, i32, i32
  }
  func.func @transform_1(%arg0: i32) -> (i32, i32, i32) {
    %c0_i32 = arith.constant 0 : i32
    %c0_i32_0 = arith.constant 0 : i32
    %c0_i32_1 = arith.constant 0 : i32
    return %arg0, %c0_i32, %c0_i32_0 : i32, i32, i32
  }
  func.func @transform_2(%arg0: i32) -> (i32, i32, i32) {
    %c0_i32 = arith.constant 0 : i32
    %c0_i32_0 = arith.constant 0 : i32
    %c0_i32_1 = arith.constant 0 : i32
    return %arg0, %c0_i32, %c0_i32_0 : i32, i32, i32
  }
  func.func @transform_3(%arg0: i32) -> (i32, i32, i32) {
    %c0_i32 = arith.constant 0 : i32
    %c0_i32_0 = arith.constant 0 : i32
    %c0_i32_1 = arith.constant 0 : i32
    return %arg0, %c0_i32, %c0_i32_0 : i32, i32, i32
  }
  func.func @transform_4(%arg0: i32) -> (i32, i32, i32) {
    %c0_i32 = arith.constant 0 : i32
    %c0_i32_0 = arith.constant 0 : i32
    %c0_i32_1 = arith.constant 0 : i32
    return %arg0, %c0_i32, %c0_i32_0 : i32, i32, i32
  }
  func.func @transform_5(%arg0: i32) -> (i32, i32, i32) {
    %c0_i32 = arith.constant 0 : i32
    %c0_i32_0 = arith.constant 0 : i32
    %c0_i32_1 = arith.constant 0 : i32
    return %arg0, %c0_i32, %c0_i32_0 : i32, i32, i32
  }
}

module attributes {stable_mosaic.version = 11 : i64} {
  func.func @_head_kernel(%arg0: memref<2x8x64xf32, #tpu.memory_space<vmem>>, %arg1: memref<128x256xf32, #tpu.memory_space<vmem>>, %arg2: memref<1x256xf32, #tpu.memory_space<vmem>>, %arg3: memref<256x12xf32, #tpu.memory_space<vmem>>, %arg4: memref<1x12xf32, #tpu.memory_space<vmem>>, %arg5: memref<8x12xf32, #tpu.memory_space<vmem>>) attributes {dimension_semantics = [], scalar_prefetch = 0 : i64, scratch_operands = 0 : i64, tpu.core_type = #tpu.core_type<tc>} {
    %c0 = arith.constant 0 : index
    %c0_0 = arith.constant 0 : index
    %c0_1 = arith.constant 0 : index
    %0 = vector.load %arg0[%c0, %c0_0, %c0_1] : memref<2x8x64xf32, #tpu.memory_space<vmem>>, vector<1x8x64xf32>
    %1 = vector.shape_cast %0 : vector<1x8x64xf32> to vector<8x64xf32>
    %c1 = arith.constant 1 : index
    %c0_2 = arith.constant 0 : index
    %c0_3 = arith.constant 0 : index
    %2 = vector.load %arg0[%c1, %c0_2, %c0_3] : memref<2x8x64xf32, #tpu.memory_space<vmem>>, vector<1x8x64xf32>
    %3 = vector.shape_cast %2 : vector<1x8x64xf32> to vector<8x64xf32>
    %4 = tpu.concatenate %1, %3 in 1 : vector<8x64xf32>, vector<8x64xf32> -> vector<8x128xf32>
    %c0_4 = arith.constant 0 : index
    %c0_5 = arith.constant 0 : index
    %5 = vector.load %arg1[%c0_4, %c0_5] : memref<128x256xf32, #tpu.memory_space<vmem>>, vector<128x256xf32>
    %cst = arith.constant dense<0.000000e+00> : vector<8x256xf32>
    %6 = tpu.matmul %4, %5, %cst {dimension_numbers = #tpu.dot_dimension_numbers<[1], [0], [0], [1], [0, 0, 1, 1], [], []>} : vector<8x128xf32>, vector<128x256xf32>, vector<8x256xf32> -> vector<8x256xf32>
    %c0_6 = arith.constant 0 : index
    %c0_7 = arith.constant 0 : index
    %7 = vector.load %arg2[%c0_6, %c0_7] : memref<1x256xf32, #tpu.memory_space<vmem>>, vector<1x256xf32>
    %8 = vector.broadcast %7 : vector<1x256xf32> to vector<8x256xf32>
    %9 = arith.addf %6, %8 : vector<8x256xf32>
    %cst_8 = arith.constant 0.000000e+00 : f32
    %10 = vector.broadcast %cst_8 : f32 to vector<8x256xf32>
    %11 = arith.maximumf %9, %10 : vector<8x256xf32>
    %c0_9 = arith.constant 0 : index
    %c0_10 = arith.constant 0 : index
    %12 = vector.load %arg3[%c0_9, %c0_10] : memref<256x12xf32, #tpu.memory_space<vmem>>, vector<256x12xf32>
    %cst_11 = arith.constant dense<0.000000e+00> : vector<8x12xf32>
    %13 = tpu.matmul %11, %12, %cst_11 {dimension_numbers = #tpu.dot_dimension_numbers<[1], [0], [0], [1], [0, 0, 1, 1], [], []>} : vector<8x256xf32>, vector<256x12xf32>, vector<8x12xf32> -> vector<8x12xf32>
    %c0_12 = arith.constant 0 : index
    %c0_13 = arith.constant 0 : index
    %14 = vector.load %arg4[%c0_12, %c0_13] : memref<1x12xf32, #tpu.memory_space<vmem>>, vector<1x12xf32>
    %15 = vector.broadcast %14 : vector<1x12xf32> to vector<8x12xf32>
    %16 = arith.addf %13, %15 : vector<8x12xf32>
    %c0_14 = arith.constant 0 : index
    %c0_15 = arith.constant 0 : index
    %17 = vector.load %arg5[%c0_14, %c0_15] : memref<8x12xf32, #tpu.memory_space<vmem>>, vector<8x12xf32>
    tpu.vector_store %arg5[%c0_14, %c0_15], %16 {strides = array<i32>} : memref<8x12xf32, #tpu.memory_space<vmem>>, vector<8x12xf32>,
    return
  }
}

module attributes {stable_mosaic.version = 11 : i64} {
  func.func @_bigru2_kernel(%arg0: i32, %arg1: memref<1x8x32xf32, #tpu.memory_space<vmem>>, %arg2: memref<1x2x32x96xf32, #tpu.memory_space<vmem>>, %arg3: memref<1x2x32x96xf32, #tpu.memory_space<vmem>>, %arg4: memref<1x2x1x96xf32, #tpu.memory_space<vmem>>, %arg5: memref<1x2x1x96xf32, #tpu.memory_space<vmem>>, %arg6: memref<1x2x64x96xf32, #tpu.memory_space<vmem>>, %arg7: memref<1x2x32x96xf32, #tpu.memory_space<vmem>>, %arg8: memref<1x2x1x96xf32, #tpu.memory_space<vmem>>, %arg9: memref<1x2x1x96xf32, #tpu.memory_space<vmem>>, %arg10: memref<1x8x64xf32, #tpu.memory_space<vmem>>, %arg11: memref<8x64xf32, #tpu.memory_space<vmem>>) attributes {dimension_semantics = [#tpu.dimension_semantics<parallel>], iteration_bounds = array<i64: 2>, scalar_prefetch = 0 : i64, scratch_operands = 1 : i64, tpu.core_type = #tpu.core_type<tc>, window_params = [{transform_indices = @transform_0, window_bounds = array<i64: 1, 8, 32>}, {transform_indices = @transform_1, window_bounds = array<i64: 1, 2, 32, 96>}, {transform_indices = @transform_2, window_bounds = array<i64: 1, 2, 32, 96>}, {transform_indices = @transform_3, window_bounds = array<i64: 1, 2, 1, 96>}, {transform_indices = @transform_4, window_bounds = array<i64: 1, 2, 1, 96>}, {transform_indices = @transform_5, window_bounds = array<i64: 1, 2, 64, 96>}, {transform_indices = @transform_6, window_bounds = array<i64: 1, 2, 32, 96>}, {transform_indices = @transform_7, window_bounds = array<i64: 1, 2, 1, 96>}, {transform_indices = @transform_8, window_bounds = array<i64: 1, 2, 1, 96>}, {transform_indices = @transform_9, window_bounds = array<i64: 1, 8, 64>}]} {
    %c0 = arith.constant 0 : index
    %c0_0 = arith.constant 0 : index
    %c0_1 = arith.constant 0 : index
    %0 = vector.load %arg1[%c0, %c0_0, %c0_1] : memref<1x8x32xf32, #tpu.memory_space<vmem>>, vector<1x8x32xf32>
    %1 = vector.shape_cast %0 : vector<1x8x32xf32> to vector<8x32xf32>
    %c0_2 = arith.constant 0 : index
    %c0_3 = arith.constant 0 : index
    %c0_4 = arith.constant 0 : index
    %c0_5 = arith.constant 0 : index
    %2 = vector.load %arg2[%c0_2, %c0_3, %c0_4, %c0_5] : memref<1x2x32x96xf32, #tpu.memory_space<vmem>>, vector<1x1x32x96xf32>
    %3 = vector.shape_cast %2 : vector<1x1x32x96xf32> to vector<32x96xf32>
    %c0_6 = arith.constant 0 : index
    %c0_7 = arith.constant 0 : index
    %c0_8 = arith.constant 0 : index
    %c0_9 = arith.constant 0 : index
    %4 = vector.load %arg3[%c0_6, %c0_7, %c0_8, %c0_9] : memref<1x2x32x96xf32, #tpu.memory_space<vmem>>, vector<1x1x32x96xf32>
    %5 = vector.shape_cast %4 : vector<1x1x32x96xf32> to vector<32x96xf32>
    %c0_10 = arith.constant 0 : index
    %c0_11 = arith.constant 0 : index
    %c0_12 = arith.constant 0 : index
    %c0_13 = arith.constant 0 : index
    %6 = vector.load %arg4[%c0_10, %c0_11, %c0_12, %c0_13] : memref<1x2x1x96xf32, #tpu.memory_space<vmem>>, vector<1x1x1x96xf32>
    %7 = vector.shape_cast %6 : vector<1x1x1x96xf32> to vector<1x96xf32>
    %c0_14 = arith.constant 0 : index
    %c0_15 = arith.constant 0 : index
    %c0_16 = arith.constant 0 : index
    %c0_17 = arith.constant 0 : index
    %8 = vector.load %arg5[%c0_14, %c0_15, %c0_16, %c0_17] : memref<1x2x1x96xf32, #tpu.memory_space<vmem>>, vector<1x1x1x96xf32>
    %9 = vector.shape_cast %8 : vector<1x1x1x96xf32> to vector<1x96xf32>
    %cst = arith.constant dense<0.000000e+00> : vector<8x96xf32>
    %10 = tpu.matmul %1, %3, %cst {dimension_numbers = #tpu.dot_dimension_numbers<[1], [0], [0], [1], [0, 0, 1, 1], [], []>} : vector<8x32xf32>, vector<32x96xf32>, vector<8x96xf32> -> vector<8x96xf32>
    %11 = vector.broadcast %7 : vector<1x96xf32> to vector<8x96xf32>
    %12 = arith.addf %10, %11 : vector<8x96xf32>
    %cst_18 = arith.constant 0.000000e+00 : f32
    %13 = vector.broadcast %cst_18 : f32 to vector<2x32xf32>
    %14 = vector.extract_strided_slice %12 {offsets = [0, 0], sizes = [2, 96], strides = [1, 1]} : vector<8x96xf32> to vector<2x96xf32>
    %cst_19 = arith.constant dense<0.000000e+00> : vector<2x96xf32>
    %15 = tpu.matmul %13, %5, %cst_19 {dimension_numbers = #tpu.dot_dimension_numbers<[1], [0], [0], [1], [0, 0, 1, 1], [], []>} : vector<2x32xf32>, vector<32x96xf32>, vector<2x96xf32> -> vector<2x96xf32>
    %16 = vector.broadcast %9 : vector<1x96xf32> to vector<2x96xf32>
    %17 = arith.addf %15, %16 : vector<2x96xf32>
    %18 = vector.extract_strided_slice %14 {offsets = [0, 0], sizes = [2, 32], strides = [1, 1]} : vector<2x96xf32> to vector<2x32xf32>
    %19 = vector.extract_strided_slice %17 {offsets = [0, 0], sizes = [2, 32], strides = [1, 1]} : vector<2x96xf32> to vector<2x32xf32>
    %20 = arith.addf %18, %19 : vector<2x32xf32>
    %21 = arith.negf %20 : vector<2x32xf32>
    %22 = math.exp %21 : vector<2x32xf32>
    %cst_20 = arith.constant 1.000000e+00 : f32
    %23 = vector.broadcast %cst_20 : f32 to vector<2x32xf32>
    %24 = arith.addf %23, %22 : vector<2x32xf32>
    %25 = arith.divf %23, %24 : vector<2x32xf32>
    %26 = vector.extract_strided_slice %14 {offsets = [0, 32], sizes = [2, 32], strides = [1, 1]} : vector<2x96xf32> to vector<2x32xf32>
    %27 = vector.extract_strided_slice %17 {offsets = [0, 32], sizes = [2, 32], strides = [1, 1]} : vector<2x96xf32> to vector<2x32xf32>
    %28 = arith.addf %26, %27 : vector<2x32xf32>
    %29 = arith.negf %28 : vector<2x32xf32>
    %30 = math.exp %29 : vector<2x32xf32>
    %cst_21 = arith.constant 1.000000e+00 : f32
    %31 = vector.broadcast %cst_21 : f32 to vector<2x32xf32>
    %32 = arith.addf %31, %30 : vector<2x32xf32>
    %33 = arith.divf %31, %32 : vector<2x32xf32>
    %34 = vector.extract_strided_slice %14 {offsets = [0, 64], sizes = [2, 32], strides = [1, 1]} : vector<2x96xf32> to vector<2x32xf32>
    %35 = vector.extract_strided_slice %17 {offsets = [0, 64], sizes = [2, 32], strides = [1, 1]} : vector<2x96xf32> to vector<2x32xf32>
    %36 = arith.mulf %25, %35 : vector<2x32xf32>
    %37 = arith.addf %34, %36 : vector<2x32xf32>
    %38 = math.tanh %37 : vector<2x32xf32>
    %cst_22 = arith.constant 1.000000e+00 : f32
    %39 = vector.broadcast %cst_22 : f32 to vector<2x32xf32>
    %40 = arith.subf %39, %33 : vector<2x32xf32>
    %41 = arith.mulf %40, %38 : vector<2x32xf32>
    %42 = arith.mulf %33, %13 : vector<2x32xf32>
    %43 = arith.addf %41, %42 : vector<2x32xf32>
    %44 = vector.extract_strided_slice %12 {offsets = [2, 0], sizes = [2, 96], strides = [1, 1]} : vector<8x96xf32> to vector<2x96xf32>
    %cst_23 = arith.constant dense<0.000000e+00> : vector<2x96xf32>
    %45 = tpu.matmul %43, %5, %cst_23 {dimension_numbers = #tpu.dot_dimension_numbers<[1], [0], [0], [1], [0, 0, 1, 1], [], []>} : vector<2x32xf32>, vector<32x96xf32>, vector<2x96xf32> -> vector<2x96xf32>
    %46 = vector.broadcast %9 : vector<1x96xf32> to vector<2x96xf32>
    %47 = arith.addf %45, %46 : vector<2x96xf32>
    %48 = vector.extract_strided_slice %44 {offsets = [0, 0], sizes = [2, 32], strides = [1, 1]} : vector<2x96xf32> to vector<2x32xf32>
    %49 = vector.extract_strided_slice %47 {offsets = [0, 0], sizes = [2, 32], strides = [1, 1]} : vector<2x96xf32> to vector<2x32xf32>
    %50 = arith.addf %48, %49 : vector<2x32xf32>
    %51 = arith.negf %50 : vector<2x32xf32>
    %52 = math.exp %51 : vector<2x32xf32>
    %cst_24 = arith.constant 1.000000e+00 : f32
    %53 = vector.broadcast %cst_24 : f32 to vector<2x32xf32>
    %54 = arith.addf %53, %52 : vector<2x32xf32>
    %55 = arith.divf %53, %54 : vector<2x32xf32>
    %56 = vector.extract_strided_slice %44 {offsets = [0, 32], sizes = [2, 32], strides = [1, 1]} : vector<2x96xf32> to vector<2x32xf32>
    %57 = vector.extract_strided_slice %47 {offsets = [0, 32], sizes = [2, 32], strides = [1, 1]} : vector<2x96xf32> to vector<2x32xf32>
    %58 = arith.addf %56, %57 : vector<2x32xf32>
    %59 = arith.negf %58 : vector<2x32xf32>
    %60 = math.exp %59 : vector<2x32xf32>
    %cst_25 = arith.constant 1.000000e+00 : f32
    %61 = vector.broadcast %cst_25 : f32 to vector<2x32xf32>
    %62 = arith.addf %61, %60 : vector<2x32xf32>
    %63 = arith.divf %61, %62 : vector<2x32xf32>
    %64 = vector.extract_strided_slice %44 {offsets = [0, 64], sizes = [2, 32], strides = [1, 1]} : vector<2x96xf32> to vector<2x32xf32>
    %65 = vector.extract_strided_slice %47 {offsets = [0, 64], sizes = [2, 32], strides = [1, 1]} : vector<2x96xf32> to vector<2x32xf32>
    %66 = arith.mulf %55, %65 : vector<2x32xf32>
    %67 = arith.addf %64, %66 : vector<2x32xf32>
    %68 = math.tanh %67 : vector<2x32xf32>
    %cst_26 = arith.constant 1.000000e+00 : f32
    %69 = vector.broadcast %cst_26 : f32 to vector<2x32xf32>
    %70 = arith.subf %69, %63 : vector<2x32xf32>
    %71 = arith.mulf %70, %68 : vector<2x32xf32>
    %72 = arith.mulf %63, %43 : vector<2x32xf32>
    %73 = arith.addf %71, %72 : vector<2x32xf32>
    %74 = vector.extract_strided_slice %12 {offsets = [4, 0], sizes = [2, 96], strides = [1, 1]} : vector<8x96xf32> to vector<2x96xf32>
    %cst_27 = arith.constant dense<0.000000e+00> : vector<2x96xf32>
    %75 = tpu.matmul %73, %5, %cst_27 {dimension_numbers = #tpu.dot_dimension_numbers<[1], [0], [0], [1], [0, 0, 1, 1], [], []>} : vector<2x32xf32>, vector<32x96xf32>, vector<2x96xf32> -> vector<2x96xf32>
    %76 = vector.broadcast %9 : vector<1x96xf32> to vector<2x96xf32>
    %77 = arith.addf %75, %76 : vector<2x96xf32>
    %78 = vector.extract_strided_slice %74 {offsets = [0, 0], sizes = [2, 32], strides = [1, 1]} : vector<2x96xf32> to vector<2x32xf32>
    %79 = vector.extract_strided_slice %77 {offsets = [0, 0], sizes = [2, 32], strides = [1, 1]} : vector<2x96xf32> to vector<2x32xf32>
    %80 = arith.addf %78, %79 : vector<2x32xf32>
    %81 = arith.negf %80 : vector<2x32xf32>
    %82 = math.exp %81 : vector<2x32xf32>
    %cst_28 = arith.constant 1.000000e+00 : f32
    %83 = vector.broadcast %cst_28 : f32 to vector<2x32xf32>
    %84 = arith.addf %83, %82 : vector<2x32xf32>
    %85 = arith.divf %83, %84 : vector<2x32xf32>
    %86 = vector.extract_strided_slice %74 {offsets = [0, 32], sizes = [2, 32], strides = [1, 1]} : vector<2x96xf32> to vector<2x32xf32>
    %87 = vector.extract_strided_slice %77 {offsets = [0, 32], sizes = [2, 32], strides = [1, 1]} : vector<2x96xf32> to vector<2x32xf32>
    %88 = arith.addf %86, %87 : vector<2x32xf32>
    %89 = arith.negf %88 : vector<2x32xf32>
    %90 = math.exp %89 : vector<2x32xf32>
    %cst_29 = arith.constant 1.000000e+00 : f32
    %91 = vector.broadcast %cst_29 : f32 to vector<2x32xf32>
    %92 = arith.addf %91, %90 : vector<2x32xf32>
    %93 = arith.divf %91, %92 : vector<2x32xf32>
    %94 = vector.extract_strided_slice %74 {offsets = [0, 64], sizes = [2, 32], strides = [1, 1]} : vector<2x96xf32> to vector<2x32xf32>
    %95 = vector.extract_strided_slice %77 {offsets = [0, 64], sizes = [2, 32], strides = [1, 1]} : vector<2x96xf32> to vector<2x32xf32>
    %96 = arith.mulf %85, %95 : vector<2x32xf32>
    %97 = arith.addf %94, %96 : vector<2x32xf32>
    %98 = math.tanh %97 : vector<2x32xf32>
    %cst_30 = arith.constant 1.000000e+00 : f32
    %99 = vector.broadcast %cst_30 : f32 to vector<2x32xf32>
    %100 = arith.subf %99, %93 : vector<2x32xf32>
    %101 = arith.mulf %100, %98 : vector<2x32xf32>
    %102 = arith.mulf %93, %73 : vector<2x32xf32>
    %103 = arith.addf %101, %102 : vector<2x32xf32>
    %104 = vector.extract_strided_slice %12 {offsets = [6, 0], sizes = [2, 96], strides = [1, 1]} : vector<8x96xf32> to vector<2x96xf32>
    %cst_31 = arith.constant dense<0.000000e+00> : vector<2x96xf32>
    %105 = tpu.matmul %103, %5, %cst_31 {dimension_numbers = #tpu.dot_dimension_numbers<[1], [0], [0], [1], [0, 0, 1, 1], [], []>} : vector<2x32xf32>, vector<32x96xf32>, vector<2x96xf32> -> vector<2x96xf32>
    %106 = vector.broadcast %9 : vector<1x96xf32> to vector<2x96xf32>
    %107 = arith.addf %105, %106 : vector<2x96xf32>
    %108 = vector.extract_strided_slice %104 {offsets = [0, 0], sizes = [2, 32], strides = [1, 1]} : vector<2x96xf32> to vector<2x32xf32>
    %109 = vector.extract_strided_slice %107 {offsets = [0, 0], sizes = [2, 32], strides = [1, 1]} : vector<2x96xf32> to vector<2x32xf32>
    %110 = arith.addf %108, %109 : vector<2x32xf32>
    %111 = arith.negf %110 : vector<2x32xf32>
    %112 = math.exp %111 : vector<2x32xf32>
    %cst_32 = arith.constant 1.000000e+00 : f32
    %113 = vector.broadcast %cst_32 : f32 to vector<2x32xf32>
    %114 = arith.addf %113, %112 : vector<2x32xf32>
    %115 = arith.divf %113, %114 : vector<2x32xf32>
    %116 = vector.extract_strided_slice %104 {offsets = [0, 32], sizes = [2, 32], strides = [1, 1]} : vector<2x96xf32> to vector<2x32xf32>
    %117 = vector.extract_strided_slice %107 {offsets = [0, 32], sizes = [2, 32], strides = [1, 1]} : vector<2x96xf32> to vector<2x32xf32>
    %118 = arith.addf %116, %117 : vector<2x32xf32>
    %119 = arith.negf %118 : vector<2x32xf32>
    %120 = math.exp %119 : vector<2x32xf32>
    %cst_33 = arith.constant 1.000000e+00 : f32
    %121 = vector.broadcast %cst_33 : f32 to vector<2x32xf32>
    %122 = arith.addf %121, %120 : vector<2x32xf32>
    %123 = arith.divf %121, %122 : vector<2x32xf32>
    %124 = vector.extract_strided_slice %104 {offsets = [0, 64], sizes = [2, 32], strides = [1, 1]} : vector<2x96xf32> to vector<2x32xf32>
    %125 = vector.extract_strided_slice %107 {offsets = [0, 64], sizes = [2, 32], strides = [1, 1]} : vector<2x96xf32> to vector<2x32xf32>
    %126 = arith.mulf %115, %125 : vector<2x32xf32>
    %127 = arith.addf %124, %126 : vector<2x32xf32>
    %128 = math.tanh %127 : vector<2x32xf32>
    %cst_34 = arith.constant 1.000000e+00 : f32
    %129 = vector.broadcast %cst_34 : f32 to vector<2x32xf32>
    %130 = arith.subf %129, %123 : vector<2x32xf32>
    %131 = arith.mulf %130, %128 : vector<2x32xf32>
    %132 = arith.mulf %123, %103 : vector<2x32xf32>
    %133 = arith.addf %131, %132 : vector<2x32xf32>
    %c0_35 = arith.constant 0 : index
    %c0_36 = arith.constant 0 : index
    %134 = vector.load %arg11[%c0_35, %c0_36] : memref<8x64xf32, #tpu.memory_space<vmem>>, vector<2x32xf32>
    tpu.vector_store %arg11[%c0_35, %c0_36], %43 {strides = array<i32>} : memref<8x64xf32, #tpu.memory_space<vmem>>, vector<2x32xf32>,
    %c2 = arith.constant 2 : index
    %c0_37 = arith.constant 0 : index
    %135 = vector.load %arg11[%c2, %c0_37] : memref<8x64xf32, #tpu.memory_space<vmem>>, vector<2x32xf32>
    tpu.vector_store %arg11[%c2, %c0_37], %73 {strides = array<i32>} : memref<8x64xf32, #tpu.memory_space<vmem>>, vector<2x32xf32>,
    %c4 = arith.constant 4 : index
    %c0_38 = arith.constant 0 : index
    %136 = vector.load %arg11[%c4, %c0_38] : memref<8x64xf32, #tpu.memory_space<vmem>>, vector<2x32xf32>
    tpu.vector_store %arg11[%c4, %c0_38], %103 {strides = array<i32>} : memref<8x64xf32, #tpu.memory_space<vmem>>, vector<2x32xf32>,
    %c6 = arith.constant 6 : index
    %c0_39 = arith.constant 0 : index
    %137 = vector.load %arg11[%c6, %c0_39] : memref<8x64xf32, #tpu.memory_space<vmem>>, vector<2x32xf32>
    tpu.vector_store %arg11[%c6, %c0_39], %133 {strides = array<i32>} : memref<8x64xf32, #tpu.memory_space<vmem>>, vector<2x32xf32>,
    %c0_40 = arith.constant 0 : index
    %c1 = arith.constant 1 : index
    %c0_41 = arith.constant 0 : index
    %c0_42 = arith.constant 0 : index
    %138 = vector.load %arg2[%c0_40, %c1, %c0_41, %c0_42] : memref<1x2x32x96xf32, #tpu.memory_space<vmem>>, vector<1x1x32x96xf32>
    %139 = vector.shape_cast %138 : vector<1x1x32x96xf32> to vector<32x96xf32>
    %c0_43 = arith.constant 0 : index
    %c1_44 = arith.constant 1 : index
    %c0_45 = arith.constant 0 : index
    %c0_46 = arith.constant 0 : index
    %140 = vector.load %arg3[%c0_43, %c1_44, %c0_45, %c0_46] : memref<1x2x32x96xf32, #tpu.memory_space<vmem>>, vector<1x1x32x96xf32>
    %141 = vector.shape_cast %140 : vector<1x1x32x96xf32> to vector<32x96xf32>
    %c0_47 = arith.constant 0 : index
    %c1_48 = arith.constant 1 : index
    %c0_49 = arith.constant 0 : index
    %c0_50 = arith.constant 0 : index
    %142 = vector.load %arg4[%c0_47, %c1_48, %c0_49, %c0_50] : memref<1x2x1x96xf32, #tpu.memory_space<vmem>>, vector<1x1x1x96xf32>
    %143 = vector.shape_cast %142 : vector<1x1x1x96xf32> to vector<1x96xf32>
    %c0_51 = arith.constant 0 : index
    %c1_52 = arith.constant 1 : index
    %c0_53 = arith.constant 0 : index
    %c0_54 = arith.constant 0 : index
    %144 = vector.load %arg5[%c0_51, %c1_52, %c0_53, %c0_54] : memref<1x2x1x96xf32, #tpu.memory_space<vmem>>, vector<1x1x1x96xf32>
    %145 = vector.shape_cast %144 : vector<1x1x1x96xf32> to vector<1x96xf32>
    %cst_55 = arith.constant dense<0.000000e+00> : vector<8x96xf32>
    %146 = tpu.matmul %1, %139, %cst_55 {dimension_numbers = #tpu.dot_dimension_numbers<[1], [0], [0], [1], [0, 0, 1, 1], [], []>} : vector<8x32xf32>, vector<32x96xf32>, vector<8x96xf32> -> vector<8x96xf32>
    %147 = vector.broadcast %143 : vector<1x96xf32> to vector<8x96xf32>
    %148 = arith.addf %146, %147 : vector<8x96xf32>
    %cst_56 = arith.constant 0.000000e+00 : f32
    %149 = vector.broadcast %cst_56 : f32 to vector<2x32xf32>
    %150 = vector.extract_strided_slice %148 {offsets = [6, 0], sizes = [2, 96], strides = [1, 1]} : vector<8x96xf32> to vector<2x96xf32>
    %cst_57 = arith.constant dense<0.000000e+00> : vector<2x96xf32>
    %151 = tpu.matmul %149, %141, %cst_57 {dimension_numbers = #tpu.dot_dimension_numbers<[1], [0], [0], [1], [0, 0, 1, 1], [], []>} : vector<2x32xf32>, vector<32x96xf32>, vector<2x96xf32> -> vector<2x96xf32>
    %152 = vector.broadcast %145 : vector<1x96xf32> to vector<2x96xf32>
    %153 = arith.addf %151, %152 : vector<2x96xf32>
    %154 = vector.extract_strided_slice %150 {offsets = [0, 0], sizes = [2, 32], strides = [1, 1]} : vector<2x96xf32> to vector<2x32xf32>
    %155 = vector.extract_strided_slice %153 {offsets = [0, 0], sizes = [2, 32], strides = [1, 1]} : vector<2x96xf32> to vector<2x32xf32>
    %156 = arith.addf %154, %155 : vector<2x32xf32>
    %157 = arith.negf %156 : vector<2x32xf32>
    %158 = math.exp %157 : vector<2x32xf32>
    %cst_58 = arith.constant 1.000000e+00 : f32
    %159 = vector.broadcast %cst_58 : f32 to vector<2x32xf32>
    %160 = arith.addf %159, %158 : vector<2x32xf32>
    %161 = arith.divf %159, %160 : vector<2x32xf32>
    %162 = vector.extract_strided_slice %150 {offsets = [0, 32], sizes = [2, 32], strides = [1, 1]} : vector<2x96xf32> to vector<2x32xf32>
    %163 = vector.extract_strided_slice %153 {offsets = [0, 32], sizes = [2, 32], strides = [1, 1]} : vector<2x96xf32> to vector<2x32xf32>
    %164 = arith.addf %162, %163 : vector<2x32xf32>
    %165 = arith.negf %164 : vector<2x32xf32>
    %166 = math.exp %165 : vector<2x32xf32>
    %cst_59 = arith.constant 1.000000e+00 : f32
    %167 = vector.broadcast %cst_59 : f32 to vector<2x32xf32>
    %168 = arith.addf %167, %166 : vector<2x32xf32>
    %169 = arith.divf %167, %168 : vector<2x32xf32>
    %170 = vector.extract_strided_slice %150 {offsets = [0, 64], sizes = [2, 32], strides = [1, 1]} : vector<2x96xf32> to vector<2x32xf32>
    %171 = vector.extract_strided_slice %153 {offsets = [0, 64], sizes = [2, 32], strides = [1, 1]} : vector<2x96xf32> to vector<2x32xf32>
    %172 = arith.mulf %161, %171 : vector<2x32xf32>
    %173 = arith.addf %170, %172 : vector<2x32xf32>
    %174 = math.tanh %173 : vector<2x32xf32>
    %cst_60 = arith.constant 1.000000e+00 : f32
    %175 = vector.broadcast %cst_60 : f32 to vector<2x32xf32>
    %176 = arith.subf %175, %169 : vector<2x32xf32>
    %177 = arith.mulf %176, %174 : vector<2x32xf32>
    %178 = arith.mulf %169, %149 : vector<2x32xf32>
    %179 = arith.addf %177, %178 : vector<2x32xf32>
    %180 = vector.extract_strided_slice %148 {offsets = [4, 0], sizes = [2, 96], strides = [1, 1]} : vector<8x96xf32> to vector<2x96xf32>
    %cst_61 = arith.constant dense<0.000000e+00> : vector<2x96xf32>
    %181 = tpu.matmul %179, %141, %cst_61 {dimension_numbers = #tpu.dot_dimension_numbers<[1], [0], [0], [1], [0, 0, 1, 1], [], []>} : vector<2x32xf32>, vector<32x96xf32>, vector<2x96xf32> -> vector<2x96xf32>
    %182 = vector.broadcast %145 : vector<1x96xf32> to vector<2x96xf32>
    %183 = arith.addf %181, %182 : vector<2x96xf32>
    %184 = vector.extract_strided_slice %180 {offsets = [0, 0], sizes = [2, 32], strides = [1, 1]} : vector<2x96xf32> to vector<2x32xf32>
    %185 = vector.extract_strided_slice %183 {offsets = [0, 0], sizes = [2, 32], strides = [1, 1]} : vector<2x96xf32> to vector<2x32xf32>
    %186 = arith.addf %184, %185 : vector<2x32xf32>
    %187 = arith.negf %186 : vector<2x32xf32>
    %188 = math.exp %187 : vector<2x32xf32>
    %cst_62 = arith.constant 1.000000e+00 : f32
    %189 = vector.broadcast %cst_62 : f32 to vector<2x32xf32>
    %190 = arith.addf %189, %188 : vector<2x32xf32>
    %191 = arith.divf %189, %190 : vector<2x32xf32>
    %192 = vector.extract_strided_slice %180 {offsets = [0, 32], sizes = [2, 32], strides = [1, 1]} : vector<2x96xf32> to vector<2x32xf32>
    %193 = vector.extract_strided_slice %183 {offsets = [0, 32], sizes = [2, 32], strides = [1, 1]} : vector<2x96xf32> to vector<2x32xf32>
    %194 = arith.addf %192, %193 : vector<2x32xf32>
    %195 = arith.negf %194 : vector<2x32xf32>
    %196 = math.exp %195 : vector<2x32xf32>
    %cst_63 = arith.constant 1.000000e+00 : f32
    %197 = vector.broadcast %cst_63 : f32 to vector<2x32xf32>
    %198 = arith.addf %197, %196 : vector<2x32xf32>
    %199 = arith.divf %197, %198 : vector<2x32xf32>
    %200 = vector.extract_strided_slice %180 {offsets = [0, 64], sizes = [2, 32], strides = [1, 1]} : vector<2x96xf32> to vector<2x32xf32>
    %201 = vector.extract_strided_slice %183 {offsets = [0, 64], sizes = [2, 32], strides = [1, 1]} : vector<2x96xf32> to vector<2x32xf32>
    %202 = arith.mulf %191, %201 : vector<2x32xf32>
    %203 = arith.addf %200, %202 : vector<2x32xf32>
    %204 = math.tanh %203 : vector<2x32xf32>
    %cst_64 = arith.constant 1.000000e+00 : f32
    %205 = vector.broadcast %cst_64 : f32 to vector<2x32xf32>
    %206 = arith.subf %205, %199 : vector<2x32xf32>
    %207 = arith.mulf %206, %204 : vector<2x32xf32>
    %208 = arith.mulf %199, %179 : vector<2x32xf32>
    %209 = arith.addf %207, %208 : vector<2x32xf32>
    %210 = vector.extract_strided_slice %148 {offsets = [2, 0], sizes = [2, 96], strides = [1, 1]} : vector<8x96xf32> to vector<2x96xf32>
    %cst_65 = arith.constant dense<0.000000e+00> : vector<2x96xf32>
    %211 = tpu.matmul %209, %141, %cst_65 {dimension_numbers = #tpu.dot_dimension_numbers<[1], [0], [0], [1], [0, 0, 1, 1], [], []>} : vector<2x32xf32>, vector<32x96xf32>, vector<2x96xf32> -> vector<2x96xf32>
    %212 = vector.broadcast %145 : vector<1x96xf32> to vector<2x96xf32>
    %213 = arith.addf %211, %212 : vector<2x96xf32>
    %214 = vector.extract_strided_slice %210 {offsets = [0, 0], sizes = [2, 32], strides = [1, 1]} : vector<2x96xf32> to vector<2x32xf32>
    %215 = vector.extract_strided_slice %213 {offsets = [0, 0], sizes = [2, 32], strides = [1, 1]} : vector<2x96xf32> to vector<2x32xf32>
    %216 = arith.addf %214, %215 : vector<2x32xf32>
    %217 = arith.negf %216 : vector<2x32xf32>
    %218 = math.exp %217 : vector<2x32xf32>
    %cst_66 = arith.constant 1.000000e+00 : f32
    %219 = vector.broadcast %cst_66 : f32 to vector<2x32xf32>
    %220 = arith.addf %219, %218 : vector<2x32xf32>
    %221 = arith.divf %219, %220 : vector<2x32xf32>
    %222 = vector.extract_strided_slice %210 {offsets = [0, 32], sizes = [2, 32], strides = [1, 1]} : vector<2x96xf32> to vector<2x32xf32>
    %223 = vector.extract_strided_slice %213 {offsets = [0, 32], sizes = [2, 32], strides = [1, 1]} : vector<2x96xf32> to vector<2x32xf32>
    %224 = arith.addf %222, %223 : vector<2x32xf32>
    %225 = arith.negf %224 : vector<2x32xf32>
    %226 = math.exp %225 : vector<2x32xf32>
    %cst_67 = arith.constant 1.000000e+00 : f32
    %227 = vector.broadcast %cst_67 : f32 to vector<2x32xf32>
    %228 = arith.addf %227, %226 : vector<2x32xf32>
    %229 = arith.divf %227, %228 : vector<2x32xf32>
    %230 = vector.extract_strided_slice %210 {offsets = [0, 64], sizes = [2, 32], strides = [1, 1]} : vector<2x96xf32> to vector<2x32xf32>
    %231 = vector.extract_strided_slice %213 {offsets = [0, 64], sizes = [2, 32], strides = [1, 1]} : vector<2x96xf32> to vector<2x32xf32>
    %232 = arith.mulf %221, %231 : vector<2x32xf32>
    %233 = arith.addf %230, %232 : vector<2x32xf32>
    %234 = math.tanh %233 : vector<2x32xf32>
    %cst_68 = arith.constant 1.000000e+00 : f32
    %235 = vector.broadcast %cst_68 : f32 to vector<2x32xf32>
    %236 = arith.subf %235, %229 : vector<2x32xf32>
    %237 = arith.mulf %236, %234 : vector<2x32xf32>
    %238 = arith.mulf %229, %209 : vector<2x32xf32>
    %239 = arith.addf %237, %238 : vector<2x32xf32>
    %240 = vector.extract_strided_slice %148 {offsets = [0, 0], sizes = [2, 96], strides = [1, 1]} : vector<8x96xf32> to vector<2x96xf32>
    %cst_69 = arith.constant dense<0.000000e+00> : vector<2x96xf32>
    %241 = tpu.matmul %239, %141, %cst_69 {dimension_numbers = #tpu.dot_dimension_numbers<[1], [0], [0], [1], [0, 0, 1, 1], [], []>} : vector<2x32xf32>, vector<32x96xf32>, vector<2x96xf32> -> vector<2x96xf32>
    %242 = vector.broadcast %145 : vector<1x96xf32> to vector<2x96xf32>
    %243 = arith.addf %241, %242 : vector<2x96xf32>
    %244 = vector.extract_strided_slice %240 {offsets = [0, 0], sizes = [2, 32], strides = [1, 1]} : vector<2x96xf32> to vector<2x32xf32>
    %245 = vector.extract_strided_slice %243 {offsets = [0, 0], sizes = [2, 32], strides = [1, 1]} : vector<2x96xf32> to vector<2x32xf32>
    %246 = arith.addf %244, %245 : vector<2x32xf32>
    %247 = arith.negf %246 : vector<2x32xf32>
    %248 = math.exp %247 : vector<2x32xf32>
    %cst_70 = arith.constant 1.000000e+00 : f32
    %249 = vector.broadcast %cst_70 : f32 to vector<2x32xf32>
    %250 = arith.addf %249, %248 : vector<2x32xf32>
    %251 = arith.divf %249, %250 : vector<2x32xf32>
    %252 = vector.extract_strided_slice %240 {offsets = [0, 32], sizes = [2, 32], strides = [1, 1]} : vector<2x96xf32> to vector<2x32xf32>
    %253 = vector.extract_strided_slice %243 {offsets = [0, 32], sizes = [2, 32], strides = [1, 1]} : vector<2x96xf32> to vector<2x32xf32>
    %254 = arith.addf %252, %253 : vector<2x32xf32>
    %255 = arith.negf %254 : vector<2x32xf32>
    %256 = math.exp %255 : vector<2x32xf32>
    %cst_71 = arith.constant 1.000000e+00 : f32
    %257 = vector.broadcast %cst_71 : f32 to vector<2x32xf32>
    %258 = arith.addf %257, %256 : vector<2x32xf32>
    %259 = arith.divf %257, %258 : vector<2x32xf32>
    %260 = vector.extract_strided_slice %240 {offsets = [0, 64], sizes = [2, 32], strides = [1, 1]} : vector<2x96xf32> to vector<2x32xf32>
    %261 = vector.extract_strided_slice %243 {offsets = [0, 64], sizes = [2, 32], strides = [1, 1]} : vector<2x96xf32> to vector<2x32xf32>
    %262 = arith.mulf %251, %261 : vector<2x32xf32>
    %263 = arith.addf %260, %262 : vector<2x32xf32>
    %264 = math.tanh %263 : vector<2x32xf32>
    %cst_72 = arith.constant 1.000000e+00 : f32
    %265 = vector.broadcast %cst_72 : f32 to vector<2x32xf32>
    %266 = arith.subf %265, %259 : vector<2x32xf32>
    %267 = arith.mulf %266, %264 : vector<2x32xf32>
    %268 = arith.mulf %259, %239 : vector<2x32xf32>
    %269 = arith.addf %267, %268 : vector<2x32xf32>
    %c0_73 = arith.constant 0 : index
    %c32 = arith.constant 32 : index
    %270 = vector.load %arg11[%c0_73, %c32] : memref<8x64xf32, #tpu.memory_space<vmem>>, vector<2x32xf32>
    tpu.vector_store %arg11[%c0_73, %c32], %269 {strides = array<i32>} : memref<8x64xf32, #tpu.memory_space<vmem>>, vector<2x32xf32>,
    %c2_74 = arith.constant 2 : index
    %c32_75 = arith.constant 32 : index
    %271 = vector.load %arg11[%c2_74, %c32_75] : memref<8x64xf32, #tpu.memory_space<vmem>>, vector<2x32xf32>
    tpu.vector_store %arg11[%c2_74, %c32_75], %239 {strides = array<i32>} : memref<8x64xf32, #tpu.memory_space<vmem>>, vector<2x32xf32>,
    %c4_76 = arith.constant 4 : index
    %c32_77 = arith.constant 32 : index
    %272 = vector.load %arg11[%c4_76, %c32_77] : memref<8x64xf32, #tpu.memory_space<vmem>>, vector<2x32xf32>
    tpu.vector_store %arg11[%c4_76, %c32_77], %209 {strides = array<i32>} : memref<8x64xf32, #tpu.memory_space<vmem>>, vector<2x32xf32>,
    %c6_78 = arith.constant 6 : index
    %c32_79 = arith.constant 32 : index
    %273 = vector.load %arg11[%c6_78, %c32_79] : memref<8x64xf32, #tpu.memory_space<vmem>>, vector<2x32xf32>
    tpu.vector_store %arg11[%c6_78, %c32_79], %179 {strides = array<i32>} : memref<8x64xf32, #tpu.memory_space<vmem>>, vector<2x32xf32>,
    %c0_80 = arith.constant 0 : index
    %c0_81 = arith.constant 0 : index
    %274 = vector.load %arg11[%c0_80, %c0_81] : memref<8x64xf32, #tpu.memory_space<vmem>>, vector<8x64xf32>
    %c0_82 = arith.constant 0 : index
    %c0_83 = arith.constant 0 : index
    %c0_84 = arith.constant 0 : index
    %c0_85 = arith.constant 0 : index
    %275 = vector.load %arg6[%c0_82, %c0_83, %c0_84, %c0_85] : memref<1x2x64x96xf32, #tpu.memory_space<vmem>>, vector<1x1x64x96xf32>
    %276 = vector.shape_cast %275 : vector<1x1x64x96xf32> to vector<64x96xf32>
    %c0_86 = arith.constant 0 : index
    %c0_87 = arith.constant 0 : index
    %c0_88 = arith.constant 0 : index
    %c0_89 = arith.constant 0 : index
    %277 = vector.load %arg7[%c0_86, %c0_87, %c0_88, %c0_89] : memref<1x2x32x96xf32, #tpu.memory_space<vmem>>, vector<1x1x32x96xf32>
    %278 = vector.shape_cast %277 : vector<1x1x32x96xf32> to vector<32x96xf32>
    %c0_90 = arith.constant 0 : index
    %c0_91 = arith.constant 0 : index
    %c0_92 = arith.constant 0 : index
    %c0_93 = arith.constant 0 : index
    %279 = vector.load %arg8[%c0_90, %c0_91, %c0_92, %c0_93] : memref<1x2x1x96xf32, #tpu.memory_space<vmem>>, vector<1x1x1x96xf32>
    %280 = vector.shape_cast %279 : vector<1x1x1x96xf32> to vector<1x96xf32>
    %c0_94 = arith.constant 0 : index
    %c0_95 = arith.constant 0 : index
    %c0_96 = arith.constant 0 : index
    %c0_97 = arith.constant 0 : index
    %281 = vector.load %arg9[%c0_94, %c0_95, %c0_96, %c0_97] : memref<1x2x1x96xf32, #tpu.memory_space<vmem>>, vector<1x1x1x96xf32>
    %282 = vector.shape_cast %281 : vector<1x1x1x96xf32> to vector<1x96xf32>
    %cst_98 = arith.constant dense<0.000000e+00> : vector<8x96xf32>
    %283 = tpu.matmul %274, %276, %cst_98 {dimension_numbers = #tpu.dot_dimension_numbers<[1], [0], [0], [1], [0, 0, 1, 1], [], []>} : vector<8x64xf32>, vector<64x96xf32>, vector<8x96xf32> -> vector<8x96xf32>
    %284 = vector.broadcast %280 : vector<1x96xf32> to vector<8x96xf32>
    %285 = arith.addf %283, %284 : vector<8x96xf32>
    %cst_99 = arith.constant 0.000000e+00 : f32
    %286 = vector.broadcast %cst_99 : f32 to vector<2x32xf32>
    %287 = vector.extract_strided_slice %285 {offsets = [0, 0], sizes = [2, 96], strides = [1, 1]} : vector<8x96xf32> to vector<2x96xf32>
    %cst_100 = arith.constant dense<0.000000e+00> : vector<2x96xf32>
    %288 = tpu.matmul %286, %278, %cst_100 {dimension_numbers = #tpu.dot_dimension_numbers<[1], [0], [0], [1], [0, 0, 1, 1], [], []>} : vector<2x32xf32>, vector<32x96xf32>, vector<2x96xf32> -> vector<2x96xf32>
    %289 = vector.broadcast %282 : vector<1x96xf32> to vector<2x96xf32>
    %290 = arith.addf %288, %289 : vector<2x96xf32>
    %291 = vector.extract_strided_slice %287 {offsets = [0, 0], sizes = [2, 32], strides = [1, 1]} : vector<2x96xf32> to vector<2x32xf32>
    %292 = vector.extract_strided_slice %290 {offsets = [0, 0], sizes = [2, 32], strides = [1, 1]} : vector<2x96xf32> to vector<2x32xf32>
    %293 = arith.addf %291, %292 : vector<2x32xf32>
    %294 = arith.negf %293 : vector<2x32xf32>
    %295 = math.exp %294 : vector<2x32xf32>
    %cst_101 = arith.constant 1.000000e+00 : f32
    %296 = vector.broadcast %cst_101 : f32 to vector<2x32xf32>
    %297 = arith.addf %296, %295 : vector<2x32xf32>
    %298 = arith.divf %296, %297 : vector<2x32xf32>
    %299 = vector.extract_strided_slice %287 {offsets = [0, 32], sizes = [2, 32], strides = [1, 1]} : vector<2x96xf32> to vector<2x32xf32>
    %300 = vector.extract_strided_slice %290 {offsets = [0, 32], sizes = [2, 32], strides = [1, 1]} : vector<2x96xf32> to vector<2x32xf32>
    %301 = arith.addf %299, %300 : vector<2x32xf32>
    %302 = arith.negf %301 : vector<2x32xf32>
    %303 = math.exp %302 : vector<2x32xf32>
    %cst_102 = arith.constant 1.000000e+00 : f32
    %304 = vector.broadcast %cst_102 : f32 to vector<2x32xf32>
    %305 = arith.addf %304, %303 : vector<2x32xf32>
    %306 = arith.divf %304, %305 : vector<2x32xf32>
    %307 = vector.extract_strided_slice %287 {offsets = [0, 64], sizes = [2, 32], strides = [1, 1]} : vector<2x96xf32> to vector<2x32xf32>
    %308 = vector.extract_strided_slice %290 {offsets = [0, 64], sizes = [2, 32], strides = [1, 1]} : vector<2x96xf32> to vector<2x32xf32>
    %309 = arith.mulf %298, %308 : vector<2x32xf32>
    %310 = arith.addf %307, %309 : vector<2x32xf32>
    %311 = math.tanh %310 : vector<2x32xf32>
    %cst_103 = arith.constant 1.000000e+00 : f32
    %312 = vector.broadcast %cst_103 : f32 to vector<2x32xf32>
    %313 = arith.subf %312, %306 : vector<2x32xf32>
    %314 = arith.mulf %313, %311 : vector<2x32xf32>
    %315 = arith.mulf %306, %286 : vector<2x32xf32>
    %316 = arith.addf %314, %315 : vector<2x32xf32>
    %317 = vector.extract_strided_slice %285 {offsets = [2, 0], sizes = [2, 96], strides = [1, 1]} : vector<8x96xf32> to vector<2x96xf32>
    %cst_104 = arith.constant dense<0.000000e+00> : vector<2x96xf32>
    %318 = tpu.matmul %316, %278, %cst_104 {dimension_numbers = #tpu.dot_dimension_numbers<[1], [0], [0], [1], [0, 0, 1, 1], [], []>} : vector<2x32xf32>, vector<32x96xf32>, vector<2x96xf32> -> vector<2x96xf32>
    %319 = vector.broadcast %282 : vector<1x96xf32> to vector<2x96xf32>
    %320 = arith.addf %318, %319 : vector<2x96xf32>
    %321 = vector.extract_strided_slice %317 {offsets = [0, 0], sizes = [2, 32], strides = [1, 1]} : vector<2x96xf32> to vector<2x32xf32>
    %322 = vector.extract_strided_slice %320 {offsets = [0, 0], sizes = [2, 32], strides = [1, 1]} : vector<2x96xf32> to vector<2x32xf32>
    %323 = arith.addf %321, %322 : vector<2x32xf32>
    %324 = arith.negf %323 : vector<2x32xf32>
    %325 = math.exp %324 : vector<2x32xf32>
    %cst_105 = arith.constant 1.000000e+00 : f32
    %326 = vector.broadcast %cst_105 : f32 to vector<2x32xf32>
    %327 = arith.addf %326, %325 : vector<2x32xf32>
    %328 = arith.divf %326, %327 : vector<2x32xf32>
    %329 = vector.extract_strided_slice %317 {offsets = [0, 32], sizes = [2, 32], strides = [1, 1]} : vector<2x96xf32> to vector<2x32xf32>
    %330 = vector.extract_strided_slice %320 {offsets = [0, 32], sizes = [2, 32], strides = [1, 1]} : vector<2x96xf32> to vector<2x32xf32>
    %331 = arith.addf %329, %330 : vector<2x32xf32>
    %332 = arith.negf %331 : vector<2x32xf32>
    %333 = math.exp %332 : vector<2x32xf32>
    %cst_106 = arith.constant 1.000000e+00 : f32
    %334 = vector.broadcast %cst_106 : f32 to vector<2x32xf32>
    %335 = arith.addf %334, %333 : vector<2x32xf32>
    %336 = arith.divf %334, %335 : vector<2x32xf32>
    %337 = vector.extract_strided_slice %317 {offsets = [0, 64], sizes = [2, 32], strides = [1, 1]} : vector<2x96xf32> to vector<2x32xf32>
    %338 = vector.extract_strided_slice %320 {offsets = [0, 64], sizes = [2, 32], strides = [1, 1]} : vector<2x96xf32> to vector<2x32xf32>
    %339 = arith.mulf %328, %338 : vector<2x32xf32>
    %340 = arith.addf %337, %339 : vector<2x32xf32>
    %341 = math.tanh %340 : vector<2x32xf32>
    %cst_107 = arith.constant 1.000000e+00 : f32
    %342 = vector.broadcast %cst_107 : f32 to vector<2x32xf32>
    %343 = arith.subf %342, %336 : vector<2x32xf32>
    %344 = arith.mulf %343, %341 : vector<2x32xf32>
    %345 = arith.mulf %336, %316 : vector<2x32xf32>
    %346 = arith.addf %344, %345 : vector<2x32xf32>
    %347 = vector.extract_strided_slice %285 {offsets = [4, 0], sizes = [2, 96], strides = [1, 1]} : vector<8x96xf32> to vector<2x96xf32>
    %cst_108 = arith.constant dense<0.000000e+00> : vector<2x96xf32>
    %348 = tpu.matmul %346, %278, %cst_108 {dimension_numbers = #tpu.dot_dimension_numbers<[1], [0], [0], [1], [0, 0, 1, 1], [], []>} : vector<2x32xf32>, vector<32x96xf32>, vector<2x96xf32> -> vector<2x96xf32>
    %349 = vector.broadcast %282 : vector<1x96xf32> to vector<2x96xf32>
    %350 = arith.addf %348, %349 : vector<2x96xf32>
    %351 = vector.extract_strided_slice %347 {offsets = [0, 0], sizes = [2, 32], strides = [1, 1]} : vector<2x96xf32> to vector<2x32xf32>
    %352 = vector.extract_strided_slice %350 {offsets = [0, 0], sizes = [2, 32], strides = [1, 1]} : vector<2x96xf32> to vector<2x32xf32>
    %353 = arith.addf %351, %352 : vector<2x32xf32>
    %354 = arith.negf %353 : vector<2x32xf32>
    %355 = math.exp %354 : vector<2x32xf32>
    %cst_109 = arith.constant 1.000000e+00 : f32
    %356 = vector.broadcast %cst_109 : f32 to vector<2x32xf32>
    %357 = arith.addf %356, %355 : vector<2x32xf32>
    %358 = arith.divf %356, %357 : vector<2x32xf32>
    %359 = vector.extract_strided_slice %347 {offsets = [0, 32], sizes = [2, 32], strides = [1, 1]} : vector<2x96xf32> to vector<2x32xf32>
    %360 = vector.extract_strided_slice %350 {offsets = [0, 32], sizes = [2, 32], strides = [1, 1]} : vector<2x96xf32> to vector<2x32xf32>
    %361 = arith.addf %359, %360 : vector<2x32xf32>
    %362 = arith.negf %361 : vector<2x32xf32>
    %363 = math.exp %362 : vector<2x32xf32>
    %cst_110 = arith.constant 1.000000e+00 : f32
    %364 = vector.broadcast %cst_110 : f32 to vector<2x32xf32>
    %365 = arith.addf %364, %363 : vector<2x32xf32>
    %366 = arith.divf %364, %365 : vector<2x32xf32>
    %367 = vector.extract_strided_slice %347 {offsets = [0, 64], sizes = [2, 32], strides = [1, 1]} : vector<2x96xf32> to vector<2x32xf32>
    %368 = vector.extract_strided_slice %350 {offsets = [0, 64], sizes = [2, 32], strides = [1, 1]} : vector<2x96xf32> to vector<2x32xf32>
    %369 = arith.mulf %358, %368 : vector<2x32xf32>
    %370 = arith.addf %367, %369 : vector<2x32xf32>
    %371 = math.tanh %370 : vector<2x32xf32>
    %cst_111 = arith.constant 1.000000e+00 : f32
    %372 = vector.broadcast %cst_111 : f32 to vector<2x32xf32>
    %373 = arith.subf %372, %366 : vector<2x32xf32>
    %374 = arith.mulf %373, %371 : vector<2x32xf32>
    %375 = arith.mulf %366, %346 : vector<2x32xf32>
    %376 = arith.addf %374, %375 : vector<2x32xf32>
    %377 = vector.extract_strided_slice %285 {offsets = [6, 0], sizes = [2, 96], strides = [1, 1]} : vector<8x96xf32> to vector<2x96xf32>
    %cst_112 = arith.constant dense<0.000000e+00> : vector<2x96xf32>
    %378 = tpu.matmul %376, %278, %cst_112 {dimension_numbers = #tpu.dot_dimension_numbers<[1], [0], [0], [1], [0, 0, 1, 1], [], []>} : vector<2x32xf32>, vector<32x96xf32>, vector<2x96xf32> -> vector<2x96xf32>
    %379 = vector.broadcast %282 : vector<1x96xf32> to vector<2x96xf32>
    %380 = arith.addf %378, %379 : vector<2x96xf32>
    %381 = vector.extract_strided_slice %377 {offsets = [0, 0], sizes = [2, 32], strides = [1, 1]} : vector<2x96xf32> to vector<2x32xf32>
    %382 = vector.extract_strided_slice %380 {offsets = [0, 0], sizes = [2, 32], strides = [1, 1]} : vector<2x96xf32> to vector<2x32xf32>
    %383 = arith.addf %381, %382 : vector<2x32xf32>
    %384 = arith.negf %383 : vector<2x32xf32>
    %385 = math.exp %384 : vector<2x32xf32>
    %cst_113 = arith.constant 1.000000e+00 : f32
    %386 = vector.broadcast %cst_113 : f32 to vector<2x32xf32>
    %387 = arith.addf %386, %385 : vector<2x32xf32>
    %388 = arith.divf %386, %387 : vector<2x32xf32>
    %389 = vector.extract_strided_slice %377 {offsets = [0, 32], sizes = [2, 32], strides = [1, 1]} : vector<2x96xf32> to vector<2x32xf32>
    %390 = vector.extract_strided_slice %380 {offsets = [0, 32], sizes = [2, 32], strides = [1, 1]} : vector<2x96xf32> to vector<2x32xf32>
    %391 = arith.addf %389, %390 : vector<2x32xf32>
    %392 = arith.negf %391 : vector<2x32xf32>
    %393 = math.exp %392 : vector<2x32xf32>
    %cst_114 = arith.constant 1.000000e+00 : f32
    %394 = vector.broadcast %cst_114 : f32 to vector<2x32xf32>
    %395 = arith.addf %394, %393 : vector<2x32xf32>
    %396 = arith.divf %394, %395 : vector<2x32xf32>
    %397 = vector.extract_strided_slice %377 {offsets = [0, 64], sizes = [2, 32], strides = [1, 1]} : vector<2x96xf32> to vector<2x32xf32>
    %398 = vector.extract_strided_slice %380 {offsets = [0, 64], sizes = [2, 32], strides = [1, 1]} : vector<2x96xf32> to vector<2x32xf32>
    %399 = arith.mulf %388, %398 : vector<2x32xf32>
    %400 = arith.addf %397, %399 : vector<2x32xf32>
    %401 = math.tanh %400 : vector<2x32xf32>
    %cst_115 = arith.constant 1.000000e+00 : f32
    %402 = vector.broadcast %cst_115 : f32 to vector<2x32xf32>
    %403 = arith.subf %402, %396 : vector<2x32xf32>
    %404 = arith.mulf %403, %401 : vector<2x32xf32>
    %405 = arith.mulf %396, %376 : vector<2x32xf32>
    %406 = arith.addf %404, %405 : vector<2x32xf32>
    %c0_116 = arith.constant 0 : index
    %c0_117 = arith.constant 0 : index
    %c0_118 = arith.constant 0 : index
    %407 = vector.load %arg10[%c0_116, %c0_117, %c0_118] : memref<1x8x64xf32, #tpu.memory_space<vmem>>, vector<1x2x32xf32>
    %408 = vector.shape_cast %407 : vector<1x2x32xf32> to vector<2x32xf32>
    %409 = vector.shape_cast %316 : vector<2x32xf32> to vector<1x2x32xf32>
    tpu.vector_store %arg10[%c0_116, %c0_117, %c0_118], %409 {strides = array<i32>} : memref<1x8x64xf32, #tpu.memory_space<vmem>>, vector<1x2x32xf32>,
    %c0_119 = arith.constant 0 : index
    %c2_120 = arith.constant 2 : index
    %c0_121 = arith.constant 0 : index
    %410 = vector.load %arg10[%c0_119, %c2_120, %c0_121] : memref<1x8x64xf32, #tpu.memory_space<vmem>>, vector<1x2x32xf32>
    %411 = vector.shape_cast %410 : vector<1x2x32xf32> to vector<2x32xf32>
    %412 = vector.shape_cast %346 : vector<2x32xf32> to vector<1x2x32xf32>
    tpu.vector_store %arg10[%c0_119, %c2_120, %c0_121], %412 {strides = array<i32>} : memref<1x8x64xf32, #tpu.memory_space<vmem>>, vector<1x2x32xf32>,
    %c0_122 = arith.constant 0 : index
    %c4_123 = arith.constant 4 : index
    %c0_124 = arith.constant 0 : index
    %413 = vector.load %arg10[%c0_122, %c4_123, %c0_124] : memref<1x8x64xf32, #tpu.memory_space<vmem>>, vector<1x2x32xf32>
    %414 = vector.shape_cast %413 : vector<1x2x32xf32> to vector<2x32xf32>
    %415 = vector.shape_cast %376 : vector<2x32xf32> to vector<1x2x32xf32>
    tpu.vector_store %arg10[%c0_122, %c4_123, %c0_124], %415 {strides = array<i32>} : memref<1x8x64xf32, #tpu.memory_space<vmem>>, vector<1x2x32xf32>,
    %c0_125 = arith.constant 0 : index
    %c6_126 = arith.constant 6 : index
    %c0_127 = arith.constant 0 : index
    %416 = vector.load %arg10[%c0_125, %c6_126, %c0_127] : memref<1x8x64xf32, #tpu.memory_space<vmem>>, vector<1x2x32xf32>
    %417 = vector.shape_cast %416 : vector<1x2x32xf32> to vector<2x32xf32>
    %418 = vector.shape_cast %406 : vector<2x32xf32> to vector<1x2x32xf32>
    tpu.vector_store %arg10[%c0_125, %c6_126, %c0_127], %418 {strides = array<i32>} : memref<1x8x64xf32, #tpu.memory_space<vmem>>, vector<1x2x32xf32>,
    %c0_128 = arith.constant 0 : index
    %c1_129 = arith.constant 1 : index
    %c0_130 = arith.constant 0 : index
    %c0_131 = arith.constant 0 : index
    %419 = vector.load %arg6[%c0_128, %c1_129, %c0_130, %c0_131] : memref<1x2x64x96xf32, #tpu.memory_space<vmem>>, vector<1x1x64x96xf32>
    %420 = vector.shape_cast %419 : vector<1x1x64x96xf32> to vector<64x96xf32>
    %c0_132 = arith.constant 0 : index
    %c1_133 = arith.constant 1 : index
    %c0_134 = arith.constant 0 : index
    %c0_135 = arith.constant 0 : index
    %421 = vector.load %arg7[%c0_132, %c1_133, %c0_134, %c0_135] : memref<1x2x32x96xf32, #tpu.memory_space<vmem>>, vector<1x1x32x96xf32>
    %422 = vector.shape_cast %421 : vector<1x1x32x96xf32> to vector<32x96xf32>
    %c0_136 = arith.constant 0 : index
    %c1_137 = arith.constant 1 : index
    %c0_138 = arith.constant 0 : index
    %c0_139 = arith.constant 0 : index
    %423 = vector.load %arg8[%c0_136, %c1_137, %c0_138, %c0_139] : memref<1x2x1x96xf32, #tpu.memory_space<vmem>>, vector<1x1x1x96xf32>
    %424 = vector.shape_cast %423 : vector<1x1x1x96xf32> to vector<1x96xf32>
    %c0_140 = arith.constant 0 : index
    %c1_141 = arith.constant 1 : index
    %c0_142 = arith.constant 0 : index
    %c0_143 = arith.constant 0 : index
    %425 = vector.load %arg9[%c0_140, %c1_141, %c0_142, %c0_143] : memref<1x2x1x96xf32, #tpu.memory_space<vmem>>, vector<1x1x1x96xf32>
    %426 = vector.shape_cast %425 : vector<1x1x1x96xf32> to vector<1x96xf32>
    %cst_144 = arith.constant dense<0.000000e+00> : vector<8x96xf32>
    %427 = tpu.matmul %274, %420, %cst_144 {dimension_numbers = #tpu.dot_dimension_numbers<[1], [0], [0], [1], [0, 0, 1, 1], [], []>} : vector<8x64xf32>, vector<64x96xf32>, vector<8x96xf32> -> vector<8x96xf32>
    %428 = vector.broadcast %424 : vector<1x96xf32> to vector<8x96xf32>
    %429 = arith.addf %427, %428 : vector<8x96xf32>
    %cst_145 = arith.constant 0.000000e+00 : f32
    %430 = vector.broadcast %cst_145 : f32 to vector<2x32xf32>
    %431 = vector.extract_strided_slice %429 {offsets = [6, 0], sizes = [2, 96], strides = [1, 1]} : vector<8x96xf32> to vector<2x96xf32>
    %cst_146 = arith.constant dense<0.000000e+00> : vector<2x96xf32>
    %432 = tpu.matmul %430, %422, %cst_146 {dimension_numbers = #tpu.dot_dimension_numbers<[1], [0], [0], [1], [0, 0, 1, 1], [], []>} : vector<2x32xf32>, vector<32x96xf32>, vector<2x96xf32> -> vector<2x96xf32>
    %433 = vector.broadcast %426 : vector<1x96xf32> to vector<2x96xf32>
    %434 = arith.addf %432, %433 : vector<2x96xf32>
    %435 = vector.extract_strided_slice %431 {offsets = [0, 0], sizes = [2, 32], strides = [1, 1]} : vector<2x96xf32> to vector<2x32xf32>
    %436 = vector.extract_strided_slice %434 {offsets = [0, 0], sizes = [2, 32], strides = [1, 1]} : vector<2x96xf32> to vector<2x32xf32>
    %437 = arith.addf %435, %436 : vector<2x32xf32>
    %438 = arith.negf %437 : vector<2x32xf32>
    %439 = math.exp %438 : vector<2x32xf32>
    %cst_147 = arith.constant 1.000000e+00 : f32
    %440 = vector.broadcast %cst_147 : f32 to vector<2x32xf32>
    %441 = arith.addf %440, %439 : vector<2x32xf32>
    %442 = arith.divf %440, %441 : vector<2x32xf32>
    %443 = vector.extract_strided_slice %431 {offsets = [0, 32], sizes = [2, 32], strides = [1, 1]} : vector<2x96xf32> to vector<2x32xf32>
    %444 = vector.extract_strided_slice %434 {offsets = [0, 32], sizes = [2, 32], strides = [1, 1]} : vector<2x96xf32> to vector<2x32xf32>
    %445 = arith.addf %443, %444 : vector<2x32xf32>
    %446 = arith.negf %445 : vector<2x32xf32>
    %447 = math.exp %446 : vector<2x32xf32>
    %cst_148 = arith.constant 1.000000e+00 : f32
    %448 = vector.broadcast %cst_148 : f32 to vector<2x32xf32>
    %449 = arith.addf %448, %447 : vector<2x32xf32>
    %450 = arith.divf %448, %449 : vector<2x32xf32>
    %451 = vector.extract_strided_slice %431 {offsets = [0, 64], sizes = [2, 32], strides = [1, 1]} : vector<2x96xf32> to vector<2x32xf32>
    %452 = vector.extract_strided_slice %434 {offsets = [0, 64], sizes = [2, 32], strides = [1, 1]} : vector<2x96xf32> to vector<2x32xf32>
    %453 = arith.mulf %442, %452 : vector<2x32xf32>
    %454 = arith.addf %451, %453 : vector<2x32xf32>
    %455 = math.tanh %454 : vector<2x32xf32>
    %cst_149 = arith.constant 1.000000e+00 : f32
    %456 = vector.broadcast %cst_149 : f32 to vector<2x32xf32>
    %457 = arith.subf %456, %450 : vector<2x32xf32>
    %458 = arith.mulf %457, %455 : vector<2x32xf32>
    %459 = arith.mulf %450, %430 : vector<2x32xf32>
    %460 = arith.addf %458, %459 : vector<2x32xf32>
    %461 = vector.extract_strided_slice %429 {offsets = [4, 0], sizes = [2, 96], strides = [1, 1]} : vector<8x96xf32> to vector<2x96xf32>
    %cst_150 = arith.constant dense<0.000000e+00> : vector<2x96xf32>
    %462 = tpu.matmul %460, %422, %cst_150 {dimension_numbers = #tpu.dot_dimension_numbers<[1], [0], [0], [1], [0, 0, 1, 1], [], []>} : vector<2x32xf32>, vector<32x96xf32>, vector<2x96xf32> -> vector<2x96xf32>
    %463 = vector.broadcast %426 : vector<1x96xf32> to vector<2x96xf32>
    %464 = arith.addf %462, %463 : vector<2x96xf32>
    %465 = vector.extract_strided_slice %461 {offsets = [0, 0], sizes = [2, 32], strides = [1, 1]} : vector<2x96xf32> to vector<2x32xf32>
    %466 = vector.extract_strided_slice %464 {offsets = [0, 0], sizes = [2, 32], strides = [1, 1]} : vector<2x96xf32> to vector<2x32xf32>
    %467 = arith.addf %465, %466 : vector<2x32xf32>
    %468 = arith.negf %467 : vector<2x32xf32>
    %469 = math.exp %468 : vector<2x32xf32>
    %cst_151 = arith.constant 1.000000e+00 : f32
    %470 = vector.broadcast %cst_151 : f32 to vector<2x32xf32>
    %471 = arith.addf %470, %469 : vector<2x32xf32>
    %472 = arith.divf %470, %471 : vector<2x32xf32>
    %473 = vector.extract_strided_slice %461 {offsets = [0, 32], sizes = [2, 32], strides = [1, 1]} : vector<2x96xf32> to vector<2x32xf32>
    %474 = vector.extract_strided_slice %464 {offsets = [0, 32], sizes = [2, 32], strides = [1, 1]} : vector<2x96xf32> to vector<2x32xf32>
    %475 = arith.addf %473, %474 : vector<2x32xf32>
    %476 = arith.negf %475 : vector<2x32xf32>
    %477 = math.exp %476 : vector<2x32xf32>
    %cst_152 = arith.constant 1.000000e+00 : f32
    %478 = vector.broadcast %cst_152 : f32 to vector<2x32xf32>
    %479 = arith.addf %478, %477 : vector<2x32xf32>
    %480 = arith.divf %478, %479 : vector<2x32xf32>
    %481 = vector.extract_strided_slice %461 {offsets = [0, 64], sizes = [2, 32], strides = [1, 1]} : vector<2x96xf32> to vector<2x32xf32>
    %482 = vector.extract_strided_slice %464 {offsets = [0, 64], sizes = [2, 32], strides = [1, 1]} : vector<2x96xf32> to vector<2x32xf32>
    %483 = arith.mulf %472, %482 : vector<2x32xf32>
    %484 = arith.addf %481, %483 : vector<2x32xf32>
    %485 = math.tanh %484 : vector<2x32xf32>
    %cst_153 = arith.constant 1.000000e+00 : f32
    %486 = vector.broadcast %cst_153 : f32 to vector<2x32xf32>
    %487 = arith.subf %486, %480 : vector<2x32xf32>
    %488 = arith.mulf %487, %485 : vector<2x32xf32>
    %489 = arith.mulf %480, %460 : vector<2x32xf32>
    %490 = arith.addf %488, %489 : vector<2x32xf32>
    %491 = vector.extract_strided_slice %429 {offsets = [2, 0], sizes = [2, 96], strides = [1, 1]} : vector<8x96xf32> to vector<2x96xf32>
    %cst_154 = arith.constant dense<0.000000e+00> : vector<2x96xf32>
    %492 = tpu.matmul %490, %422, %cst_154 {dimension_numbers = #tpu.dot_dimension_numbers<[1], [0], [0], [1], [0, 0, 1, 1], [], []>} : vector<2x32xf32>, vector<32x96xf32>, vector<2x96xf32> -> vector<2x96xf32>
    %493 = vector.broadcast %426 : vector<1x96xf32> to vector<2x96xf32>
    %494 = arith.addf %492, %493 : vector<2x96xf32>
    %495 = vector.extract_strided_slice %491 {offsets = [0, 0], sizes = [2, 32], strides = [1, 1]} : vector<2x96xf32> to vector<2x32xf32>
    %496 = vector.extract_strided_slice %494 {offsets = [0, 0], sizes = [2, 32], strides = [1, 1]} : vector<2x96xf32> to vector<2x32xf32>
    %497 = arith.addf %495, %496 : vector<2x32xf32>
    %498 = arith.negf %497 : vector<2x32xf32>
    %499 = math.exp %498 : vector<2x32xf32>
    %cst_155 = arith.constant 1.000000e+00 : f32
    %500 = vector.broadcast %cst_155 : f32 to vector<2x32xf32>
    %501 = arith.addf %500, %499 : vector<2x32xf32>
    %502 = arith.divf %500, %501 : vector<2x32xf32>
    %503 = vector.extract_strided_slice %491 {offsets = [0, 32], sizes = [2, 32], strides = [1, 1]} : vector<2x96xf32> to vector<2x32xf32>
    %504 = vector.extract_strided_slice %494 {offsets = [0, 32], sizes = [2, 32], strides = [1, 1]} : vector<2x96xf32> to vector<2x32xf32>
    %505 = arith.addf %503, %504 : vector<2x32xf32>
    %506 = arith.negf %505 : vector<2x32xf32>
    %507 = math.exp %506 : vector<2x32xf32>
    %cst_156 = arith.constant 1.000000e+00 : f32
    %508 = vector.broadcast %cst_156 : f32 to vector<2x32xf32>
    %509 = arith.addf %508, %507 : vector<2x32xf32>
    %510 = arith.divf %508, %509 : vector<2x32xf32>
    %511 = vector.extract_strided_slice %491 {offsets = [0, 64], sizes = [2, 32], strides = [1, 1]} : vector<2x96xf32> to vector<2x32xf32>
    %512 = vector.extract_strided_slice %494 {offsets = [0, 64], sizes = [2, 32], strides = [1, 1]} : vector<2x96xf32> to vector<2x32xf32>
    %513 = arith.mulf %502, %512 : vector<2x32xf32>
    %514 = arith.addf %511, %513 : vector<2x32xf32>
    %515 = math.tanh %514 : vector<2x32xf32>
    %cst_157 = arith.constant 1.000000e+00 : f32
    %516 = vector.broadcast %cst_157 : f32 to vector<2x32xf32>
    %517 = arith.subf %516, %510 : vector<2x32xf32>
    %518 = arith.mulf %517, %515 : vector<2x32xf32>
    %519 = arith.mulf %510, %490 : vector<2x32xf32>
    %520 = arith.addf %518, %519 : vector<2x32xf32>
    %521 = vector.extract_strided_slice %429 {offsets = [0, 0], sizes = [2, 96], strides = [1, 1]} : vector<8x96xf32> to vector<2x96xf32>
    %cst_158 = arith.constant dense<0.000000e+00> : vector<2x96xf32>
    %522 = tpu.matmul %520, %422, %cst_158 {dimension_numbers = #tpu.dot_dimension_numbers<[1], [0], [0], [1], [0, 0, 1, 1], [], []>} : vector<2x32xf32>, vector<32x96xf32>, vector<2x96xf32> -> vector<2x96xf32>
    %523 = vector.broadcast %426 : vector<1x96xf32> to vector<2x96xf32>
    %524 = arith.addf %522, %523 : vector<2x96xf32>
    %525 = vector.extract_strided_slice %521 {offsets = [0, 0], sizes = [2, 32], strides = [1, 1]} : vector<2x96xf32> to vector<2x32xf32>
    %526 = vector.extract_strided_slice %524 {offsets = [0, 0], sizes = [2, 32], strides = [1, 1]} : vector<2x96xf32> to vector<2x32xf32>
    %527 = arith.addf %525, %526 : vector<2x32xf32>
    %528 = arith.negf %527 : vector<2x32xf32>
    %529 = math.exp %528 : vector<2x32xf32>
    %cst_159 = arith.constant 1.000000e+00 : f32
    %530 = vector.broadcast %cst_159 : f32 to vector<2x32xf32>
    %531 = arith.addf %530, %529 : vector<2x32xf32>
    %532 = arith.divf %530, %531 : vector<2x32xf32>
    %533 = vector.extract_strided_slice %521 {offsets = [0, 32], sizes = [2, 32], strides = [1, 1]} : vector<2x96xf32> to vector<2x32xf32>
    %534 = vector.extract_strided_slice %524 {offsets = [0, 32], sizes = [2, 32], strides = [1, 1]} : vector<2x96xf32> to vector<2x32xf32>
    %535 = arith.addf %533, %534 : vector<2x32xf32>
    %536 = arith.negf %535 : vector<2x32xf32>
    %537 = math.exp %536 : vector<2x32xf32>
    %cst_160 = arith.constant 1.000000e+00 : f32
    %538 = vector.broadcast %cst_160 : f32 to vector<2x32xf32>
    %539 = arith.addf %538, %537 : vector<2x32xf32>
    %540 = arith.divf %538, %539 : vector<2x32xf32>
    %541 = vector.extract_strided_slice %521 {offsets = [0, 64], sizes = [2, 32], strides = [1, 1]} : vector<2x96xf32> to vector<2x32xf32>
    %542 = vector.extract_strided_slice %524 {offsets = [0, 64], sizes = [2, 32], strides = [1, 1]} : vector<2x96xf32> to vector<2x32xf32>
    %543 = arith.mulf %532, %542 : vector<2x32xf32>
    %544 = arith.addf %541, %543 : vector<2x32xf32>
    %545 = math.tanh %544 : vector<2x32xf32>
    %cst_161 = arith.constant 1.000000e+00 : f32
    %546 = vector.broadcast %cst_161 : f32 to vector<2x32xf32>
    %547 = arith.subf %546, %540 : vector<2x32xf32>
    %548 = arith.mulf %547, %545 : vector<2x32xf32>
    %549 = arith.mulf %540, %520 : vector<2x32xf32>
    %550 = arith.addf %548, %549 : vector<2x32xf32>
    %c0_162 = arith.constant 0 : index
    %c0_163 = arith.constant 0 : index
    %c32_164 = arith.constant 32 : index
    %551 = vector.load %arg10[%c0_162, %c0_163, %c32_164] : memref<1x8x64xf32, #tpu.memory_space<vmem>>, vector<1x2x32xf32>
    %552 = vector.shape_cast %551 : vector<1x2x32xf32> to vector<2x32xf32>
    %553 = vector.shape_cast %550 : vector<2x32xf32> to vector<1x2x32xf32>
    tpu.vector_store %arg10[%c0_162, %c0_163, %c32_164], %553 {strides = array<i32>} : memref<1x8x64xf32, #tpu.memory_space<vmem>>, vector<1x2x32xf32>,
    %c0_165 = arith.constant 0 : index
    %c2_166 = arith.constant 2 : index
    %c32_167 = arith.constant 32 : index
    %554 = vector.load %arg10[%c0_165, %c2_166, %c32_167] : memref<1x8x64xf32, #tpu.memory_space<vmem>>, vector<1x2x32xf32>
    %555 = vector.shape_cast %554 : vector<1x2x32xf32> to vector<2x32xf32>
    %556 = vector.shape_cast %520 : vector<2x32xf32> to vector<1x2x32xf32>
    tpu.vector_store %arg10[%c0_165, %c2_166, %c32_167], %556 {strides = array<i32>} : memref<1x8x64xf32, #tpu.memory_space<vmem>>, vector<1x2x32xf32>,
    %c0_168 = arith.constant 0 : index
    %c4_169 = arith.constant 4 : index
    %c32_170 = arith.constant 32 : index
    %557 = vector.load %arg10[%c0_168, %c4_169, %c32_170] : memref<1x8x64xf32, #tpu.memory_space<vmem>>, vector<1x2x32xf32>
    %558 = vector.shape_cast %557 : vector<1x2x32xf32> to vector<2x32xf32>
    %559 = vector.shape_cast %490 : vector<2x32xf32> to vector<1x2x32xf32>
    tpu.vector_store %arg10[%c0_168, %c4_169, %c32_170], %559 {strides = array<i32>} : memref<1x8x64xf32, #tpu.memory_space<vmem>>, vector<1x2x32xf32>,
    %c0_171 = arith.constant 0 : index
    %c6_172 = arith.constant 6 : index
    %c32_173 = arith.constant 32 : index
    %560 = vector.load %arg10[%c0_171, %c6_172, %c32_173] : memref<1x8x64xf32, #tpu.memory_space<vmem>>, vector<1x2x32xf32>
    %561 = vector.shape_cast %560 : vector<1x2x32xf32> to vector<2x32xf32>
    %562 = vector.shape_cast %460 : vector<2x32xf32> to vector<1x2x32xf32>
    tpu.vector_store %arg10[%c0_171, %c6_172, %c32_173], %562 {strides = array<i32>} : memref<1x8x64xf32, #tpu.memory_space<vmem>>, vector<1x2x32xf32>,
    return
  }
  func.func @transform_0(%arg0: i32) -> (i32, i32, i32) {
    %c0_i32 = arith.constant 0 : i32
    %c0_i32_0 = arith.constant 0 : i32
    %c0_i32_1 = arith.constant 0 : i32
    return %arg0, %c0_i32, %c0_i32_0 : i32, i32, i32
  }
  func.func @transform_1(%arg0: i32) -> (i32, i32, i32, i32) {
    %c0_i32 = arith.constant 0 : i32
    %c0_i32_0 = arith.constant 0 : i32
    %c0_i32_1 = arith.constant 0 : i32
    %c0_i32_2 = arith.constant 0 : i32
    return %arg0, %c0_i32, %c0_i32_0, %c0_i32_1 : i32, i32, i32, i32
  }
  func.func @transform_2(%arg0: i32) -> (i32, i32, i32, i32) {
    %c0_i32 = arith.constant 0 : i32
    %c0_i32_0 = arith.constant 0 : i32
    %c0_i32_1 = arith.constant 0 : i32
    %c0_i32_2 = arith.constant 0 : i32
    return %arg0, %c0_i32, %c0_i32_0, %c0_i32_1 : i32, i32, i32, i32
  }
  func.func @transform_3(%arg0: i32) -> (i32, i32, i32, i32) {
    %c0_i32 = arith.constant 0 : i32
    %c0_i32_0 = arith.constant 0 : i32
    %c0_i32_1 = arith.constant 0 : i32
    %c0_i32_2 = arith.constant 0 : i32
    return %arg0, %c0_i32, %c0_i32_0, %c0_i32_1 : i32, i32, i32, i32
  }
  func.func @transform_4(%arg0: i32) -> (i32, i32, i32, i32) {
    %c0_i32 = arith.constant 0 : i32
    %c0_i32_0 = arith.constant 0 : i32
    %c0_i32_1 = arith.constant 0 : i32
    %c0_i32_2 = arith.constant 0 : i32
    return %arg0, %c0_i32, %c0_i32_0, %c0_i32_1 : i32, i32, i32, i32
  }
  func.func @transform_5(%arg0: i32) -> (i32, i32, i32, i32) {
    %c0_i32 = arith.constant 0 : i32
    %c0_i32_0 = arith.constant 0 : i32
    %c0_i32_1 = arith.constant 0 : i32
    %c0_i32_2 = arith.constant 0 : i32
    return %arg0, %c0_i32, %c0_i32_0, %c0_i32_1 : i32, i32, i32, i32
  }
  func.func @transform_6(%arg0: i32) -> (i32, i32, i32, i32) {
    %c0_i32 = arith.constant 0 : i32
    %c0_i32_0 = arith.constant 0 : i32
    %c0_i32_1 = arith.constant 0 : i32
    %c0_i32_2 = arith.constant 0 : i32
    return %arg0, %c0_i32, %c0_i32_0, %c0_i32_1 : i32, i32, i32, i32
  }
  func.func @transform_7(%arg0: i32) -> (i32, i32, i32, i32) {
    %c0_i32 = arith.constant 0 : i32
    %c0_i32_0 = arith.constant 0 : i32
    %c0_i32_1 = arith.constant 0 : i32
    %c0_i32_2 = arith.constant 0 : i32
    return %arg0, %c0_i32, %c0_i32_0, %c0_i32_1 : i32, i32, i32, i32
  }
  func.func @transform_8(%arg0: i32) -> (i32, i32, i32, i32) {
    %c0_i32 = arith.constant 0 : i32
    %c0_i32_0 = arith.constant 0 : i32
    %c0_i32_1 = arith.constant 0 : i32
    %c0_i32_2 = arith.constant 0 : i32
    return %arg0, %c0_i32, %c0_i32_0, %c0_i32_1 : i32, i32, i32, i32
  }
  func.func @transform_9(%arg0: i32) -> (i32, i32, i32) {
    %c0_i32 = arith.constant 0 : i32
    %c0_i32_0 = arith.constant 0 : i32
    %c0_i32_1 = arith.constant 0 : i32
    return %arg0, %c0_i32, %c0_i32_0 : i32, i32, i32
  }
}

</mosaic_0001>

<llo_original>
// kernel: multiview_forward.4
$region0: #{multiview_forward.4}
  #allocation0 [shape = 'u32[]', space=smem, size = 0x4, offset = 0x4, fixed_abs, tag = 'smem constant byte address 0x4 - core index']
  #allocation1 [shape = 'u32[72,128]{1,0:T(1,128)}', space=vmem, size = 0x9000, scoped, tag = 'internal scratch']
  %s0 = inlined_call_operand.vmem [shape: f32[2,256,12], index: 0, kind: input, shape index: {}]
  %s1 = inlined_call_operand.vmem [shape: f32[2,12,64], index: 1, kind: input, shape index: {}]
  %s2 = inlined_call_operand.vmem [shape: f32[2,1,64], index: 2, kind: input, shape index: {}]
  %s3 = inlined_call_operand.vmem [shape: f32[2,8,16,32], index: 3, kind: output, shape index: {}]
  %s4 = sld [smem:[#allocation0]]
  $region45: #{multiview_forward.4} parent=0
    _
  %s6 = ssub.s32 1, %s4
  %s7 = scalar_select 0, %s6, %s4
  loop: start=0, step=1, limit=4
  $region2: #{multiview_forward.4} parent=0 // loop_pre_header
    _
  $region3: #{multiview_forward.4} parent=0 // loop_header
    %s9 = sphi 0, %s13
    %p10 = scmp.ge.s32.totalorder %s9, 4
    %s19 = sphi 0, %s21
    %s22 = sphi 0, %s19
    %s23 = sphi 0, %s22
    %s39 = sphi 0, %s23
    %s45 = sphi 0, %s47
    %s48 = sphi 0, %s45
    %s49 = sphi 0, %s48
    %s65 = sphi 0, %s49
    %s71 = sphi 0, %s73
    %s74 = sphi 0, %s71
    %s75 = sphi 0, %s74
    %s91 = sphi 0, %s75
    %s97 = sphi 0, %s99
    %s100 = sphi 0, %s97
    %s101 = sphi 0, %s100
    %s117 = sphi 0, %s101
  $region4: #{multiview_forward.4} parent=0 // loop_header_branch
    %12 = sbr.rel (%p10) target = $region8
  $region5: #{multiview_forward.4} parent=0 // loop_body
    %s14 = ssub.s32 %s9, 1
    %s15 = ssub.s32 %s9, 2
    %s16 = sadd.s32 %s9, 1
    %s17 = ssub.s32 %s9, %s16
    %p18 = scmp.eq.s32.totalorder %s17, 0
    %s20 = sadd.s32 %s19, 1
    %s21 = scalar_select %p18, %s19, %s20
    %p24 = pneg %p18
    %p25 = scmp.eq.s32.totalorder %s9, 1
    %p26 = por %p24, %p25
    %p27 = scmp.ne.s32.totalorder %s19, %s22
    %p28 = scmp.eq.s32.totalorder %s9, 0
    %p29 = por %p27, %p28
    %p30 = scmp.ne.s32.totalorder %s19, %s22
    %p31 = scmp.eq.s32.totalorder %s14, 1
    %p32 = por %p30, %p31
    %p33 = scmp.ne.s32.totalorder %s22, %s23
    %p34 = scmp.eq.s32.totalorder %s14, 0
    %p35 = por %p33, %p34
    %p36 = scmp.ne.s32.totalorder %s22, %s23
    %p37 = scmp.eq.s32.totalorder %s15, 1
    %p38 = por %p36, %p37
    %p40 = scmp.ne.s32.totalorder %s23, %s39
    %p41 = scmp.eq.s32.totalorder %s15, 0
    %p42 = por %p40, %p41
    %s43 = ssub.s32 %s9, %s16
    %p44 = scmp.eq.s32.totalorder %s43, 0
    %s46 = sadd.s32 %s45, 1
    %s47 = scalar_select %p44, %s45, %s46
    %p50 = pneg %p44
    %p51 = scmp.eq.s32.totalorder %s9, 1
    %p52 = por %p50, %p51
    %p53 = scmp.ne.s32.totalorder %s45, %s48
    %p54 = scmp.eq.s32.totalorder %s9, 0
    %p55 = por %p53, %p54
    %p56 = scmp.ne.s32.totalorder %s45, %s48
    %p57 = scmp.eq.s32.totalorder %s14, 1
    %p58 = por %p56, %p57
    %p59 = scmp.ne.s32.totalorder %s48, %s49
    %p60 = scmp.eq.s32.totalorder %s14, 0
    %p61 = por %p59, %p60
    %p62 = scmp.ne.s32.totalorder %s48, %s49
    %p63 = scmp.eq.s32.totalorder %s15, 1
    %p64 = por %p62, %p63
    %p66 = scmp.ne.s32.totalorder %s49, %s65
    %p67 = scmp.eq.s32.totalorder %s15, 0
    %p68 = por %p66, %p67
    %s69 = ssub.s32 %s9, %s16
    %p70 = scmp.eq.s32.totalorder %s69, 0
    %s72 = sadd.s32 %s71, 1
    %s73 = scalar_select %p70, %s71, %s72
    %p76 = pneg %p70
    %p77 = scmp.eq.s32.totalorder %s9, 1
    %p78 = por %p76, %p77
    %p79 = scmp.ne.s32.totalorder %s71, %s74
    %p80 = scmp.eq.s32.totalorder %s9, 0
    %p81 = por %p79, %p80
    %p82 = scmp.ne.s32.totalorder %s71, %s74
    %p83 = scmp.eq.s32.totalorder %s14, 1
    %p84 = por %p82, %p83
    %p85 = scmp.ne.s32.totalorder %s74, %s75
    %p86 = scmp.eq.s32.totalorder %s14, 0
    %p87 = por %p85, %p86
    %p88 = scmp.ne.s32.totalorder %s74, %s75
    %p89 = scmp.eq.s32.totalorder %s15, 1
    %p90 = por %p88, %p89
    %p92 = scmp.ne.s32.totalorder %s75, %s91
    %p93 = scmp.eq.s32.totalorder %s15, 0
    %p94 = por %p92, %p93
    %s95 = ssub.s32 %s9, %s16
    %p96 = scmp.eq.s32.totalorder %s95, 0
    %s98 = sadd.s32 %s97, 1
    %s99 = scalar_select %p96, %s97, %s98
    %p102 = pneg %p96
    %p103 = scmp.eq.s32.totalorder %s9, 1
    %p104 = por %p102, %p103
    %p105 = scmp.ne.s32.totalorder %s97, %s100
    %p106 = scmp.eq.s32.totalorder %s9, 0
    %p107 = por %p105, %p106
    %p108 = scmp.ne.s32.totalorder %s97, %s100
    %p109 = scmp.eq.s32.totalorder %s14, 1
    %p110 = por %p108, %p109
    %p111 = scmp.ne.s32.totalorder %s100, %s101
    %p112 = scmp.eq.s32.totalorder %s14, 0
    %p113 = por %p111, %p112
    %p114 = scmp.ne.s32.totalorder %s100, %s101
    %p115 = scmp.eq.s32.totalorder %s15, 1
    %p116 = por %p114, %p115
    %p118 = scmp.ne.s32.totalorder %s101, %s117
    %p119 = scmp.eq.s32.totalorder %s15, 0
    %p120 = por %p118, %p119
    %p121 = scmp.le.s32.totalorder 1, %s9
    %p122 = scmp.lt.s32.totalorder %s9, 3
    %p123 = pnand %p121, %p122
    %p124 = pneg %p123
    // Predicated region
    $region9: #{multiview_forward.4} parent=5 // pred_check
      _
    $region10: #{multiview_forward.4} parent=5 // pred_check_branch
      %126 = sbr.rel (%p123) target = $region12
    $region11: #{multiview_forward.4} parent=5 // pred_region
      %s127 = ssub.s32 %s9, 1
    $region12: #{multiview_forward.4} parent=5 // pred_fallthru
      _
    %p128 = scmp.lt.s32.totalorder %s9, 2
    // Predicated region
    $region13: #{multiview_forward.4} parent=5 // pred_check
      %p129 = pneg %p128
    $region14: #{multiview_forward.4} parent=5 // pred_check_branch
      %131 = sbr.rel (%p129) target = $region16
    $region15: #{multiview_forward.4} parent=5 // pred_region
      // Predicated region
      $region17: #{multiview_forward.4} parent=15 // pred_check
        %p132 = pneg %p29
      $region18: #{multiview_forward.4} parent=15 // pred_check_branch
        %134 = sbr.rel (%p132) target = $region20
      $region19: #{multiview_forward.4} parent=15 // pred_region
        %p135 = scmp.lt.s32.totalorder %s9, 1
        %s136 = scalar_select %p135, %s9, 1
        %s137 = smul.addr %s136, 32
        %s138 = smul.addr %s137, 8
        %s139 = scalar_lea.vmem %s0, %s138
      $region20: #{multiview_forward.4} parent=15 // pred_fallthru
        _
      // Predicated region
      $region21: #{multiview_forward.4} parent=15 // pred_check
        %p140 = pneg %p55
      $region22: #{multiview_forward.4} parent=15 // pred_check_branch
        %142 = sbr.rel (%p140) target = $region24
      $region23: #{multiview_forward.4} parent=15 // pred_region
        %p143 = scmp.lt.s32.totalorder %s9, 1
        %s144 = scalar_select %p143, %s9, 1
        %s145 = smul.addr %s144, 2
        %s146 = smul.addr %s145, 8
        %s147 = scalar_lea.vmem %s1, %s146
      $region24: #{multiview_forward.4} parent=15 // pred_fallthru
        _
      // Predicated region
      $region25: #{multiview_forward.4} parent=15 // pred_check
        %p148 = pneg %p81
      $region26: #{multiview_forward.4} parent=15 // pred_check_branch
        %150 = sbr.rel (%p148) target = $region28
      $region27: #{multiview_forward.4} parent=15 // pred_region
        %p151 = scmp.lt.s32.totalorder %s9, 1
        %s152 = scalar_select %p151, %s9, 1
        %s153 = scalar_lea.vmem %s2, %s152
      $region28: #{multiview_forward.4} parent=15 // pred_fallthru
        _
    $region16: #{multiview_forward.4} parent=5 // pred_fallthru
      _
    %p154 = scmp.le.s32.totalorder 1, %s9
    %p155 = scmp.lt.s32.totalorder %s9, 3
    %p156 = pnand %p154, %p155
    %p157 = pneg %p156
    // Predicated region
    $region29: #{multiview_forward.4} parent=5 // pred_check
      _
    $region30: #{multiview_forward.4} parent=5 // pred_check_branch
      %159 = sbr.rel (%p156) target = $region32
    $region31: #{multiview_forward.4} parent=5 // pred_region
      %s160 = ssub.s32 %s9, 1
      %p161 = scmp.lt.s32.totalorder %s14, 1
      %s162 = scalar_select %p161, %s14, 1
      %s163 = smul.addr %s162, 32
      %s164 = smul.addr %s163, 8
      %s165 = scalar_lea.vmem %s0, %s164
      %p166 = pneg %p35
      %p167 = pneg %p32
      %p168 = scmp.lt.s32.totalorder %s14, 1
      %s169 = scalar_select %p168, %s14, 1
      %s170 = smul.addr %s169, 2
      %s171 = smul.addr %s170, 8
      %s172 = scalar_lea.vmem %s1, %s171
      %p173 = pneg %p61
      %p174 = pneg %p58
      %p175 = scmp.lt.s32.totalorder %s14, 1
      %s176 = scalar_select %p175, %s14, 1
      %s177 = scalar_lea.vmem %s2, %s176
      %p178 = pneg %p87
      %p179 = pneg %p84
      %p180 = pneg %p113
      %p181 = pneg %p110
      %p182 = scmp.lt.s32.totalorder %s14, 1
      %s183 = scalar_select %p182, %s14, 1
      %s184 = smul.addr %s183, 16
      %s185 = smul.addr %s184, 8
      %s186 = scalar_lea.vmem %s3, %s185
      %p187 = scmp.lt.s32.totalorder %s14, 1
      %s188 = scalar_select %p187, %s14, 1
      %s189 = smul.addr %s188, 32
      %s190 = smul.addr %s189, 8
      %s191 = scalar_lea.vmem %s0, %s190
      %p192 = scmp.lt.s32.totalorder %s14, 1
      %s193 = scalar_select %p192, %s14, 1
      %s194 = smul.addr %s193, 2
      %s195 = smul.addr %s194, 8
      %s196 = scalar_lea.vmem %s1, %s195
      %p197 = scmp.lt.s32.totalorder %s14, 1
      %s198 = scalar_select %p197, %s14, 1
      %s199 = scalar_lea.vmem %s2, %s198
      %p200 = scmp.lt.s32.totalorder %s14, 1
      %s201 = scalar_select %p200, %s14, 1
      %s202 = smul.addr %s201, 16
      %s203 = smul.addr %s202, 8
      %s204 = scalar_lea.vmem %s3, %s203
      %v205 = vld [vmem:[%s191] sm:$0xff]
      %v206 = vld [vmem:[%s191 + $0x8] sm:$0xff]
      %v207 = vld [vmem:[%s191 + $0x10] sm:$0xff]
      %v208 = vld [vmem:[%s191 + $0x18] sm:$0xff]
      %v209 = vld [vmem:[%s191 + $0x20] sm:$0xff]
      %v210 = vld [vmem:[%s191 + $0x28] sm:$0xff]
      %v211 = vld [vmem:[%s191 + $0x30] sm:$0xff]
      %v212 = vld [vmem:[%s191 + $0x38] sm:$0xff]
      %v213 = vld [vmem:[%s191 + $0x40] sm:$0xff]
      %v214 = vld [vmem:[%s191 + $0x48] sm:$0xff]
      %v215 = vld [vmem:[%s191 + $0x50] sm:$0xff]
      %v216 = vld [vmem:[%s191 + $0x58] sm:$0xff]
      %v217 = vld [vmem:[%s191 + $0x60] sm:$0xff]
      %v218 = vld [vmem:[%s191 + $0x68] sm:$0xff]
      %v219 = vld [vmem:[%s191 + $0x70] sm:$0xff]
      %v220 = vld [vmem:[%s191 + $0x78] sm:$0xff]
      %v221 = vld [vmem:[%s191 + $0x80] sm:$0xff]
      %v222 = vld [vmem:[%s191 + $0x88] sm:$0xff]
      %v223 = vld [vmem:[%s191 + $0x90] sm:$0xff]
      %v224 = vld [vmem:[%s191 + $0x98] sm:$0xff]
      %v225 = vld [vmem:[%s191 + $0xa0] sm:$0xff]
      %v226 = vld [vmem:[%s191 + $0xa8] sm:$0xff]
      %v227 = vld [vmem:[%s191 + $0xb0] sm:$0xff]
      %v228 = vld [vmem:[%s191 + $0xb8] sm:$0xff]
      %v229 = vld [vmem:[%s191 + $0xc0] sm:$0xff]
      %v230 = vld [vmem:[%s191 + $0xc8] sm:$0xff]
      %v231 = vld [vmem:[%s191 + $0xd0] sm:$0xff]
      %v232 = vld [vmem:[%s191 + $0xd8] sm:$0xff]
      %v233 = vld [vmem:[%s191 + $0xe0] sm:$0xff]
      %v234 = vld [vmem:[%s191 + $0xe8] sm:$0xff]
      %v235 = vld [vmem:[%s191 + $0xf0] sm:$0xff]
      %v236 = vld [vmem:[%s191 + $0xf8] sm:$0xff]
      %v237 = vld [vmem:[%s196] sm:$0xff]
      %v238 = vld [vmem:[%s196 + $0x8] sm:$0xf]
      %v239 = vld [vmem:[%s199] sm:$0x1]
      %v241 = vperm.slane %v239, 0
      %vm243 = vcmask 97280
      %v245 = vsel %vm243, %v205, 0
      %v248 = vsel %vm243, %v206, 0
      %v251 = vsel %vm243, %v207, 0
      %v254 = vsel %vm243, %v208, 0
      %v257 = vsel %vm243, %v209, 0
      %v260 = vsel %vm243, %v210, 0
      %v263 = vsel %vm243, %v211, 0
      %v266 = vsel %vm243, %v212, 0
      %v269 = vsel %vm243, %v213, 0
      %v272 = vsel %vm243, %v214, 0
      %v275 = vsel %vm243, %v215, 0
      %v278 = vsel %vm243, %v216, 0
      %v281 = vsel %vm243, %v217, 0
      %v284 = vsel %vm243, %v218, 0
      %v287 = vsel %vm243, %v219, 0
      %v290 = vsel %vm243, %v220, 0
      %v293 = vsel %vm243, %v221, 0
      %v296 = vsel %vm243, %v222, 0
      %v299 = vsel %vm243, %v223, 0
      %v302 = vsel %vm243, %v224, 0
      %v305 = vsel %vm243, %v225, 0
      %v308 = vsel %vm243, %v226, 0
      %v311 = vsel %vm243, %v227, 0
      %v314 = vsel %vm243, %v228, 0
      %v317 = vsel %vm243, %v229, 0
      %v320 = vsel %vm243, %v230, 0
      %v323 = vsel %vm243, %v231, 0
      %v326 = vsel %vm243, %v232, 0
      %v329 = vsel %vm243, %v233, 0
      %v332 = vsel %vm243, %v234, 0
      %v335 = vsel %vm243, %v235, 0
      %v338 = vsel %vm243, %v236, 0
      %vm340 = vcmask 1043456
      %v342 = vsel %vm340, %v238, 0
      %344 = vmatpush.msra.mxu0 0.0
      %345 = vmatpush.msra.mxu0 0.0
      %346 = vmatpush.msra.mxu0 0.0
      %347 = vmatpush.msra.mxu0 0.0
      %348 = vmatpush.msra.mxu0 0.0
      %349 = vmatpush.msra.mxu0 0.0
      %350 = vmatpush.msra.mxu0 0.0
      %351 = vmatpush.msra.mxu0 0.0
      %352 = vmatpush.msra.mxu0 0.0
      %353 = vmatpush.msra.mxu0 0.0
      %354 = vmatpush.msra.mxu0 0.0
      %355 = vmatpush.msra.mxu0 0.0
      %356 = vmatpush.msra.mxu0 0.0
      %357 = vmatpush.msra.mxu0 0.0
      %358 = vmatpush.msra.mxu0 %v342
      %359 = vmatpush.msra.mxu0 %v237
      %360 = vmatmul.f32.gmra.mxu0 %v245
      %v361 = vpop.f32.mrf.mxu0
      %v362 = vadd.f32 %v241, %v361
      %363 = vmatmul.f32.gmra.mxu0 %v248
      %v364 = vpop.f32.mrf.mxu0
      %v365 = vadd.f32 %v241, %v364
      %366 = vmatmul.f32.gmra.mxu0 %v251
      %v367 = vpop.f32.mrf.mxu0
      %v368 = vadd.f32 %v241, %v367
      %369 = vmatmul.f32.gmra.mxu0 %v254
      %v370 = vpop.f32.mrf.mxu0
      %v371 = vadd.f32 %v241, %v370
      %372 = vmatmul.f32.gmra.mxu0 %v257
      %v373 = vpop.f32.mrf.mxu0
      %v374 = vadd.f32 %v241, %v373
      %375 = vmatmul.f32.gmra.mxu0 %v260
      %v376 = vpop.f32.mrf.mxu0
      %v377 = vadd.f32 %v241, %v376
      %378 = vmatmul.f32.gmra.mxu0 %v263
      %v379 = vpop.f32.mrf.mxu0
      %v380 = vadd.f32 %v241, %v379
      %381 = vmatmul.f32.gmra.mxu0 %v266
      %v382 = vpop.f32.mrf.mxu0
      %v383 = vadd.f32 %v241, %v382
      %384 = vmatmul.f32.gmra.mxu0 %v269
      %v385 = vpop.f32.mrf.mxu0
      %v386 = vadd.f32 %v241, %v385
      %387 = vmatmul.f32.gmra.mxu0 %v272
      %v388 = vpop.f32.mrf.mxu0
      %v389 = vadd.f32 %v241, %v388
      %390 = vmatmul.f32.gmra.mxu0 %v275
      %v391 = vpop.f32.mrf.mxu0
      %v392 = vadd.f32 %v241, %v391
      %393 = vmatmul.f32.gmra.mxu0 %v278
      %v394 = vpop.f32.mrf.mxu0
      %v395 = vadd.f32 %v241, %v394
      %396 = vmatmul.f32.gmra.mxu0 %v281
      %v397 = vpop.f32.mrf.mxu0
      %v398 = vadd.f32 %v241, %v397
      %399 = vmatmul.f32.gmra.mxu0 %v284
      %v400 = vpop.f32.mrf.mxu0
      %v401 = vadd.f32 %v241, %v400
      %402 = vmatmul.f32.gmra.mxu0 %v287
      %v403 = vpop.f32.mrf.mxu0
      %v404 = vadd.f32 %v241, %v403
      %405 = vmatmul.f32.gmra.mxu0 %v290
      %v406 = vpop.f32.mrf.mxu0
      %v407 = vadd.f32 %v241, %v406
      %408 = vmatmul.f32.gmra.mxu0 %v293
      %v409 = vpop.f32.mrf.mxu0
      %v410 = vadd.f32 %v241, %v409
      %411 = vmatmul.f32.gmra.mxu0 %v296
      %v412 = vpop.f32.mrf.mxu0
      %v413 = vadd.f32 %v241, %v412
      %414 = vmatmul.f32.gmra.mxu0 %v299
      %v415 = vpop.f32.mrf.mxu0
      %v416 = vadd.f32 %v241, %v415
      %417 = vmatmul.f32.gmra.mxu0 %v302
      %v418 = vpop.f32.mrf.mxu0
      %v419 = vadd.f32 %v241, %v418
      %420 = vmatmul.f32.gmra.mxu0 %v305
      %v421 = vpop.f32.mrf.mxu0
      %v422 = vadd.f32 %v241, %v421
      %423 = vmatmul.f32.gmra.mxu0 %v308
      %v424 = vpop.f32.mrf.mxu0
      %v425 = vadd.f32 %v241, %v424
      %426 = vmatmul.f32.gmra.mxu0 %v311
      %v427 = vpop.f32.mrf.mxu0
      %v428 = vadd.f32 %v241, %v427
      %429 = vmatmul.f32.gmra.mxu0 %v314
      %v430 = vpop.f32.mrf.mxu0
      %v431 = vadd.f32 %v241, %v430
      %432 = vmatmul.f32.gmra.mxu0 %v317
      %v433 = vpop.f32.mrf.mxu0
      %v434 = vadd.f32 %v241, %v433
      %435 = vmatmul.f32.gmra.mxu0 %v320
      %v436 = vpop.f32.mrf.mxu0
      %v437 = vadd.f32 %v241, %v436
      %438 = vmatmul.f32.gmra.mxu0 %v323
      %v439 = vpop.f32.mrf.mxu0
      %v440 = vadd.f32 %v241, %v439
      %441 = vmatmul.f32.gmra.mxu0 %v326
      %v442 = vpop.f32.mrf.mxu0
      %v443 = vadd.f32 %v241, %v442
      %444 = vmatmul.f32.gmra.mxu0 %v329
      %v445 = vpop.f32.mrf.mxu0
      %v446 = vadd.f32 %v241, %v445
      %447 = vmatmul.f32.gmra.mxu0 %v332
      %v448 = vpop.f32.mrf.mxu0
      %v449 = vadd.f32 %v241, %v448
      %450 = vmatmul.f32.gmra.mxu0 %v335
      %v451 = vpop.f32.mrf.mxu0
      %v452 = vadd.f32 %v241, %v451
      %453 = vmatmul.f32.gmra.mxu0 %v338
      %v454 = vpop.f32.mrf.mxu0
      %v455 = vadd.f32 %v241, %v454
      %456 = vdwg.mxu0
      %v457 = vmax.f32 %v362, 0.0
      %v458 = vmax.f32 %v365, 0.0
      %v459 = vmax.f32 %v368, 0.0
      %v460 = vmax.f32 %v371, 0.0
      %v461 = vmax.f32 %v374, 0.0
      %v462 = vmax.f32 %v377, 0.0
      %v463 = vmax.f32 %v380, 0.0
      %v464 = vmax.f32 %v383, 0.0
      %v465 = vmax.f32 %v386, 0.0
      %v466 = vmax.f32 %v389, 0.0
      %v467 = vmax.f32 %v392, 0.0
      %v468 = vmax.f32 %v395, 0.0
      %v469 = vmax.f32 %v398, 0.0
      %v470 = vmax.f32 %v401, 0.0
      %v471 = vmax.f32 %v404, 0.0
      %v472 = vmax.f32 %v407, 0.0
      %v473 = vmax.f32 %v410, 0.0
      %v474 = vmax.f32 %v413, 0.0
      %v475 = vmax.f32 %v416, 0.0
      %v476 = vmax.f32 %v419, 0.0
      %v477 = vmax.f32 %v422, 0.0
      %v478 = vmax.f32 %v425, 0.0
      %v479 = vmax.f32 %v428, 0.0
      %v480 = vmax.f32 %v431, 0.0
      %v481 = vmax.f32 %v434, 0.0
      %v482 = vmax.f32 %v437, 0.0
      %v483 = vmax.f32 %v440, 0.0
      %v484 = vmax.f32 %v443, 0.0
      %v485 = vmax.f32 %v446, 0.0
      %v486 = vmax.f32 %v449, 0.0
      %v487 = vmax.f32 %v452, 0.0
      %v488 = vmax.f32 %v455, 0.0
      %v489 = vmax.f32 %v457, %v459
      %v490 = vmax.f32 %v458, %v460
      %v491 = vmax.f32 %v461, %v463
      %v492 = vmax.f32 %v462, %v464
      %v493 = vmax.f32 %v465, %v467
      %v494 = vmax.f32 %v466, %v468
      %v495 = vmax.f32 %v469, %v471
      %v496 = vmax.f32 %v470, %v472
      %v497 = vmax.f32 %v473, %v475
      %v498 = vmax.f32 %v474, %v476
      %v499 = vmax.f32 %v477, %v479
      %v500 = vmax.f32 %v478, %v480
      %v501 = vmax.f32 %v481, %v483
      %v502 = vmax.f32 %v482, %v484
      %v503 = vmax.f32 %v485, %v487
      %v504 = vmax.f32 %v486, %v488
      %521 = vrot.lane.b32.xlu0 %v489, 96
      %v522 = vpop.permute.xlu0 %521
      %523 = vrot.lane.b32.xlu0 %v490, 96
      %v524 = vpop.permute.xlu0 %523
      %525 = vrot.lane.b32.xlu0 %v491, 96
      %v526 = vpop.permute.xlu0 %525
      %527 = vrot.lane.b32.xlu0 %v492, 96
      %v528 = vpop.permute.xlu0 %527
      %529 = vrot.lane.b32.xlu0 %v493, 96
      %v530 = vpop.permute.xlu0 %529
      %531 = vrot.lane.b32.xlu0 %v494, 96
      %v532 = vpop.permute.xlu0 %531
      %533 = vrot.lane.b32.xlu0 %v495, 96
      %v534 = vpop.permute.xlu0 %533
      %535 = vrot.lane.b32.xlu0 %v496, 96
      %v536 = vpop.permute.xlu0 %535
      %537 = vrot.lane.b32.xlu0 %v497, 96
      %v538 = vpop.permute.xlu0 %537
      %539 = vrot.lane.b32.xlu0 %v498, 96
      %v540 = vpop.permute.xlu0 %539
      %541 = vrot.lane.b32.xlu0 %v499, 96
      %v542 = vpop.permute.xlu0 %541
      %543 = vrot.lane.b32.xlu0 %v500, 96
      %v544 = vpop.permute.xlu0 %543
      %545 = vrot.lane.b32.xlu0 %v501, 96
      %v546 = vpop.permute.xlu0 %545
      %547 = vrot.lane.b32.xlu0 %v502, 96
      %v548 = vpop.permute.xlu0 %547
      %549 = vrot.lane.b32.xlu0 %v503, 96
      %v550 = vpop.permute.xlu0 %549
      %551 = vrot.lane.b32.xlu0 %v504, 96
      %v552 = vpop.permute.xlu0 %551
      %v569 = vmax.f32 %v489, %v522
      %v570 = vmax.f32 %v490, %v524
      %v571 = vmax.f32 %v491, %v526
      %v572 = vmax.f32 %v492, %v528
      %v573 = vmax.f32 %v493, %v530
      %v574 = vmax.f32 %v494, %v532
      %v575 = vmax.f32 %v495, %v534
      %v576 = vmax.f32 %v496, %v536
      %v577 = vmax.f32 %v497, %v538
      %v578 = vmax.f32 %v498, %v540
      %v579 = vmax.f32 %v499, %v542
      %v580 = vmax.f32 %v500, %v544
      %v581 = vmax.f32 %v501, %v546
      %v582 = vmax.f32 %v502, %v548
      %v583 = vmax.f32 %v503, %v550
      %v584 = vmax.f32 %v504, %v552
      %vm585 = vcmask 261120
      %586 = vst.msk [vmem:[%s204] sm:$0xff] %vm585, %v569
      %587 = vst.msk [vmem:[%s204 + $0x8] sm:$0xff] %vm585, %v570
      %588 = vst.msk [vmem:[%s204 + $0x10] sm:$0xff] %vm585, %v571
      %589 = vst.msk [vmem:[%s204 + $0x18] sm:$0xff] %vm585, %v572
      %590 = vst.msk [vmem:[%s204 + $0x20] sm:$0xff] %vm585, %v573
      %591 = vst.msk [vmem:[%s204 + $0x28] sm:$0xff] %vm585, %v574
      %592 = vst.msk [vmem:[%s204 + $0x30] sm:$0xff] %vm585, %v575
      %593 = vst.msk [vmem:[%s204 + $0x38] sm:$0xff] %vm585, %v576
      %594 = vst.msk [vmem:[%s204 + $0x40] sm:$0xff] %vm585, %v577
      %595 = vst.msk [vmem:[%s204 + $0x48] sm:$0xff] %vm585, %v578
      %596 = vst.msk [vmem:[%s204 + $0x50] sm:$0xff] %vm585, %v579
      %597 = vst.msk [vmem:[%s204 + $0x58] sm:$0xff] %vm585, %v580
      %598 = vst.msk [vmem:[%s204 + $0x60] sm:$0xff] %vm585, %v581
      %599 = vst.msk [vmem:[%s204 + $0x68] sm:$0xff] %vm585, %v582
      %600 = vst.msk [vmem:[%s204 + $0x70] sm:$0xff] %vm585, %v583
      %601 = vst.msk [vmem:[%s204 + $0x78] sm:$0xff] %vm585, %v584
      %p602 = scmp.lt.s32.totalorder %s14, 1
      %s603 = scalar_select %p602, %s14, 1
      %s604 = smul.addr %s603, 16
      %s605 = smul.addr %s604, 8
      %s606 = scalar_lea.vmem %s3, %s605
      // Predicated region
      $region33: #{multiview_forward.4} parent=31 // pred_check
        %p607 = pneg %p110
      $region34: #{multiview_forward.4} parent=31 // pred_check_branch
        %609 = sbr.rel (%p607) target = $region36
      $region35: #{multiview_forward.4} parent=31 // pred_region
        _
      $region36: #{multiview_forward.4} parent=31 // pred_fallthru
        _
    $region32: #{multiview_forward.4} parent=5 // pred_fallthru
      _
    %p610 = scmp.le.s32.totalorder 2, %s9
    // Predicated region
    $region37: #{multiview_forward.4} parent=5 // pred_check
      %p611 = pneg %p610
    $region38: #{multiview_forward.4} parent=5 // pred_check_branch
      %613 = sbr.rel (%p611) target = $region40
    $region39: #{multiview_forward.4} parent=5 // pred_region
      %s614 = ssub.s32 %s9, 2
      // Predicated region
      $region41: #{multiview_forward.4} parent=39 // pred_check
        %p615 = pneg %p116
      $region42: #{multiview_forward.4} parent=39 // pred_check_branch
        %617 = sbr.rel (%p615) target = $region44
      $region43: #{multiview_forward.4} parent=39 // pred_region
        %p618 = scmp.lt.s32.totalorder %s15, 1
        %s619 = scalar_select %p618, %s15, 1
        %s620 = smul.addr %s619, 16
        %s621 = smul.addr %s620, 8
        %s622 = scalar_lea.vmem %s3, %s621
      $region44: #{multiview_forward.4} parent=39 // pred_fallthru
        _
    $region40: #{multiview_forward.4} parent=5 // pred_fallthru
      _
  $region6: #{multiview_forward.4} parent=0 // loop_footer
    %s13 = sadd.s32 1, %s9
  $region7: #{multiview_forward.4} parent=0 // loop_footer_branch
    %8 = sbr.rel target = $region3
  $region8: #{multiview_forward.4} parent=0 // loop_exit
    _

// kernel: multiview_forward.5
$region0: #{multiview_forward.5}
  #allocation0 [shape = 'u32[]', space=smem, size = 0x4, offset = 0x4, fixed_abs, tag = 'smem constant byte address 0x4 - core index']
  #allocation1 [shape = 'u32[72,128]{1,0:T(1,128)}', space=vmem, size = 0x9000, scoped, tag = 'internal scratch']
  %s0 = inlined_call_operand.vmem [shape: f32[2,64,384], index: 0, kind: input, shape index: {}]
  %s1 = inlined_call_operand.vmem [shape: f32[2,384,128], index: 1, kind: input, shape index: {}]
  %s2 = inlined_call_operand.vmem [shape: f32[2,1,128], index: 2, kind: input, shape index: {}]
  %s3 = inlined_call_operand.vmem [shape: f32[2,256,32], index: 3, kind: input, shape index: {}]
  %s4 = inlined_call_operand.vmem [shape: f32[2,1,32], index: 4, kind: input, shape index: {}]
  %s5 = inlined_call_operand.vmem [shape: f32[2,8,32], index: 5, kind: output, shape index: {}]
  %s6 = sld [smem:[#allocation0]]
  $region53: #{multiview_forward.5} parent=0
    _
  %s8 = ssub.s32 1, %s6
  %s9 = scalar_select 0, %s8, %s6
  loop: start=0, step=1, limit=4
  $region2: #{multiview_forward.5} parent=0 // loop_pre_header
    _
  $region3: #{multiview_forward.5} parent=0 // loop_header
    %s11 = sphi 0, %s15
    %p12 = scmp.ge.s32.totalorder %s11, 4
    %s21 = sphi 0, %s23
    %s24 = sphi 0, %s21
    %s25 = sphi 0, %s24
    %s41 = sphi 0, %s25
    %s47 = sphi 0, %s49
    %s50 = sphi 0, %s47
    %s51 = sphi 0, %s50
    %s67 = sphi 0, %s51
    %s73 = sphi 0, %s75
    %s76 = sphi 0, %s73
    %s77 = sphi 0, %s76
    %s93 = sphi 0, %s77
    %s99 = sphi 0, %s101
    %s102 = sphi 0, %s99
    %s103 = sphi 0, %s102
    %s119 = sphi 0, %s103
    %s125 = sphi 0, %s127
    %s128 = sphi 0, %s125
    %s129 = sphi 0, %s128
    %s145 = sphi 0, %s129
    %s151 = sphi 0, %s153
    %s154 = sphi 0, %s151
    %s155 = sphi 0, %s154
    %s171 = sphi 0, %s155
  $region4: #{multiview_forward.5} parent=0 // loop_header_branch
    %14 = sbr.rel (%p12) target = $region8
  $region5: #{multiview_forward.5} parent=0 // loop_body
    %s16 = ssub.s32 %s11, 1
    %s17 = ssub.s32 %s11, 2
    %s18 = sadd.s32 %s11, 1
    %s19 = ssub.s32 %s11, %s18
    %p20 = scmp.eq.s32.totalorder %s19, 0
    %s22 = sadd.s32 %s21, 1
    %s23 = scalar_select %p20, %s21, %s22
    %p26 = pneg %p20
    %p27 = scmp.eq.s32.totalorder %s11, 1
    %p28 = por %p26, %p27
    %p29 = scmp.ne.s32.totalorder %s21, %s24
    %p30 = scmp.eq.s32.totalorder %s11, 0
    %p31 = por %p29, %p30
    %p32 = scmp.ne.s32.totalorder %s21, %s24
    %p33 = scmp.eq.s32.totalorder %s16, 1
    %p34 = por %p32, %p33
    %p35 = scmp.ne.s32.totalorder %s24, %s25
    %p36 = scmp.eq.s32.totalorder %s16, 0
    %p37 = por %p35, %p36
    %p38 = scmp.ne.s32.totalorder %s24, %s25
    %p39 = scmp.eq.s32.totalorder %s17, 1
    %p40 = por %p38, %p39
    %p42 = scmp.ne.s32.totalorder %s25, %s41
    %p43 = scmp.eq.s32.totalorder %s17, 0
    %p44 = por %p42, %p43
    %s45 = ssub.s32 %s11, %s18
    %p46 = scmp.eq.s32.totalorder %s45, 0
    %s48 = sadd.s32 %s47, 1
    %s49 = scalar_select %p46, %s47, %s48
    %p52 = pneg %p46
    %p53 = scmp.eq.s32.totalorder %s11, 1
    %p54 = por %p52, %p53
    %p55 = scmp.ne.s32.totalorder %s47, %s50
    %p56 = scmp.eq.s32.totalorder %s11, 0
    %p57 = por %p55, %p56
    %p58 = scmp.ne.s32.totalorder %s47, %s50
    %p59 = scmp.eq.s32.totalorder %s16, 1
    %p60 = por %p58, %p59
    %p61 = scmp.ne.s32.totalorder %s50, %s51
    %p62 = scmp.eq.s32.totalorder %s16, 0
    %p63 = por %p61, %p62
    %p64 = scmp.ne.s32.totalorder %s50, %s51
    %p65 = scmp.eq.s32.totalorder %s17, 1
    %p66 = por %p64, %p65
    %p68 = scmp.ne.s32.totalorder %s51, %s67
    %p69 = scmp.eq.s32.totalorder %s17, 0
    %p70 = por %p68, %p69
    %s71 = ssub.s32 %s11, %s18
    %p72 = scmp.eq.s32.totalorder %s71, 0
    %s74 = sadd.s32 %s73, 1
    %s75 = scalar_select %p72, %s73, %s74
    %p78 = pneg %p72
    %p79 = scmp.eq.s32.totalorder %s11, 1
    %p80 = por %p78, %p79
    %p81 = scmp.ne.s32.totalorder %s73, %s76
    %p82 = scmp.eq.s32.totalorder %s11, 0
    %p83 = por %p81, %p82
    %p84 = scmp.ne.s32.totalorder %s73, %s76
    %p85 = scmp.eq.s32.totalorder %s16, 1
    %p86 = por %p84, %p85
    %p87 = scmp.ne.s32.totalorder %s76, %s77
    %p88 = scmp.eq.s32.totalorder %s16, 0
    %p89 = por %p87, %p88
    %p90 = scmp.ne.s32.totalorder %s76, %s77
    %p91 = scmp.eq.s32.totalorder %s17, 1
    %p92 = por %p90, %p91
    %p94 = scmp.ne.s32.totalorder %s77, %s93
    %p95 = scmp.eq.s32.totalorder %s17, 0
    %p96 = por %p94, %p95
    %s97 = ssub.s32 %s11, %s18
    %p98 = scmp.eq.s32.totalorder %s97, 0
    %s100 = sadd.s32 %s99, 1
    %s101 = scalar_select %p98, %s99, %s100
    %p104 = pneg %p98
    %p105 = scmp.eq.s32.totalorder %s11, 1
    %p106 = por %p104, %p105
    %p107 = scmp.ne.s32.totalorder %s99, %s102
    %p108 = scmp.eq.s32.totalorder %s11, 0
    %p109 = por %p107, %p108
    %p110 = scmp.ne.s32.totalorder %s99, %s102
    %p111 = scmp.eq.s32.totalorder %s16, 1
    %p112 = por %p110, %p111
    %p113 = scmp.ne.s32.totalorder %s102, %s103
    %p114 = scmp.eq.s32.totalorder %s16, 0
    %p115 = por %p113, %p114
    %p116 = scmp.ne.s32.totalorder %s102, %s103
    %p117 = scmp.eq.s32.totalorder %s17, 1
    %p118 = por %p116, %p117
    %p120 = scmp.ne.s32.totalorder %s103, %s119
    %p121 = scmp.eq.s32.totalorder %s17, 0
    %p122 = por %p120, %p121
    %s123 = ssub.s32 %s11, %s18
    %p124 = scmp.eq.s32.totalorder %s123, 0
    %s126 = sadd.s32 %s125, 1
    %s127 = scalar_select %p124, %s125, %s126
    %p130 = pneg %p124
    %p131 = scmp.eq.s32.totalorder %s11, 1
    %p132 = por %p130, %p131
    %p133 = scmp.ne.s32.totalorder %s125, %s128
    %p134 = scmp.eq.s32.totalorder %s11, 0
    %p135 = por %p133, %p134
    %p136 = scmp.ne.s32.totalorder %s125, %s128
    %p137 = scmp.eq.s32.totalorder %s16, 1
    %p138 = por %p136, %p137
    %p139 = scmp.ne.s32.totalorder %s128, %s129
    %p140 = scmp.eq.s32.totalorder %s16, 0
    %p141 = por %p139, %p140
    %p142 = scmp.ne.s32.totalorder %s128, %s129
    %p143 = scmp.eq.s32.totalorder %s17, 1
    %p144 = por %p142, %p143
    %p146 = scmp.ne.s32.totalorder %s129, %s145
    %p147 = scmp.eq.s32.totalorder %s17, 0
    %p148 = por %p146, %p147
    %s149 = ssub.s32 %s11, %s18
    %p150 = scmp.eq.s32.totalorder %s149, 0
    %s152 = sadd.s32 %s151, 1
    %s153 = scalar_select %p150, %s151, %s152
    %p156 = pneg %p150
    %p157 = scmp.eq.s32.totalorder %s11, 1
    %p158 = por %p156, %p157
    %p159 = scmp.ne.s32.totalorder %s151, %s154
    %p160 = scmp.eq.s32.totalorder %s11, 0
    %p161 = por %p159, %p160
    %p162 = scmp.ne.s32.totalorder %s151, %s154
    %p163 = scmp.eq.s32.totalorder %s16, 1
    %p164 = por %p162, %p163
    %p165 = scmp.ne.s32.totalorder %s154, %s155
    %p166 = scmp.eq.s32.totalorder %s16, 0
    %p167 = por %p165, %p166
    %p168 = scmp.ne.s32.totalorder %s154, %s155
    %p169 = scmp.eq.s32.totalorder %s17, 1
    %p170 = por %p168, %p169
    %p172 = scmp.ne.s32.totalorder %s155, %s171
    %p173 = scmp.eq.s32.totalorder %s17, 0
    %p174 = por %p172, %p173
    %p175 = scmp.le.s32.totalorder 1, %s11
    %p176 = scmp.lt.s32.totalorder %s11, 3
    %p177 = pnand %p175, %p176
    %p178 = pneg %p177
    // Predicated region
    $region9: #{multiview_forward.5} parent=5 // pred_check
      _
    $region10: #{multiview_forward.5} parent=5 // pred_check_branch
      %180 = sbr.rel (%p177) target = $region12
    $region11: #{multiview_forward.5} parent=5 // pred_region
      %s181 = ssub.s32 %s11, 1
    $region12: #{multiview_forward.5} parent=5 // pred_fallthru
      _
    %p182 = scmp.lt.s32.totalorder %s11, 2
    // Predicated region
    $region13: #{multiview_forward.5} parent=5 // pred_check
      %p183 = pneg %p182
    $region14: #{multiview_forward.5} parent=5 // pred_check_branch
      %185 = sbr.rel (%p183) target = $region16
    $region15: #{multiview_forward.5} parent=5 // pred_region
      // Predicated region
      $region17: #{multiview_forward.5} parent=15 // pred_check
        %p186 = pneg %p31
      $region18: #{multiview_forward.5} parent=15 // pred_check_branch
        %188 = sbr.rel (%p186) target = $region20
      $region19: #{multiview_forward.5} parent=15 // pred_region
        %p189 = scmp.lt.s32.totalorder %s11, 1
        %s190 = scalar_select %p189, %s11, 1
        %s191 = smul.addr %s190, 24
        %s192 = smul.addr %s191, 8
        %s193 = scalar_lea.vmem %s0, %s192
      $region20: #{multiview_forward.5} parent=15 // pred_fallthru
        _
      // Predicated region
      $region21: #{multiview_forward.5} parent=15 // pred_check
        %p194 = pneg %p57
      $region22: #{multiview_forward.5} parent=15 // pred_check_branch
        %196 = sbr.rel (%p194) target = $region24
      $region23: #{multiview_forward.5} parent=15 // pred_region
        %p197 = scmp.lt.s32.totalorder %s11, 1
        %s198 = scalar_select %p197, %s11, 1
        %s199 = smul.addr %s198, 48
        %s200 = smul.addr %s199, 8
        %s201 = scalar_lea.vmem %s1, %s200
      $region24: #{multiview_forward.5} parent=15 // pred_fallthru
        _
      // Predicated region
      $region25: #{multiview_forward.5} parent=15 // pred_check
        %p202 = pneg %p83
      $region26: #{multiview_forward.5} parent=15 // pred_check_branch
        %204 = sbr.rel (%p202) target = $region28
      $region27: #{multiview_forward.5} parent=15 // pred_region
        %p205 = scmp.lt.s32.totalorder %s11, 1
        %s206 = scalar_select %p205, %s11, 1
        %s207 = scalar_lea.vmem %s2, %s206
      $region28: #{multiview_forward.5} parent=15 // pred_fallthru
        _
      // Predicated region
      $region29: #{multiview_forward.5} parent=15 // pred_check
        %p208 = pneg %p109
      $region30: #{multiview_forward.5} parent=15 // pred_check_branch
        %210 = sbr.rel (%p208) target = $region32
      $region31: #{multiview_forward.5} parent=15 // pred_region
        %p211 = scmp.lt.s32.totalorder %s11, 1
        %s212 = scalar_select %p211, %s11, 1
        %s213 = smul.addr %s212, 32
        %s214 = smul.addr %s213, 8
        %s215 = scalar_lea.vmem %s3, %s214
      $region32: #{multiview_forward.5} parent=15 // pred_fallthru
        _
      // Predicated region
      $region33: #{multiview_forward.5} parent=15 // pred_check
        %p216 = pneg %p135
      $region34: #{multiview_forward.5} parent=15 // pred_check_branch
        %218 = sbr.rel (%p216) target = $region36
      $region35: #{multiview_forward.5} parent=15 // pred_region
        %p219 = scmp.lt.s32.totalorder %s11, 1
        %s220 = scalar_select %p219, %s11, 1
        %s221 = scalar_lea.vmem %s4, %s220
      $region36: #{multiview_forward.5} parent=15 // pred_fallthru
        _
    $region16: #{multiview_forward.5} parent=5 // pred_fallthru
      _
    %p222 = scmp.le.s32.totalorder 1, %s11
    %p223 = scmp.lt.s32.totalorder %s11, 3
    %p224 = pnand %p222, %p223
    %p225 = pneg %p224
    // Predicated region
    $region37: #{multiview_forward.5} parent=5 // pred_check
      _
    $region38: #{multiview_forward.5} parent=5 // pred_check_branch
      %227 = sbr.rel (%p224) target = $region40
    $region39: #{multiview_forward.5} parent=5 // pred_region
      %s228 = ssub.s32 %s11, 1
      %p229 = scmp.lt.s32.totalorder %s16, 1
      %s230 = scalar_select %p229, %s16, 1
      %s231 = smul.addr %s230, 24
      %s232 = smul.addr %s231, 8
      %s233 = scalar_lea.vmem %s0, %s232
      %p234 = pneg %p37
      %p235 = pneg %p34
      %p236 = scmp.lt.s32.totalorder %s16, 1
      %s237 = scalar_select %p236, %s16, 1
      %s238 = smul.addr %s237, 48
      %s239 = smul.addr %s238, 8
      %s240 = scalar_lea.vmem %s1, %s239
      %p241 = pneg %p63
      %p242 = pneg %p60
      %p243 = scmp.lt.s32.totalorder %s16, 1
      %s244 = scalar_select %p243, %s16, 1
      %s245 = scalar_lea.vmem %s2, %s244
      %p246 = pneg %p89
      %p247 = pneg %p86
      %p248 = scmp.lt.s32.totalorder %s16, 1
      %s249 = scalar_select %p248, %s16, 1
      %s250 = smul.addr %s249, 32
      %s251 = smul.addr %s250, 8
      %s252 = scalar_lea.vmem %s3, %s251
      %p253 = pneg %p115
      %p254 = pneg %p112
      %p255 = scmp.lt.s32.totalorder %s16, 1
      %s256 = scalar_select %p255, %s16, 1
      %s257 = scalar_lea.vmem %s4, %s256
      %p258 = pneg %p141
      %p259 = pneg %p138
      %p260 = pneg %p167
      %p261 = pneg %p164
      %p262 = scmp.lt.s32.totalorder %s16, 1
      %s263 = scalar_select %p262, %s16, 1
      %s264 = smul.addr %s263, 8
      %s265 = scalar_lea.vmem %s5, %s264
      %p266 = scmp.lt.s32.totalorder %s16, 1
      %s267 = scalar_select %p266, %s16, 1
      %s268 = smul.addr %s267, 24
      %s269 = smul.addr %s268, 8
      %s270 = scalar_lea.vmem %s0, %s269
      %p271 = scmp.lt.s32.totalorder %s16, 1
      %s272 = scalar_select %p271, %s16, 1
      %s273 = smul.addr %s272, 48
      %s274 = smul.addr %s273, 8
      %s275 = scalar_lea.vmem %s1, %s274
      %p276 = scmp.lt.s32.totalorder %s16, 1
      %s277 = scalar_select %p276, %s16, 1
      %s278 = scalar_lea.vmem %s2, %s277
      %p279 = scmp.lt.s32.totalorder %s16, 1
      %s280 = scalar_select %p279, %s16, 1
      %s281 = smul.addr %s280, 32
      %s282 = smul.addr %s281, 8
      %s283 = scalar_lea.vmem %s3, %s282
      %p284 = scmp.lt.s32.totalorder %s16, 1
      %s285 = scalar_select %p284, %s16, 1
      %s286 = scalar_lea.vmem %s4, %s285
      %p287 = scmp.lt.s32.totalorder %s16, 1
      %s288 = scalar_select %p287, %s16, 1
      %s289 = smul.addr %s288, 8
      %s290 = scalar_lea.vmem %s5, %s289
      %v291 = vld [vmem:[%s270] sm:$0xff]
      %v292 = vld [vmem:[%s270 + $0x8] sm:$0xff]
      %v293 = vld [vmem:[%s270 + $0x10] sm:$0xff]
      %v294 = vld [vmem:[%s270 + $0x18] sm:$0xff]
      %v295 = vld [vmem:[%s270 + $0x20] sm:$0xff]
      %v296 = vld [vmem:[%s270 + $0x28] sm:$0xff]
      %v297 = vld [vmem:[%s270 + $0x30] sm:$0xff]
      %v298 = vld [vmem:[%s270 + $0x38] sm:$0xff]
      %v299 = vld [vmem:[%s270 + $0x40] sm:$0xff]
      %v300 = vld [vmem:[%s270 + $0x48] sm:$0xff]
      %v301 = vld [vmem:[%s270 + $0x50] sm:$0xff]
      %v302 = vld [vmem:[%s270 + $0x58] sm:$0xff]
      %v303 = vld [vmem:[%s270 + $0x60] sm:$0xff]
      %v304 = vld [vmem:[%s270 + $0x68] sm:$0xff]
      %v305 = vld [vmem:[%s270 + $0x70] sm:$0xff]
      %v306 = vld [vmem:[%s270 + $0x78] sm:$0xff]
      %v307 = vld [vmem:[%s270 + $0x80] sm:$0xff]
      %v308 = vld [vmem:[%s270 + $0x88] sm:$0xff]
      %v309 = vld [vmem:[%s270 + $0x90] sm:$0xff]
      %v310 = vld [vmem:[%s270 + $0x98] sm:$0xff]
      %v311 = vld [vmem:[%s270 + $0xa0] sm:$0xff]
      %v312 = vld [vmem:[%s270 + $0xa8] sm:$0xff]
      %v313 = vld [vmem:[%s270 + $0xb0] sm:$0xff]
      %v314 = vld [vmem:[%s270 + $0xb8] sm:$0xff]
      %v315 = vld [vmem:[%s275] sm:$0xff]
      %v316 = vld [vmem:[%s275 + $0x8] sm:$0xff]
      %v317 = vld [vmem:[%s275 + $0x10] sm:$0xff]
      %v318 = vld [vmem:[%s275 + $0x18] sm:$0xff]
      %v319 = vld [vmem:[%s275 + $0x20] sm:$0xff]
      %v320 = vld [vmem:[%s275 + $0x28] sm:$0xff]
      %v321 = vld [vmem:[%s275 + $0x30] sm:$0xff]
      %v322 = vld [vmem:[%s275 + $0x38] sm:$0xff]
      %v323 = vld [vmem:[%s275 + $0x40] sm:$0xff]
      %v324 = vld [vmem:[%s275 + $0x48] sm:$0xff]
      %v325 = vld [vmem:[%s275 + $0x50] sm:$0xff]
      %v326 = vld [vmem:[%s275 + $0x58] sm:$0xff]
      %v327 = vld [vmem:[%s275 + $0x60] sm:$0xff]
      %v328 = vld [vmem:[%s275 + $0x68] sm:$0xff]
      %v329 = vld [vmem:[%s275 + $0x70] sm:$0xff]
      %v330 = vld [vmem:[%s275 + $0x78] sm:$0xff]
      %v331 = vld [vmem:[%s275 + $0x80] sm:$0xff]
      %v332 = vld [vmem:[%s275 + $0x88] sm:$0xff]
      %v333 = vld [vmem:[%s275 + $0x90] sm:$0xff]
      %v334 = vld [vmem:[%s275 + $0x98] sm:$0xff]
      %v335 = vld [vmem:[%s275 + $0xa0] sm:$0xff]
      %v336 = vld [vmem:[%s275 + $0xa8] sm:$0xff]
      %v337 = vld [vmem:[%s275 + $0xb0] sm:$0xff]
      %v338 = vld [vmem:[%s275 + $0xb8] sm:$0xff]
      %v339 = vld [vmem:[%s275 + $0xc0] sm:$0xff]
      %v340 = vld [vmem:[%s275 + $0xc8] sm:$0xff]
      %v341 = vld [vmem:[%s275 + $0xd0] sm:$0xff]
      %v342 = vld [vmem:[%s275 + $0xd8] sm:$0xff]
      %v343 = vld [vmem:[%s275 + $0xe0] sm:$0xff]
      %v344 = vld [vmem:[%s275 + $0xe8] sm:$0xff]
      %v345 = vld [vmem:[%s275 + $0xf0] sm:$0xff]
      %v346 = vld [vmem:[%s275 + $0xf8] sm:$0xff]
      %v347 = vld [vmem:[%s275 + $0x100] sm:$0xff]
      %v348 = vld [vmem:[%s275 + $0x108] sm:$0xff]
      %v349 = vld [vmem:[%s275 + $0x110] sm:$0xff]
      %v350 = vld [vmem:[%s275 + $0x118] sm:$0xff]
      %v351 = vld [vmem:[%s275 + $0x120] sm:$0xff]
      %v352 = vld [vmem:[%s275 + $0x128] sm:$0xff]
      %v353 = vld [vmem:[%s275 + $0x130] sm:$0xff]
      %v354 = vld [vmem:[%s275 + $0x138] sm:$0xff]
      %v355 = vld [vmem:[%s275 + $0x140] sm:$0xff]
      %v356 = vld [vmem:[%s275 + $0x148] sm:$0xff]
      %v357 = vld [vmem:[%s275 + $0x150] sm:$0xff]
      %v358 = vld [vmem:[%s275 + $0x158] sm:$0xff]
      %v359 = vld [vmem:[%s275 + $0x160] sm:$0xff]
      %v360 = vld [vmem:[%s275 + $0x168] sm:$0xff]
      %v361 = vld [vmem:[%s275 + $0x170] sm:$0xff]
      %v362 = vld [vmem:[%s275 + $0x178] sm:$0xff]
      %v363 = vld [vmem:[%s278] sm:$0x1]
      %v365 = vperm.slane %v363, 0
      %367 = vmatpush.msra.mxu0 %v330
      %368 = vmatpush.msra.mxu0 %v329
      %369 = vmatpush.msra.mxu0 %v328
      %370 = vmatpush.msra.mxu0 %v327
      %371 = vmatpush.msra.mxu0 %v326
      %372 = vmatpush.msra.mxu0 %v325
      %373 = vmatpush.msra.mxu0 %v324
      %374 = vmatpush.msra.mxu0 %v323
      %375 = vmatpush.msra.mxu0 %v322
      %376 = vmatpush.msra.mxu0 %v321
      %377 = vmatpush.msra.mxu0 %v320
      %378 = vmatpush.msra.mxu0 %v319
      %379 = vmatpush.msra.mxu0 %v318
      %380 = vmatpush.msra.mxu0 %v317
      %381 = vmatpush.msra.mxu0 %v316
      %382 = vmatpush.msra.mxu0 %v315
      %383 = vmatmul.f32.gmra.mxu0 %v291
      %v384 = vpop.f32.mrf.mxu0
      %v385 = vadd.f32 %v365, %v384
      %386 = vmatmul.f32.gmra.mxu0 %v294
      %v387 = vpop.f32.mrf.mxu0
      %v388 = vadd.f32 %v365, %v387
      %389 = vmatmul.f32.gmra.mxu0 %v297
      %v390 = vpop.f32.mrf.mxu0
      %v391 = vadd.f32 %v365, %v390
      %392 = vmatmul.f32.gmra.mxu0 %v300
      %v393 = vpop.f32.mrf.mxu0
      %v394 = vadd.f32 %v365, %v393
      %395 = vmatmul.f32.gmra.mxu0 %v303
      %v396 = vpop.f32.mrf.mxu0
      %v397 = vadd.f32 %v365, %v396
      %398 = vmatmul.f32.gmra.mxu0 %v306
      %v399 = vpop.f32.mrf.mxu0
      %v400 = vadd.f32 %v365, %v399
      %401 = vmatmul.f32.gmra.mxu0 %v309
      %v402 = vpop.f32.mrf.mxu0
      %v403 = vadd.f32 %v365, %v402
      %404 = vmatmul.f32.gmra.mxu0 %v312
      %v405 = vpop.f32.mrf.mxu0
      %v406 = vadd.f32 %v365, %v405
      %407 = vdwg.mxu0
      %408 = vmatpush.msra.mxu0 %v346
      %409 = vmatpush.msra.mxu0 %v345
      %410 = vmatpush.msra.mxu0 %v344
      %411 = vmatpush.msra.mxu0 %v343
      %412 = vmatpush.msra.mxu0 %v342
      %413 = vmatpush.msra.mxu0 %v341
      %414 = vmatpush.msra.mxu0 %v340
      %415 = vmatpush.msra.mxu0 %v339
      %416 = vmatpush.msra.mxu0 %v338
      %417 = vmatpush.msra.mxu0 %v337
      %418 = vmatpush.msra.mxu0 %v336
      %419 = vmatpush.msra.mxu0 %v335
      %420 = vmatpush.msra.mxu0 %v334
      %421 = vmatpush.msra.mxu0 %v333
      %422 = vmatpush.msra.mxu0 %v332
      %423 = vmatpush.msra.mxu0 %v331
      %424 = vmatmul.f32.gmra.mxu0 %v292
      %v425 = vpop.f32.mrf.mxu0
      %v426 = vadd.f32 %v385, %v425
      %427 = vmatmul.f32.gmra.mxu0 %v295
      %v428 = vpop.f32.mrf.mxu0
      %v429 = vadd.f32 %v388, %v428
      %430 = vmatmul.f32.gmra.mxu0 %v298
      %v431 = vpop.f32.mrf.mxu0
      %v432 = vadd.f32 %v391, %v431
      %433 = vmatmul.f32.gmra.mxu0 %v301
      %v434 = vpop.f32.mrf.mxu0
      %v435 = vadd.f32 %v394, %v434
      %436 = vmatmul.f32.gmra.mxu0 %v304
      %v437 = vpop.f32.mrf.mxu0
      %v438 = vadd.f32 %v397, %v437
      %439 = vmatmul.f32.gmra.mxu0 %v307
      %v440 = vpop.f32.mrf.mxu0
      %v441 = vadd.f32 %v400, %v440
      %442 = vmatmul.f32.gmra.mxu0 %v310
      %v443 = vpop.f32.mrf.mxu0
      %v444 = vadd.f32 %v403, %v443
      %445 = vmatmul.f32.gmra.mxu0 %v313
      %v446 = vpop.f32.mrf.mxu0
      %v447 = vadd.f32 %v406, %v446
      %448 = vdwg.mxu0
      %449 = vmatpush.msra.mxu0 %v362
      %450 = vmatpush.msra.mxu0 %v361
      %451 = vmatpush.msra.mxu0 %v360
      %452 = vmatpush.msra.mxu0 %v359
      %453 = vmatpush.msra.mxu0 %v358
      %454 = vmatpush.msra.mxu0 %v357
      %455 = vmatpush.msra.mxu0 %v356
      %456 = vmatpush.msra.mxu0 %v355
      %457 = vmatpush.msra.mxu0 %v354
      %458 = vmatpush.msra.mxu0 %v353
      %459 = vmatpush.msra.mxu0 %v352
      %460 = vmatpush.msra.mxu0 %v351
      %461 = vmatpush.msra.mxu0 %v350
      %462 = vmatpush.msra.mxu0 %v349
      %463 = vmatpush.msra.mxu0 %v348
      %464 = vmatpush.msra.mxu0 %v347
      %465 = vmatmul.f32.gmra.mxu0 %v293
      %v466 = vpop.f32.mrf.mxu0
      %v467 = vadd.f32 %v426, %v466
      %468 = vmatmul.f32.gmra.mxu0 %v296
      %v469 = vpop.f32.mrf.mxu0
      %v470 = vadd.f32 %v429, %v469
      %471 = vmatmul.f32.gmra.mxu0 %v299
      %v472 = vpop.f32.mrf.mxu0
      %v473 = vadd.f32 %v432, %v472
      %474 = vmatmul.f32.gmra.mxu0 %v302
      %v475 = vpop.f32.mrf.mxu0
      %v476 = vadd.f32 %v435, %v475
      %477 = vmatmul.f32.gmra.mxu0 %v305
      %v478 = vpop.f32.mrf.mxu0
      %v479 = vadd.f32 %v438, %v478
      %480 = vmatmul.f32.gmra.mxu0 %v308
      %v481 = vpop.f32.mrf.mxu0
      %v482 = vadd.f32 %v441, %v481
      %483 = vmatmul.f32.gmra.mxu0 %v311
      %v484 = vpop.f32.mrf.mxu0
      %v485 = vadd.f32 %v444, %v484
      %486 = vmatmul.f32.gmra.mxu0 %v314
      %v487 = vpop.f32.mrf.mxu0
      %v488 = vadd.f32 %v447, %v487
      %489 = vdwg.mxu0
      %v490 = vmax.f32 %v467, 0.0
      %v491 = vmax.f32 %v470, 0.0
      %v492 = vmax.f32 %v473, 0.0
      %v493 = vmax.f32 %v476, 0.0
      %v494 = vmax.f32 %v479, 0.0
      %v495 = vmax.f32 %v482, 0.0
      %v496 = vmax.f32 %v485, 0.0
      %v497 = vmax.f32 %v488, 0.0
      %v498 = vmax.f32 %v490, %v491
      %v499 = vmax.f32 %v492, %v493
      %v500 = vmax.f32 %v494, %v495
      %v501 = vmax.f32 %v496, %v497
      %506 = vrot.lane.b32.xlu0 %v498, 64
      %v507 = vpop.permute.xlu0 %506
      %508 = vrot.lane.b32.xlu0 %v499, 64
      %v509 = vpop.permute.xlu0 %508
      %510 = vrot.lane.b32.xlu0 %v500, 64
      %v511 = vpop.permute.xlu0 %510
      %512 = vrot.lane.b32.xlu0 %v501, 64
      %v513 = vpop.permute.xlu0 %512
      %v518 = vmax.f32 %v498, %v507
      %v519 = vmax.f32 %v499, %v509
      %v520 = vmax.f32 %v500, %v511
      %v521 = vmax.f32 %v501, %v513
      %523 = vrot.lane.b32.xlu0 %v519, 64
      %v524 = vpop.permute.xlu0 %523
      %527 = vrot.lane.b32.xlu0 %v521, 64
      %v528 = vpop.permute.xlu0 %527
      %vm530 = vcmask 523264
      %v531 = vsel %vm530, %v518, %v524
      %v532 = vsel %vm530, %v520, %v528
      %v533 = vld [vmem:[%s283] sm:$0xff]
      %v534 = vld [vmem:[%s283 + $0x8] sm:$0xff]
      %v535 = vld [vmem:[%s283 + $0x10] sm:$0xff]
      %v536 = vld [vmem:[%s283 + $0x18] sm:$0xff]
      %v537 = vld [vmem:[%s283 + $0x20] sm:$0xff]
      %v538 = vld [vmem:[%s283 + $0x28] sm:$0xff]
      %v539 = vld [vmem:[%s283 + $0x30] sm:$0xff]
      %v540 = vld [vmem:[%s283 + $0x38] sm:$0xff]
      %v541 = vld [vmem:[%s283 + $0x40] sm:$0xff]
      %v542 = vld [vmem:[%s283 + $0x48] sm:$0xff]
      %v543 = vld [vmem:[%s283 + $0x50] sm:$0xff]
      %v544 = vld [vmem:[%s283 + $0x58] sm:$0xff]
      %v545 = vld [vmem:[%s283 + $0x60] sm:$0xff]
      %v546 = vld [vmem:[%s283 + $0x68] sm:$0xff]
      %v547 = vld [vmem:[%s283 + $0x70] sm:$0xff]
      %v548 = vld [vmem:[%s283 + $0x78] sm:$0xff]
      %v549 = vld [vmem:[%s283 + $0x80] sm:$0xff]
      %v550 = vld [vmem:[%s283 + $0x88] sm:$0xff]
      %v551 = vld [vmem:[%s283 + $0x90] sm:$0xff]
      %v552 = vld [vmem:[%s283 + $0x98] sm:$0xff]
      %v553 = vld [vmem:[%s283 + $0xa0] sm:$0xff]
      %v554 = vld [vmem:[%s283 + $0xa8] sm:$0xff]
      %v555 = vld [vmem:[%s283 + $0xb0] sm:$0xff]
      %v556 = vld [vmem:[%s283 + $0xb8] sm:$0xff]
      %v557 = vld [vmem:[%s283 + $0xc0] sm:$0xff]
      %v558 = vld [vmem:[%s283 + $0xc8] sm:$0xff]
      %v559 = vld [vmem:[%s283 + $0xd0] sm:$0xff]
      %v560 = vld [vmem:[%s283 + $0xd8] sm:$0xff]
      %v561 = vld [vmem:[%s283 + $0xe0] sm:$0xff]
      %v562 = vld [vmem:[%s283 + $0xe8] sm:$0xff]
      %v563 = vld [vmem:[%s283 + $0xf0] sm:$0xff]
      %v564 = vld [vmem:[%s283 + $0xf8] sm:$0xff]
      %v565 = vld [vmem:[%s286] sm:$0x1]
      %v567 = vperm.slane %v565, 0
      %569 = vmatpush.msra.mxu0 %v548
      %570 = vmatpush.msra.mxu0 %v547
      %571 = vmatpush.msra.mxu0 %v546
      %572 = vmatpush.msra.mxu0 %v545
      %573 = vmatpush.msra.mxu0 %v544
      %574 = vmatpush.msra.mxu0 %v543
      %575 = vmatpush.msra.mxu0 %v542
      %576 = vmatpush.msra.mxu0 %v541
      %577 = vmatpush.msra.mxu0 %v540
      %578 = vmatpush.msra.mxu0 %v539
      %579 = vmatpush.msra.mxu0 %v538
      %580 = vmatpush.msra.mxu0 %v537
      %581 = vmatpush.msra.mxu0 %v536
      %582 = vmatpush.msra.mxu0 %v535
      %583 = vmatpush.msra.mxu0 %v534
      %584 = vmatpush.msra.mxu0 %v533
      %585 = vmatmul.f32.gmra.mxu0 %v531
      %v586 = vpop.f32.mrf.mxu0
      %v587 = vadd.f32 %v567, %v586
      %588 = vdwg.mxu0
      %589 = vmatpush.msra.mxu0 %v564
      %590 = vmatpush.msra.mxu0 %v563
      %591 = vmatpush.msra.mxu0 %v562
      %592 = vmatpush.msra.mxu0 %v561
      %593 = vmatpush.msra.mxu0 %v560
      %594 = vmatpush.msra.mxu0 %v559
      %595 = vmatpush.msra.mxu0 %v558
      %596 = vmatpush.msra.mxu0 %v557
      %597 = vmatpush.msra.mxu0 %v556
      %598 = vmatpush.msra.mxu0 %v555
      %599 = vmatpush.msra.mxu0 %v554
      %600 = vmatpush.msra.mxu0 %v553
      %601 = vmatpush.msra.mxu0 %v552
      %602 = vmatpush.msra.mxu0 %v551
      %603 = vmatpush.msra.mxu0 %v550
      %604 = vmatpush.msra.mxu0 %v549
      %605 = vmatmul.f32.gmra.mxu0 %v532
      %v606 = vpop.f32.mrf.mxu0
      %v607 = vadd.f32 %v587, %v606
      %608 = vdwg.mxu0
      %v609 = vmax.f32 %v607, 0.0
      %vm610 = vcmask 261120
      %611 = vst.msk [vmem:[%s290] sm:$0xff] %vm610, %v609
      %p612 = scmp.lt.s32.totalorder %s16, 1
      %s613 = scalar_select %p612, %s16, 1
      %s614 = smul.addr %s613, 8
      %s615 = scalar_lea.vmem %s5, %s614
      // Predicated region
      $region41: #{multiview_forward.5} parent=39 // pred_check
        %p616 = pneg %p164
      $region42: #{multiview_forward.5} parent=39 // pred_check_branch
        %618 = sbr.rel (%p616) target = $region44
      $region43: #{multiview_forward.5} parent=39 // pred_region
        _
      $region44: #{multiview_forward.5} parent=39 // pred_fallthru
        _
    $region40: #{multiview_forward.5} parent=5 // pred_fallthru
      _
    %p619 = scmp.le.s32.totalorder 2, %s11
    // Predicated region
    $region45: #{multiview_forward.5} parent=5 // pred_check
      %p620 = pneg %p619
    $region46: #{multiview_forward.5} parent=5 // pred_check_branch
      %622 = sbr.rel (%p620) target = $region48
    $region47: #{multiview_forward.5} parent=5 // pred_region
      %s623 = ssub.s32 %s11, 2
      // Predicated region
      $region49: #{multiview_forward.5} parent=47 // pred_check
        %p624 = pneg %p170
      $region50: #{multiview_forward.5} parent=47 // pred_check_branch
        %626 = sbr.rel (%p624) target = $region52
      $region51: #{multiview_forward.5} parent=47 // pred_region
        %p627 = scmp.lt.s32.totalorder %s17, 1
        %s628 = scalar_select %p627, %s17, 1
        %s629 = smul.addr %s628, 8
        %s630 = scalar_lea.vmem %s5, %s629
      $region52: #{multiview_forward.5} parent=47 // pred_fallthru
        _
    $region48: #{multiview_forward.5} parent=5 // pred_fallthru
      _
  $region6: #{multiview_forward.5} parent=0 // loop_footer
    %s15 = sadd.s32 1, %s11
  $region7: #{multiview_forward.5} parent=0 // loop_footer_branch
    %10 = sbr.rel target = $region3
  $region8: #{multiview_forward.5} parent=0 // loop_exit
    _

// kernel: multiview_forward.7
$region0: #{multiview_forward.7}
  #allocation0 [shape = 'u32[]', space=smem, size = 0x4, offset = 0x4, fixed_abs, tag = 'smem constant byte address 0x4 - core index']
  #allocation1 [shape = 'u32[72,128]{1,0:T(1,128)}', space=vmem, size = 0x9000, scoped, tag = 'internal scratch']
  %s0 = inlined_call_operand.vmem [shape: f32[2,8,64], index: 0, kind: input, shape index: {}]
  %s1 = inlined_call_operand.vmem [shape: f32[128,256], index: 1, kind: input, shape index: {}]
  %s2 = inlined_call_operand.vmem [shape: f32[1,256], index: 2, kind: input, shape index: {}]
  %s3 = inlined_call_operand.vmem [shape: f32[256,12], index: 3, kind: input, shape index: {}]
  %s4 = inlined_call_operand.vmem [shape: f32[1,12], index: 4, kind: input, shape index: {}]
  %s5 = inlined_call_operand.vmem [shape: f32[8,12], index: 5, kind: output, shape index: {}]
  %s6 = sld [smem:[#allocation0]]
  $region30: #{multiview_forward.7} parent=0
    _
  %s8 = ssub.s32 1, %s6
  %s9 = scalar_select 0, %s8, %s6
  // Predicated region
  $region2: #{multiview_forward.7} parent=0 // pred_check
    _
  $region3: #{multiview_forward.7} parent=0 // pred_check_branch
    %11 = sbr.rel (0) target = $region5
  $region4: #{multiview_forward.7} parent=0 // pred_region
    _
  $region5: #{multiview_forward.7} parent=0 // pred_fallthru
    _
  // Predicated region
  $region6: #{multiview_forward.7} parent=0 // pred_check
    _
  $region7: #{multiview_forward.7} parent=0 // pred_check_branch
    %13 = sbr.rel (0) target = $region9
  $region8: #{multiview_forward.7} parent=0 // pred_region
    _
  $region9: #{multiview_forward.7} parent=0 // pred_fallthru
    _
  // Predicated region
  $region10: #{multiview_forward.7} parent=0 // pred_check
    _
  $region11: #{multiview_forward.7} parent=0 // pred_check_branch
    %15 = sbr.rel (0) target = $region13
  $region12: #{multiview_forward.7} parent=0 // pred_region
    _
  $region13: #{multiview_forward.7} parent=0 // pred_fallthru
    _
  // Predicated region
  $region14: #{multiview_forward.7} parent=0 // pred_check
    _
  $region15: #{multiview_forward.7} parent=0 // pred_check_branch
    %17 = sbr.rel (0) target = $region17
  $region16: #{multiview_forward.7} parent=0 // pred_region
    _
  $region17: #{multiview_forward.7} parent=0 // pred_fallthru
    _
  // Predicated region
  $region18: #{multiview_forward.7} parent=0 // pred_check
    _
  $region19: #{multiview_forward.7} parent=0 // pred_check_branch
    %19 = sbr.rel (0) target = $region21
  $region20: #{multiview_forward.7} parent=0 // pred_region
    _
  $region21: #{multiview_forward.7} parent=0 // pred_fallthru
    _
  %v20 = vld [vmem:[%s0] sm:$0xff]
  %s21 = scalar_lea.vmem %s0, 8
  %v22 = vld [vmem:[%s21] sm:$0xff]
  %24 = vrot.lane.b32.xlu0 %v22, 64
  %v25 = vpop.permute.xlu0 %24
  %vm27 = vcmask 523264
  %v28 = vsel %vm27, %v20, %v25
  %v29 = vld [vmem:[%s1] sm:$0xff]
  %v30 = vld [vmem:[%s1 + $0x8] sm:$0xff]
  %v31 = vld [vmem:[%s1 + $0x10] sm:$0xff]
  %v32 = vld [vmem:[%s1 + $0x18] sm:$0xff]
  %v33 = vld [vmem:[%s1 + $0x20] sm:$0xff]
  %v34 = vld [vmem:[%s1 + $0x28] sm:$0xff]
  %v35 = vld [vmem:[%s1 + $0x30] sm:$0xff]
  %v36 = vld [vmem:[%s1 + $0x38] sm:$0xff]
  %v37 = vld [vmem:[%s1 + $0x40] sm:$0xff]
  %v38 = vld [vmem:[%s1 + $0x48] sm:$0xff]
  %v39 = vld [vmem:[%s1 + $0x50] sm:$0xff]
  %v40 = vld [vmem:[%s1 + $0x58] sm:$0xff]
  %v41 = vld [vmem:[%s1 + $0x60] sm:$0xff]
  %v42 = vld [vmem:[%s1 + $0x68] sm:$0xff]
  %v43 = vld [vmem:[%s1 + $0x70] sm:$0xff]
  %v44 = vld [vmem:[%s1 + $0x78] sm:$0xff]
  %v45 = vld [vmem:[%s1 + $0x80] sm:$0xff]
  %v46 = vld [vmem:[%s1 + $0x88] sm:$0xff]
  %v47 = vld [vmem:[%s1 + $0x90] sm:$0xff]
  %v48 = vld [vmem:[%s1 + $0x98] sm:$0xff]
  %v49 = vld [vmem:[%s1 + $0xa0] sm:$0xff]
  %v50 = vld [vmem:[%s1 + $0xa8] sm:$0xff]
  %v51 = vld [vmem:[%s1 + $0xb0] sm:$0xff]
  %v52 = vld [vmem:[%s1 + $0xb8] sm:$0xff]
  %v53 = vld [vmem:[%s1 + $0xc0] sm:$0xff]
  %v54 = vld [vmem:[%s1 + $0xc8] sm:$0xff]
  %v55 = vld [vmem:[%s1 + $0xd0] sm:$0xff]
  %v56 = vld [vmem:[%s1 + $0xd8] sm:$0xff]
  %v57 = vld [vmem:[%s1 + $0xe0] sm:$0xff]
  %v58 = vld [vmem:[%s1 + $0xe8] sm:$0xff]
  %v59 = vld [vmem:[%s1 + $0xf0] sm:$0xff]
  %v60 = vld [vmem:[%s1 + $0xf8] sm:$0xff]
  %v61 = vld [vmem:[%s2] sm:$0x3]
  %v63 = vperm.slane %v61, 0
  %v64 = vperm.slane %v61, 1
  %67 = vmatpush.msra.mxu0 %v59
  %68 = vmatpush.msra.mxu0 %v57
  %69 = vmatpush.msra.mxu0 %v55
  %70 = vmatpush.msra.mxu0 %v53
  %71 = vmatpush.msra.mxu0 %v51
  %72 = vmatpush.msra.mxu0 %v49
  %73 = vmatpush.msra.mxu0 %v47
  %74 = vmatpush.msra.mxu0 %v45
  %75 = vmatpush.msra.mxu0 %v43
  %76 = vmatpush.msra.mxu0 %v41
  %77 = vmatpush.msra.mxu0 %v39
  %78 = vmatpush.msra.mxu0 %v37
  %79 = vmatpush.msra.mxu0 %v35
  %80 = vmatpush.msra.mxu0 %v33
  %81 = vmatpush.msra.mxu0 %v31
  %82 = vmatpush.msra.mxu0 %v29
  %83 = vmatmul.f32.gmra.mxu0 %v28
  %v84 = vpop.f32.mrf.mxu0
  %v85 = vadd.f32 %v63, %v84
  %86 = vdwg.mxu0
  %87 = vmatpush.msra.mxu0 %v60
  %88 = vmatpush.msra.mxu0 %v58
  %89 = vmatpush.msra.mxu0 %v56
  %90 = vmatpush.msra.mxu0 %v54
  %91 = vmatpush.msra.mxu0 %v52
  %92 = vmatpush.msra.mxu0 %v50
  %93 = vmatpush.msra.mxu0 %v48
  %94 = vmatpush.msra.mxu0 %v46
  %95 = vmatpush.msra.mxu0 %v44
  %96 = vmatpush.msra.mxu0 %v42
  %97 = vmatpush.msra.mxu0 %v40
  %98 = vmatpush.msra.mxu0 %v38
  %99 = vmatpush.msra.mxu0 %v36
  %100 = vmatpush.msra.mxu0 %v34
  %101 = vmatpush.msra.mxu0 %v32
  %102 = vmatpush.msra.mxu0 %v30
  %103 = vmatmul.f32.gmra.mxu0 %v28
  %v104 = vpop.f32.mrf.mxu0
  %v105 = vadd.f32 %v64, %v104
  %106 = vdwg.mxu0
  %v107 = vmax.f32 %v85, 0.0
  %v108 = vmax.f32 %v105, 0.0
  %v109 = vld [vmem:[%s3] sm:$0xff]
  %v110 = vld [vmem:[%s3 + $0x8] sm:$0xff]
  %v111 = vld [vmem:[%s3 + $0x10] sm:$0xff]
  %v112 = vld [vmem:[%s3 + $0x18] sm:$0xff]
  %v113 = vld [vmem:[%s3 + $0x20] sm:$0xff]
  %v114 = vld [vmem:[%s3 + $0x28] sm:$0xff]
  %v115 = vld [vmem:[%s3 + $0x30] sm:$0xff]
  %v116 = vld [vmem:[%s3 + $0x38] sm:$0xff]
  %v117 = vld [vmem:[%s3 + $0x40] sm:$0xff]
  %v118 = vld [vmem:[%s3 + $0x48] sm:$0xff]
  %v119 = vld [vmem:[%s3 + $0x50] sm:$0xff]
  %v120 = vld [vmem:[%s3 + $0x58] sm:$0xff]
  %v121 = vld [vmem:[%s3 + $0x60] sm:$0xff]
  %v122 = vld [vmem:[%s3 + $0x68] sm:$0xff]
  %v123 = vld [vmem:[%s3 + $0x70] sm:$0xff]
  %v124 = vld [vmem:[%s3 + $0x78] sm:$0xff]
  %v125 = vld [vmem:[%s3 + $0x80] sm:$0xff]
  %v126 = vld [vmem:[%s3 + $0x88] sm:$0xff]
  %v127 = vld [vmem:[%s3 + $0x90] sm:$0xff]
  %v128 = vld [vmem:[%s3 + $0x98] sm:$0xff]
  %v129 = vld [vmem:[%s3 + $0xa0] sm:$0xff]
  %v130 = vld [vmem:[%s3 + $0xa8] sm:$0xff]
  %v131 = vld [vmem:[%s3 + $0xb0] sm:$0xff]
  %v132 = vld [vmem:[%s3 + $0xb8] sm:$0xff]
  %v133 = vld [vmem:[%s3 + $0xc0] sm:$0xff]
  %v134 = vld [vmem:[%s3 + $0xc8] sm:$0xff]
  %v135 = vld [vmem:[%s3 + $0xd0] sm:$0xff]
  %v136 = vld [vmem:[%s3 + $0xd8] sm:$0xff]
  %v137 = vld [vmem:[%s3 + $0xe0] sm:$0xff]
  %v138 = vld [vmem:[%s3 + $0xe8] sm:$0xff]
  %v139 = vld [vmem:[%s3 + $0xf0] sm:$0xff]
  %v140 = vld [vmem:[%s3 + $0xf8] sm:$0xff]
  %v141 = vld [vmem:[%s4] sm:$0x1]
  %v143 = vperm.slane %v141, 0
  %145 = vmatpush.msra.mxu0 %v124
  %146 = vmatpush.msra.mxu0 %v123
  %147 = vmatpush.msra.mxu0 %v122
  %148 = vmatpush.msra.mxu0 %v121
  %149 = vmatpush.msra.mxu0 %v120
  %150 = vmatpush.msra.mxu0 %v119
  %151 = vmatpush.msra.mxu0 %v118
  %152 = vmatpush.msra.mxu0 %v117
  %153 = vmatpush.msra.mxu0 %v116
  %154 = vmatpush.msra.mxu0 %v115
  %155 = vmatpush.msra.mxu0 %v114
  %156 = vmatpush.msra.mxu0 %v113
  %157 = vmatpush.msra.mxu0 %v112
  %158 = vmatpush.msra.mxu0 %v111
  %159 = vmatpush.msra.mxu0 %v110
  %160 = vmatpush.msra.mxu0 %v109
  %161 = vmatmul.f32.gmra.mxu0 %v107
  %v162 = vpop.f32.mrf.mxu0
  %v163 = vadd.f32 %v143, %v162
  %164 = vdwg.mxu0
  %165 = vmatpush.msra.mxu0 %v140
  %166 = vmatpush.msra.mxu0 %v139
  %167 = vmatpush.msra.mxu0 %v138
  %168 = vmatpush.msra.mxu0 %v137
  %169 = vmatpush.msra.mxu0 %v136
  %170 = vmatpush.msra.mxu0 %v135
  %171 = vmatpush.msra.mxu0 %v134
  %172 = vmatpush.msra.mxu0 %v133
  %173 = vmatpush.msra.mxu0 %v132
  %174 = vmatpush.msra.mxu0 %v131
  %175 = vmatpush.msra.mxu0 %v130
  %176 = vmatpush.msra.mxu0 %v129
  %177 = vmatpush.msra.mxu0 %v128
  %178 = vmatpush.msra.mxu0 %v127
  %179 = vmatpush.msra.mxu0 %v126
  %180 = vmatpush.msra.mxu0 %v125
  %181 = vmatmul.f32.gmra.mxu0 %v108
  %v182 = vpop.f32.mrf.mxu0
  %v183 = vadd.f32 %v163, %v182
  %184 = vdwg.mxu0
  %vm185 = vcmask 97280
  %186 = vst.msk [vmem:[%s5] sm:$0xff] %vm185, %v183
  // Predicated region
  $region22: #{multiview_forward.7} parent=0 // pred_check
    _
  $region23: #{multiview_forward.7} parent=0 // pred_check_branch
    %188 = sbr.rel (0) target = $region25
  $region24: #{multiview_forward.7} parent=0 // pred_region
    _
  $region25: #{multiview_forward.7} parent=0 // pred_fallthru
    _
  // Predicated region
  $region26: #{multiview_forward.7} parent=0 // pred_check
    _
  $region27: #{multiview_forward.7} parent=0 // pred_check_branch
    %190 = sbr.rel (0) target = $region29
  $region28: #{multiview_forward.7} parent=0 // pred_region
    _
  $region29: #{multiview_forward.7} parent=0 // pred_fallthru
    _

// kernel: multiview_forward.6
$region0: #{multiview_forward.6}
  #allocation0 [shape = 'u32[]', space=smem, size = 0x4, offset = 0x4, fixed_abs, tag = 'smem constant byte address 0x4 - core index']
  #allocation1 [shape = 'u32[72,128]{1,0:T(1,128)}', space=vmem, size = 0x9000, scoped, tag = 'internal scratch']
  #allocation2 [shape = 'f32[8,64]{1,0:T(8,128)}', space=vmem, size = 0x1000, scoped, tag = 'scratch operand']
  %s0 = inlined_call_operand.vmem [shape: f32[2,8,32], index: 0, kind: input, shape index: {}]
  %s1 = inlined_call_operand.vmem [shape: f32[2,2,32,96], index: 1, kind: input, shape index: {}]
  %s2 = inlined_call_operand.vmem [shape: f32[2,2,32,96], index: 2, kind: input, shape index: {}]
  %s3 = inlined_call_operand.vmem [shape: f32[2,2,1,96], index: 3, kind: input, shape index: {}]
  %s4 = inlined_call_operand.vmem [shape: f32[2,2,1,96], index: 4, kind: input, shape index: {}]
  %s5 = inlined_call_operand.vmem [shape: f32[2,2,64,96], index: 5, kind: input, shape index: {}]
  %s6 = inlined_call_operand.vmem [shape: f32[2,2,32,96], index: 6, kind: input, shape index: {}]
  %s7 = inlined_call_operand.vmem [shape: f32[2,2,1,96], index: 7, kind: input, shape index: {}]
  %s8 = inlined_call_operand.vmem [shape: f32[2,2,1,96], index: 8, kind: input, shape index: {}]
  %s9 = inlined_call_operand.vmem [shape: f32[2,8,64], index: 9, kind: output, shape index: {}]
  %s10 = sld [smem:[#allocation0]]
  $region69: #{multiview_forward.6} parent=0
    _
  %s12 = ssub.s32 1, %s10
  %s13 = scalar_select 0, %s12, %s10
  loop: start=0, step=1, limit=4
  $region2: #{multiview_forward.6} parent=0 // loop_pre_header
    _
  $region3: #{multiview_forward.6} parent=0 // loop_header
    %s15 = sphi 0, %s19
    %p16 = scmp.ge.s32.totalorder %s15, 4
    %s25 = sphi 0, %s27
    %s28 = sphi 0, %s25
    %s29 = sphi 0, %s28
    %s45 = sphi 0, %s29
    %s51 = sphi 0, %s53
    %s54 = sphi 0, %s51
    %s55 = sphi 0, %s54
    %s71 = sphi 0, %s55
    %s77 = sphi 0, %s79
    %s80 = sphi 0, %s77
    %s81 = sphi 0, %s80
    %s97 = sphi 0, %s81
    %s103 = sphi 0, %s105
    %s106 = sphi 0, %s103
    %s107 = sphi 0, %s106
    %s123 = sphi 0, %s107
    %s129 = sphi 0, %s131
    %s132 = sphi 0, %s129
    %s133 = sphi 0, %s132
    %s149 = sphi 0, %s133
    %s155 = sphi 0, %s157
    %s158 = sphi 0, %s155
    %s159 = sphi 0, %s158
    %s175 = sphi 0, %s159
    %s181 = sphi 0, %s183
    %s184 = sphi 0, %s181
    %s185 = sphi 0, %s184
    %s201 = sphi 0, %s185
    %s207 = sphi 0, %s209
    %s210 = sphi 0, %s207
    %s211 = sphi 0, %s210
    %s227 = sphi 0, %s211
    %s233 = sphi 0, %s235
    %s236 = sphi 0, %s233
    %s237 = sphi 0, %s236
    %s253 = sphi 0, %s237
    %s259 = sphi 0, %s261
    %s262 = sphi 0, %s259
    %s263 = sphi 0, %s262
    %s279 = sphi 0, %s263
  $region4: #{multiview_forward.6} parent=0 // loop_header_branch
    %18 = sbr.rel (%p16) target = $region8
  $region5: #{multiview_forward.6} parent=0 // loop_body
    %s20 = ssub.s32 %s15, 1
    %s21 = ssub.s32 %s15, 2
    %s22 = sadd.s32 %s15, 1
    %s23 = ssub.s32 %s15, %s22
    %p24 = scmp.eq.s32.totalorder %s23, 0
    %s26 = sadd.s32 %s25, 1
    %s27 = scalar_select %p24, %s25, %s26
    %p30 = pneg %p24
    %p31 = scmp.eq.s32.totalorder %s15, 1
    %p32 = por %p30, %p31
    %p33 = scmp.ne.s32.totalorder %s25, %s28
    %p34 = scmp.eq.s32.totalorder %s15, 0
    %p35 = por %p33, %p34
    %p36 = scmp.ne.s32.totalorder %s25, %s28
    %p37 = scmp.eq.s32.totalorder %s20, 1
    %p38 = por %p36, %p37
    %p39 = scmp.ne.s32.totalorder %s28, %s29
    %p40 = scmp.eq.s32.totalorder %s20, 0
    %p41 = por %p39, %p40
    %p42 = scmp.ne.s32.totalorder %s28, %s29
    %p43 = scmp.eq.s32.totalorder %s21, 1
    %p44 = por %p42, %p43
    %p46 = scmp.ne.s32.totalorder %s29, %s45
    %p47 = scmp.eq.s32.totalorder %s21, 0
    %p48 = por %p46, %p47
    %s49 = ssub.s32 %s15, %s22
    %p50 = scmp.eq.s32.totalorder %s49, 0
    %s52 = sadd.s32 %s51, 1
    %s53 = scalar_select %p50, %s51, %s52
    %p56 = pneg %p50
    %p57 = scmp.eq.s32.totalorder %s15, 1
    %p58 = por %p56, %p57
    %p59 = scmp.ne.s32.totalorder %s51, %s54
    %p60 = scmp.eq.s32.totalorder %s15, 0
    %p61 = por %p59, %p60
    %p62 = scmp.ne.s32.totalorder %s51, %s54
    %p63 = scmp.eq.s32.totalorder %s20, 1
    %p64 = por %p62, %p63
    %p65 = scmp.ne.s32.totalorder %s54, %s55
    %p66 = scmp.eq.s32.totalorder %s20, 0
    %p67 = por %p65, %p66
    %p68 = scmp.ne.s32.totalorder %s54, %s55
    %p69 = scmp.eq.s32.totalorder %s21, 1
    %p70 = por %p68, %p69
    %p72 = scmp.ne.s32.totalorder %s55, %s71
    %p73 = scmp.eq.s32.totalorder %s21, 0
    %p74 = por %p72, %p73
    %s75 = ssub.s32 %s15, %s22
    %p76 = scmp.eq.s32.totalorder %s75, 0
    %s78 = sadd.s32 %s77, 1
    %s79 = scalar_select %p76, %s77, %s78
    %p82 = pneg %p76
    %p83 = scmp.eq.s32.totalorder %s15, 1
    %p84 = por %p82, %p83
    %p85 = scmp.ne.s32.totalorder %s77, %s80
    %p86 = scmp.eq.s32.totalorder %s15, 0
    %p87 = por %p85, %p86
    %p88 = scmp.ne.s32.totalorder %s77, %s80
    %p89 = scmp.eq.s32.totalorder %s20, 1
    %p90 = por %p88, %p89
    %p91 = scmp.ne.s32.totalorder %s80, %s81
    %p92 = scmp.eq.s32.totalorder %s20, 0
    %p93 = por %p91, %p92
    %p94 = scmp.ne.s32.totalorder %s80, %s81
    %p95 = scmp.eq.s32.totalorder %s21, 1
    %p96 = por %p94, %p95
    %p98 = scmp.ne.s32.totalorder %s81, %s97
    %p99 = scmp.eq.s32.totalorder %s21, 0
    %p100 = por %p98, %p99
    %s101 = ssub.s32 %s15, %s22
    %p102 = scmp.eq.s32.totalorder %s101, 0
    %s104 = sadd.s32 %s103, 1
    %s105 = scalar_select %p102, %s103, %s104
    %p108 = pneg %p102
    %p109 = scmp.eq.s32.totalorder %s15, 1
    %p110 = por %p108, %p109
    %p111 = scmp.ne.s32.totalorder %s103, %s106
    %p112 = scmp.eq.s32.totalorder %s15, 0
    %p113 = por %p111, %p112
    %p114 = scmp.ne.s32.totalorder %s103, %s106
    %p115 = scmp.eq.s32.totalorder %s20, 1
    %p116 = por %p114, %p115
    %p117 = scmp.ne.s32.totalorder %s106, %s107
    %p118 = scmp.eq.s32.totalorder %s20, 0
    %p119 = por %p117, %p118
    %p120 = scmp.ne.s32.totalorder %s106, %s107
    %p121 = scmp.eq.s32.totalorder %s21, 1
    %p122 = por %p120, %p121
    %p124 = scmp.ne.s32.totalorder %s107, %s123
    %p125 = scmp.eq.s32.totalorder %s21, 0
    %p126 = por %p124, %p125
    %s127 = ssub.s32 %s15, %s22
    %p128 = scmp.eq.s32.totalorder %s127, 0
    %s130 = sadd.s32 %s129, 1
    %s131 = scalar_select %p128, %s129, %s130
    %p134 = pneg %p128
    %p135 = scmp.eq.s32.totalorder %s15, 1
    %p136 = por %p134, %p135
    %p137 = scmp.ne.s32.totalorder %s129, %s132
    %p138 = scmp.eq.s32.totalorder %s15, 0
    %p139 = por %p137, %p138
    %p140 = scmp.ne.s32.totalorder %s129, %s132
    %p141 = scmp.eq.s32.totalorder %s20, 1
    %p142 = por %p140, %p141
    %p143 = scmp.ne.s32.totalorder %s132, %s133
    %p144 = scmp.eq.s32.totalorder %s20, 0
    %p145 = por %p143, %p144
    %p146 = scmp.ne.s32.totalorder %s132, %s133
    %p147 = scmp.eq.s32.totalorder %s21, 1
    %p148 = por %p146, %p147
    %p150 = scmp.ne.s32.totalorder %s133, %s149
    %p151 = scmp.eq.s32.totalorder %s21, 0
    %p152 = por %p150, %p151
    %s153 = ssub.s32 %s15, %s22
    %p154 = scmp.eq.s32.totalorder %s153, 0
    %s156 = sadd.s32 %s155, 1
    %s157 = scalar_select %p154, %s155, %s156
    %p160 = pneg %p154
    %p161 = scmp.eq.s32.totalorder %s15, 1
    %p162 = por %p160, %p161
    %p163 = scmp.ne.s32.totalorder %s155, %s158
    %p164 = scmp.eq.s32.totalorder %s15, 0
    %p165 = por %p163, %p164
    %p166 = scmp.ne.s32.totalorder %s155, %s158
    %p167 = scmp.eq.s32.totalorder %s20, 1
    %p168 = por %p166, %p167
    %p169 = scmp.ne.s32.totalorder %s158, %s159
    %p170 = scmp.eq.s32.totalorder %s20, 0
    %p171 = por %p169, %p170
    %p172 = scmp.ne.s32.totalorder %s158, %s159
    %p173 = scmp.eq.s32.totalorder %s21, 1
    %p174 = por %p172, %p173
    %p176 = scmp.ne.s32.totalorder %s159, %s175
    %p177 = scmp.eq.s32.totalorder %s21, 0
    %p178 = por %p176, %p177
    %s179 = ssub.s32 %s15, %s22
    %p180 = scmp.eq.s32.totalorder %s179, 0
    %s182 = sadd.s32 %s181, 1
    %s183 = scalar_select %p180, %s181, %s182
    %p186 = pneg %p180
    %p187 = scmp.eq.s32.totalorder %s15, 1
    %p188 = por %p186, %p187
    %p189 = scmp.ne.s32.totalorder %s181, %s184
    %p190 = scmp.eq.s32.totalorder %s15, 0
    %p191 = por %p189, %p190
    %p192 = scmp.ne.s32.totalorder %s181, %s184
    %p193 = scmp.eq.s32.totalorder %s20, 1
    %p194 = por %p192, %p193
    %p195 = scmp.ne.s32.totalorder %s184, %s185
    %p196 = scmp.eq.s32.totalorder %s20, 0
    %p197 = por %p195, %p196
    %p198 = scmp.ne.s32.totalorder %s184, %s185
    %p199 = scmp.eq.s32.totalorder %s21, 1
    %p200 = por %p198, %p199
    %p202 = scmp.ne.s32.totalorder %s185, %s201
    %p203 = scmp.eq.s32.totalorder %s21, 0
    %p204 = por %p202, %p203
    %s205 = ssub.s32 %s15, %s22
    %p206 = scmp.eq.s32.totalorder %s205, 0
    %s208 = sadd.s32 %s207, 1
    %s209 = scalar_select %p206, %s207, %s208
    %p212 = pneg %p206
    %p213 = scmp.eq.s32.totalorder %s15, 1
    %p214 = por %p212, %p213
    %p215 = scmp.ne.s32.totalorder %s207, %s210
    %p216 = scmp.eq.s32.totalorder %s15, 0
    %p217 = por %p215, %p216
    %p218 = scmp.ne.s32.totalorder %s207, %s210
    %p219 = scmp.eq.s32.totalorder %s20, 1
    %p220 = por %p218, %p219
    %p221 = scmp.ne.s32.totalorder %s210, %s211
    %p222 = scmp.eq.s32.totalorder %s20, 0
    %p223 = por %p221, %p222
    %p224 = scmp.ne.s32.totalorder %s210, %s211
    %p225 = scmp.eq.s32.totalorder %s21, 1
    %p226 = por %p224, %p225
    %p228 = scmp.ne.s32.totalorder %s211, %s227
    %p229 = scmp.eq.s32.totalorder %s21, 0
    %p230 = por %p228, %p229
    %s231 = ssub.s32 %s15, %s22
    %p232 = scmp.eq.s32.totalorder %s231, 0
    %s234 = sadd.s32 %s233, 1
    %s235 = scalar_select %p232, %s233, %s234
    %p238 = pneg %p232
    %p239 = scmp.eq.s32.totalorder %s15, 1
    %p240 = por %p238, %p239
    %p241 = scmp.ne.s32.totalorder %s233, %s236
    %p242 = scmp.eq.s32.totalorder %s15, 0
    %p243 = por %p241, %p242
    %p244 = scmp.ne.s32.totalorder %s233, %s236
    %p245 = scmp.eq.s32.totalorder %s20, 1
    %p246 = por %p244, %p245
    %p247 = scmp.ne.s32.totalorder %s236, %s237
    %p248 = scmp.eq.s32.totalorder %s20, 0
    %p249 = por %p247, %p248
    %p250 = scmp.ne.s32.totalorder %s236, %s237
    %p251 = scmp.eq.s32.totalorder %s21, 1
    %p252 = por %p250, %p251
    %p254 = scmp.ne.s32.totalorder %s237, %s253
    %p255 = scmp.eq.s32.totalorder %s21, 0
    %p256 = por %p254, %p255
    %s257 = ssub.s32 %s15, %s22
    %p258 = scmp.eq.s32.totalorder %s257, 0
    %s260 = sadd.s32 %s259, 1
    %s261 = scalar_select %p258, %s259, %s260
    %p264 = pneg %p258
    %p265 = scmp.eq.s32.totalorder %s15, 1
    %p266 = por %p264, %p265
    %p267 = scmp.ne.s32.totalorder %s259, %s262
    %p268 = scmp.eq.s32.totalorder %s15, 0
    %p269 = por %p267, %p268
    %p270 = scmp.ne.s32.totalorder %s259, %s262
    %p271 = scmp.eq.s32.totalorder %s20, 1
    %p272 = por %p270, %p271
    %p273 = scmp.ne.s32.totalorder %s262, %s263
    %p274 = scmp.eq.s32.totalorder %s20, 0
    %p275 = por %p273, %p274
    %p276 = scmp.ne.s32.totalorder %s262, %s263
    %p277 = scmp.eq.s32.totalorder %s21, 1
    %p278 = por %p276, %p277
    %p280 = scmp.ne.s32.totalorder %s263, %s279
    %p281 = scmp.eq.s32.totalorder %s21, 0
    %p282 = por %p280, %p281
    %p283 = scmp.le.s32.totalorder 1, %s15
    %p284 = scmp.lt.s32.totalorder %s15, 3
    %p285 = pnand %p283, %p284
    %p286 = pneg %p285
    // Predicated region
    $region9: #{multiview_forward.6} parent=5 // pred_check
      _
    $region10: #{multiview_forward.6} parent=5 // pred_check_branch
      %288 = sbr.rel (%p285) target = $region12
    $region11: #{multiview_forward.6} parent=5 // pred_region
      %s289 = ssub.s32 %s15, 1
    $region12: #{multiview_forward.6} parent=5 // pred_fallthru
      _
    %p290 = scmp.lt.s32.totalorder %s15, 2
    // Predicated region
    $region13: #{multiview_forward.6} parent=5 // pred_check
      %p291 = pneg %p290
    $region14: #{multiview_forward.6} parent=5 // pred_check_branch
      %293 = sbr.rel (%p291) target = $region16
    $region15: #{multiview_forward.6} parent=5 // pred_region
      // Predicated region
      $region17: #{multiview_forward.6} parent=15 // pred_check
        %p294 = pneg %p35
      $region18: #{multiview_forward.6} parent=15 // pred_check_branch
        %296 = sbr.rel (%p294) target = $region20
      $region19: #{multiview_forward.6} parent=15 // pred_region
        %p297 = scmp.lt.s32.totalorder %s15, 1
        %s298 = scalar_select %p297, %s15, 1
        %s299 = smul.addr %s298, 8
        %s300 = scalar_lea.vmem %s0, %s299
      $region20: #{multiview_forward.6} parent=15 // pred_fallthru
        _
      // Predicated region
      $region21: #{multiview_forward.6} parent=15 // pred_check
        %p301 = pneg %p61
      $region22: #{multiview_forward.6} parent=15 // pred_check_branch
        %303 = sbr.rel (%p301) target = $region24
      $region23: #{multiview_forward.6} parent=15 // pred_region
        %p304 = scmp.lt.s32.totalorder %s15, 1
        %s305 = scalar_select %p304, %s15, 1
        %s306 = smul.addr %s305, 8
        %s307 = smul.addr %s306, 8
        %s308 = scalar_lea.vmem %s1, %s307
      $region24: #{multiview_forward.6} parent=15 // pred_fallthru
        _
      // Predicated region
      $region25: #{multiview_forward.6} parent=15 // pred_check
        %p309 = pneg %p87
      $region26: #{multiview_forward.6} parent=15 // pred_check_branch
        %311 = sbr.rel (%p309) target = $region28
      $region27: #{multiview_forward.6} parent=15 // pred_region
        %p312 = scmp.lt.s32.totalorder %s15, 1
        %s313 = scalar_select %p312, %s15, 1
        %s314 = smul.addr %s313, 8
        %s315 = smul.addr %s314, 8
        %s316 = scalar_lea.vmem %s2, %s315
      $region28: #{multiview_forward.6} parent=15 // pred_fallthru
        _
      // Predicated region
      $region29: #{multiview_forward.6} parent=15 // pred_check
        %p317 = pneg %p113
      $region30: #{multiview_forward.6} parent=15 // pred_check_branch
        %319 = sbr.rel (%p317) target = $region32
      $region31: #{multiview_forward.6} parent=15 // pred_region
        %p320 = scmp.lt.s32.totalorder %s15, 1
        %s321 = scalar_select %p320, %s15, 1
        %s322 = smul.addr %s321, 2
        %s323 = scalar_lea.vmem %s3, %s322
      $region32: #{multiview_forward.6} parent=15 // pred_fallthru
        _
      // Predicated region
      $region33: #{multiview_forward.6} parent=15 // pred_check
        %p324 = pneg %p139
      $region34: #{multiview_forward.6} parent=15 // pred_check_branch
        %326 = sbr.rel (%p324) target = $region36
      $region35: #{multiview_forward.6} parent=15 // pred_region
        %p327 = scmp.lt.s32.totalorder %s15, 1
        %s328 = scalar_select %p327, %s15, 1
        %s329 = smul.addr %s328, 2
        %s330 = scalar_lea.vmem %s4, %s329
      $region36: #{multiview_forward.6} parent=15 // pred_fallthru
        _
      // Predicated region
      $region37: #{multiview_forward.6} parent=15 // pred_check
        %p331 = pneg %p165
      $region38: #{multiview_forward.6} parent=15 // pred_check_branch
        %333 = sbr.rel (%p331) target = $region40
      $region39: #{multiview_forward.6} parent=15 // pred_region
        %p334 = scmp.lt.s32.totalorder %s15, 1
        %s335 = scalar_select %p334, %s15, 1
        %s336 = smul.addr %s335, 16
        %s337 = smul.addr %s336, 8
        %s338 = scalar_lea.vmem %s5, %s337
      $region40: #{multiview_forward.6} parent=15 // pred_fallthru
        _
      // Predicated region
      $region41: #{multiview_forward.6} parent=15 // pred_check
        %p339 = pneg %p191
      $region42: #{multiview_forward.6} parent=15 // pred_check_branch
        %341 = sbr.rel (%p339) target = $region44
      $region43: #{multiview_forward.6} parent=15 // pred_region
        %p342 = scmp.lt.s32.totalorder %s15, 1
        %s343 = scalar_select %p342, %s15, 1
        %s344 = smul.addr %s343, 8
        %s345 = smul.addr %s344, 8
        %s346 = scalar_lea.vmem %s6, %s345
      $region44: #{multiview_forward.6} parent=15 // pred_fallthru
        _
      // Predicated region
      $region45: #{multiview_forward.6} parent=15 // pred_check
        %p347 = pneg %p217
      $region46: #{multiview_forward.6} parent=15 // pred_check_branch
        %349 = sbr.rel (%p347) target = $region48
      $region47: #{multiview_forward.6} parent=15 // pred_region
        %p350 = scmp.lt.s32.totalorder %s15, 1
        %s351 = scalar_select %p350, %s15, 1
        %s352 = smul.addr %s351, 2
        %s353 = scalar_lea.vmem %s7, %s352
      $region48: #{multiview_forward.6} parent=15 // pred_fallthru
        _
      // Predicated region
      $region49: #{multiview_forward.6} parent=15 // pred_check
        %p354 = pneg %p243
      $region50: #{multiview_forward.6} parent=15 // pred_check_branch
        %356 = sbr.rel (%p354) target = $region52
      $region51: #{multiview_forward.6} parent=15 // pred_region
        %p357 = scmp.lt.s32.totalorder %s15, 1
        %s358 = scalar_select %p357, %s15, 1
        %s359 = smul.addr %s358, 2
        %s360 = scalar_lea.vmem %s8, %s359
      $region52: #{multiview_forward.6} parent=15 // pred_fallthru
        _
    $region16: #{multiview_forward.6} parent=5 // pred_fallthru
      _
    %p361 = scmp.le.s32.totalorder 1, %s15
    %p362 = scmp.lt.s32.totalorder %s15, 3
    %p363 = pnand %p361, %p362
    %p364 = pneg %p363
    // Predicated region
    $region53: #{multiview_forward.6} parent=5 // pred_check
      _
    $region54: #{multiview_forward.6} parent=5 // pred_check_branch
      %366 = sbr.rel (%p363) target = $region56
    $region55: #{multiview_forward.6} parent=5 // pred_region
      %s367 = ssub.s32 %s15, 1
      %p368 = scmp.lt.s32.totalorder %s20, 1
      %s369 = scalar_select %p368, %s20, 1
      %s370 = smul.addr %s369, 8
      %s371 = scalar_lea.vmem %s0, %s370
      %p372 = pneg %p41
      %p373 = pneg %p38
      %p374 = scmp.lt.s32.totalorder %s20, 1
      %s375 = scalar_select %p374, %s20, 1
      %s376 = smul.addr %s375, 8
      %s377 = smul.addr %s376, 8
      %s378 = scalar_lea.vmem %s1, %s377
      %p379 = pneg %p67
      %p380 = pneg %p64
      %p381 = scmp.lt.s32.totalorder %s20, 1
      %s382 = scalar_select %p381, %s20, 1
      %s383 = smul.addr %s382, 8
      %s384 = smul.addr %s383, 8
      %s385 = scalar_lea.vmem %s2, %s384
      %p386 = pneg %p93
      %p387 = pneg %p90
      %p388 = scmp.lt.s32.totalorder %s20, 1
      %s389 = scalar_select %p388, %s20, 1
      %s390 = smul.addr %s389, 2
      %s391 = scalar_lea.vmem %s3, %s390
      %p392 = pneg %p119
      %p393 = pneg %p116
      %p394 = scmp.lt.s32.totalorder %s20, 1
      %s395 = scalar_select %p394, %s20, 1
      %s396 = smul.addr %s395, 2
      %s397 = scalar_lea.vmem %s4, %s396
      %p398 = pneg %p145
      %p399 = pneg %p142
      %p400 = scmp.lt.s32.totalorder %s20, 1
      %s401 = scalar_select %p400, %s20, 1
      %s402 = smul.addr %s401, 16
      %s403 = smul.addr %s402, 8
      %s404 = scalar_lea.vmem %s5, %s403
      %p405 = pneg %p171
      %p406 = pneg %p168
      %p407 = scmp.lt.s32.totalorder %s20, 1
      %s408 = scalar_select %p407, %s20, 1
      %s409 = smul.addr %s408, 8
      %s410 = smul.addr %s409, 8
      %s411 = scalar_lea.vmem %s6, %s410
      %p412 = pneg %p197
      %p413 = pneg %p194
      %p414 = scmp.lt.s32.totalorder %s20, 1
      %s415 = scalar_select %p414, %s20, 1
      %s416 = smul.addr %s415, 2
      %s417 = scalar_lea.vmem %s7, %s416
      %p418 = pneg %p223
      %p419 = pneg %p220
      %p420 = scmp.lt.s32.totalorder %s20, 1
      %s421 = scalar_select %p420, %s20, 1
      %s422 = smul.addr %s421, 2
      %s423 = scalar_lea.vmem %s8, %s422
      %p424 = pneg %p249
      %p425 = pneg %p246
      %p426 = pneg %p275
      %p427 = pneg %p272
      %p428 = scmp.lt.s32.totalorder %s20, 1
      %s429 = scalar_select %p428, %s20, 1
      %s430 = smul.addr %s429, 8
      %s431 = scalar_lea.vmem %s9, %s430
      %p432 = scmp.lt.s32.totalorder %s20, 1
      %s433 = scalar_select %p432, %s20, 1
      %s434 = smul.addr %s433, 8
      %s435 = scalar_lea.vmem %s0, %s434
      %p436 = scmp.lt.s32.totalorder %s20, 1
      %s437 = scalar_select %p436, %s20, 1
      %s438 = smul.addr %s437, 8
      %s439 = smul.addr %s438, 8
      %s440 = scalar_lea.vmem %s1, %s439
      %p441 = scmp.lt.s32.totalorder %s20, 1
      %s442 = scalar_select %p441, %s20, 1
      %s443 = smul.addr %s442, 8
      %s444 = smul.addr %s443, 8
      %s445 = scalar_lea.vmem %s2, %s444
      %p446 = scmp.lt.s32.totalorder %s20, 1
      %s447 = scalar_select %p446, %s20, 1
      %s448 = smul.addr %s447, 2
      %s449 = scalar_lea.vmem %s3, %s448
      %p450 = scmp.lt.s32.totalorder %s20, 1
      %s451 = scalar_select %p450, %s20, 1
      %s452 = smul.addr %s451, 2
      %s453 = scalar_lea.vmem %s4, %s452
      %p454 = scmp.lt.s32.totalorder %s20, 1
      %s455 = scalar_select %p454, %s20, 1
      %s456 = smul.addr %s455, 16
      %s457 = smul.addr %s456, 8
      %s458 = scalar_lea.vmem %s5, %s457
      %p459 = scmp.lt.s32.totalorder %s20, 1
      %s460 = scalar_select %p459, %s20, 1
      %s461 = smul.addr %s460, 8
      %s462 = smul.addr %s461, 8
      %s463 = scalar_lea.vmem %s6, %s462
      %p464 = scmp.lt.s32.totalorder %s20, 1
      %s465 = scalar_select %p464, %s20, 1
      %s466 = smul.addr %s465, 2
      %s467 = scalar_lea.vmem %s7, %s466
      %p468 = scmp.lt.s32.totalorder %s20, 1
      %s469 = scalar_select %p468, %s20, 1
      %s470 = smul.addr %s469, 2
      %s471 = scalar_lea.vmem %s8, %s470
      %p472 = scmp.lt.s32.totalorder %s20, 1
      %s473 = scalar_select %p472, %s20, 1
      %s474 = smul.addr %s473, 8
      %s475 = scalar_lea.vmem %s9, %s474
      %v476 = vld [vmem:[%s435] sm:$0xff]
      %v477 = vld [vmem:[%s440] sm:$0xff]
      %v478 = vld [vmem:[%s440 + $0x8] sm:$0xff]
      %v479 = vld [vmem:[%s440 + $0x10] sm:$0xff]
      %v480 = vld [vmem:[%s440 + $0x18] sm:$0xff]
      %v481 = vld [vmem:[%s445] sm:$0xff]
      %v482 = vld [vmem:[%s445 + $0x8] sm:$0xff]
      %v483 = vld [vmem:[%s445 + $0x10] sm:$0xff]
      %v484 = vld [vmem:[%s445 + $0x18] sm:$0xff]
      %v485 = vld [vmem:[%s449] sm:$0x1]
      %v486 = vld [vmem:[%s453] sm:$0x1]
      %v488 = vperm.slane %v485, 0
      %vm490 = vcmask 261120
      %v492 = vsel %vm490, %v476, 0
      %494 = vmatpush.msra.mxu0 0.0
      %495 = vmatpush.msra.mxu0 0.0
      %496 = vmatpush.msra.mxu0 0.0
      %497 = vmatpush.msra.mxu0 0.0
      %498 = vmatpush.msra.mxu0 0.0
      %499 = vmatpush.msra.mxu0 0.0
      %500 = vmatpush.msra.mxu0 0.0
      %501 = vmatpush.msra.mxu0 0.0
      %502 = vmatpush.msra.mxu0 0.0
      %503 = vmatpush.msra.mxu0 0.0
      %504 = vmatpush.msra.mxu0 0.0
      %505 = vmatpush.msra.mxu0 0.0
      %506 = vmatpush.msra.mxu0 %v480
      %507 = vmatpush.msra.mxu0 %v479
      %508 = vmatpush.msra.mxu0 %v478
      %509 = vmatpush.msra.mxu0 %v477
      %510 = vmatmul.f32.gmra.mxu0 %v492
      %v511 = vpop.f32.mrf.mxu0
      %v512 = vadd.f32 %v488, %v511
      %513 = vdwg.mxu0
      %v515 = vperm.slane %v486, 0
      %v518 = vsel %vm490, 0.0, 0
      %520 = vmatpush.msra.mxu0 0.0
      %521 = vmatpush.msra.mxu0 0.0
      %522 = vmatpush.msra.mxu0 0.0
      %523 = vmatpush.msra.mxu0 0.0
      %524 = vmatpush.msra.mxu0 0.0
      %525 = vmatpush.msra.mxu0 0.0
      %526 = vmatpush.msra.mxu0 0.0
      %527 = vmatpush.msra.mxu0 0.0
      %528 = vmatpush.msra.mxu0 0.0
      %529 = vmatpush.msra.mxu0 0.0
      %530 = vmatpush.msra.mxu0 0.0
      %531 = vmatpush.msra.mxu0 0.0
      %532 = vmatpush.msra.mxu0 %v484
      %533 = vmatpush.msra.mxu0 %v483
      %534 = vmatpush.msra.mxu0 %v482
      %535 = vmatpush.msra.mxu0 %v481
      %536 = vmatmul.f32.gmra.mxu0 %v518
      %v537 = vpop.f32.mrf.mxu0
      %v538 = vadd.f32 %v515, %v537
      %539 = vdwg.mxu0
      %v540 = vadd.f32 %v512, %v538
      %v541 = vxor.u32 %v540, 2147483648
      %v542 = vmul.f32 %v541, 1.442695
      %v543 = vpow.pop %v542
      %v544 = vadd.f32 %v543, 1.0
      %v545 = vrcp.pop %v544
      %v546 = vmul.f32 %v544, %v545
      %v547 = vsub.f32 1.0, %v546
      %v548 = vmul.f32 %v545, %v547
      %v549 = vadd.f32 %v545, %v548
      %vm550 = vweird.f32 %v544
      %vm551 = vweird.f32 %v545
      %vm552 = vmor %vm550, %vm551
      %v553 = vsel %vm552, %v545, %v549
      %v554 = vand.u32 2147483647, %v544
      %vm555 = vcmp.eq.f32.partialorder %v554, 8.507059e+37
      %v556 = vand.u32 %v544, 2147483648
      %v557 = vor.u32 1.1754944e-38, %v556
      %v558 = vsel %vm555, %v557, %v553
      %v559 = vmul.f32 1.0, %v558
      %561 = vrot.lane.b32.xlu0 %v538, 64
      %v562 = vpop.permute.xlu0 %561
      %v564 = vmul.f32 %v559, %v562
      %566 = vrot.lane.b32.xlu0 %v564, 64
      %v567 = vpop.permute.xlu0 %566
      %v569 = vadd.f32 %v512, %v567
      %v570 = vtanh.pop %v569
      %v571 = vsub.f32 1.0, %v559
      %573 = vrot.lane.b32.xlu0 %v570, 96
      %v574 = vpop.permute.xlu0 %573
      %v576 = vmul.f32 %v571, %v574
      %v577 = vmul.f32 %v559, 0.0
      %v578 = vadd.f32 %v576, %v577
      %580 = vrot.lane.b32.xlu0 %v578, 96
      %v581 = vpop.permute.xlu0 %580
      %v582 = vsel %vm490, %v581, 0
      %584 = vmatpush.msra.mxu0 0.0
      %585 = vmatpush.msra.mxu0 0.0
      %586 = vmatpush.msra.mxu0 0.0
      %587 = vmatpush.msra.mxu0 0.0
      %588 = vmatpush.msra.mxu0 0.0
      %589 = vmatpush.msra.mxu0 0.0
      %590 = vmatpush.msra.mxu0 0.0
      %591 = vmatpush.msra.mxu0 0.0
      %592 = vmatpush.msra.mxu0 0.0
      %593 = vmatpush.msra.mxu0 0.0
      %594 = vmatpush.msra.mxu0 0.0
      %595 = vmatpush.msra.mxu0 0.0
      %596 = vmatpush.msra.mxu0 %v484
      %597 = vmatpush.msra.mxu0 %v483
      %598 = vmatpush.msra.mxu0 %v482
      %599 = vmatpush.msra.mxu0 %v481
      %600 = vmatmul.f32.gmra.mxu0 %v582
      %v601 = vpop.f32.mrf.mxu0
      %v602 = vadd.f32 %v515, %v601
      %603 = vdwg.mxu0
      %v605 = vrot.slane %v602, 6
      %v607 = vadd.f32 %v512, %v605
      %v608 = vxor.u32 %v607, 2147483648
      %v609 = vmul.f32 %v608, 1.442695
      %v610 = vpow.pop %v609
      %v611 = vadd.f32 %v610, 1.0
      %v612 = vrcp.pop %v611
      %v613 = vmul.f32 %v611, %v612
      %v614 = vsub.f32 1.0, %v613
      %v615 = vmul.f32 %v612, %v614
      %v616 = vadd.f32 %v612, %v615
      %vm617 = vweird.f32 %v611
      %vm618 = vweird.f32 %v612
      %vm619 = vmor %vm617, %vm618
      %v620 = vsel %vm619, %v612, %v616
      %v621 = vand.u32 2147483647, %v611
      %vm622 = vcmp.eq.f32.partialorder %v621, 8.507059e+37
      %v623 = vand.u32 %v611, 2147483648
      %v624 = vor.u32 1.1754944e-38, %v623
      %v625 = vsel %vm622, %v624, %v620
      %v626 = vmul.f32 1.0, %v625
      %627 = vrot.lane.b32.xlu0 %v605, 64
      %v628 = vpop.permute.xlu0 %627
      %v630 = vmul.f32 %v626, %v628
      %632 = vrot.lane.b32.xlu0 %v630, 64
      %v633 = vpop.permute.xlu0 %632
      %v635 = vadd.f32 %v512, %v633
      %v636 = vtanh.pop %v635
      %v637 = vsub.f32 1.0, %v626
      %639 = vrot.lane.b32.xlu0 %v636, 96
      %v640 = vpop.permute.xlu0 %639
      %v642 = vmul.f32 %v637, %v640
      %v643 = vrot.slane %v578, 6
      %v645 = vmul.f32 %v626, %v643
      %v646 = vadd.f32 %v642, %v645
      %v648 = vrot.slane %v646, 2
      %649 = vrot.lane.b32.xlu0 %v648, 96
      %v650 = vpop.permute.xlu0 %649
      %v651 = vsel %vm490, %v650, 0
      %653 = vmatpush.msra.mxu0 0.0
      %654 = vmatpush.msra.mxu0 0.0
      %655 = vmatpush.msra.mxu0 0.0
      %656 = vmatpush.msra.mxu0 0.0
      %657 = vmatpush.msra.mxu0 0.0
      %658 = vmatpush.msra.mxu0 0.0
      %659 = vmatpush.msra.mxu0 0.0
      %660 = vmatpush.msra.mxu0 0.0
      %661 = vmatpush.msra.mxu0 0.0
      %662 = vmatpush.msra.mxu0 0.0
      %663 = vmatpush.msra.mxu0 0.0
      %664 = vmatpush.msra.mxu0 0.0
      %665 = vmatpush.msra.mxu0 %v484
      %666 = vmatpush.msra.mxu0 %v483
      %667 = vmatpush.msra.mxu0 %v482
      %668 = vmatpush.msra.mxu0 %v481
      %669 = vmatmul.f32.gmra.mxu0 %v651
      %v670 = vpop.f32.mrf.mxu0
      %v671 = vadd.f32 %v515, %v670
      %672 = vdwg.mxu0
      %v674 = vrot.slane %v671, 4
      %v676 = vadd.f32 %v512, %v674
      %v677 = vxor.u32 %v676, 2147483648
      %v678 = vmul.f32 %v677, 1.442695
      %v679 = vpow.pop %v678
      %v680 = vadd.f32 %v679, 1.0
      %v681 = vrcp.pop %v680
      %v682 = vmul.f32 %v680, %v681
      %v683 = vsub.f32 1.0, %v682
      %v684 = vmul.f32 %v681, %v683
      %v685 = vadd.f32 %v681, %v684
      %vm686 = vweird.f32 %v680
      %vm687 = vweird.f32 %v681
      %vm688 = vmor %vm686, %vm687
      %v689 = vsel %vm688, %v681, %v685
      %v690 = vand.u32 2147483647, %v680
      %vm691 = vcmp.eq.f32.partialorder %v690, 8.507059e+37
      %v692 = vand.u32 %v680, 2147483648
      %v693 = vor.u32 1.1754944e-38, %v692
      %v694 = vsel %vm691, %v693, %v689
      %v695 = vmul.f32 1.0, %v694
      %696 = vrot.lane.b32.xlu0 %v674, 64
      %v697 = vpop.permute.xlu0 %696
      %v699 = vmul.f32 %v695, %v697
      %701 = vrot.lane.b32.xlu0 %v699, 64
      %v702 = vpop.permute.xlu0 %701
      %v704 = vadd.f32 %v512, %v702
      %v705 = vtanh.pop %v704
      %v706 = vsub.f32 1.0, %v695
      %708 = vrot.lane.b32.xlu0 %v705, 96
      %v709 = vpop.permute.xlu0 %708
      %v711 = vmul.f32 %v706, %v709
      %v712 = vrot.slane %v646, 6
      %v714 = vmul.f32 %v695, %v712
      %v715 = vadd.f32 %v711, %v714
      %v717 = vrot.slane %v715, 4
      %718 = vrot.lane.b32.xlu0 %v717, 96
      %v719 = vpop.permute.xlu0 %718
      %v720 = vsel %vm490, %v719, 0
      %722 = vmatpush.msra.mxu0 0.0
      %723 = vmatpush.msra.mxu0 0.0
      %724 = vmatpush.msra.mxu0 0.0
      %725 = vmatpush.msra.mxu0 0.0
      %726 = vmatpush.msra.mxu0 0.0
      %727 = vmatpush.msra.mxu0 0.0
      %728 = vmatpush.msra.mxu0 0.0
      %729 = vmatpush.msra.mxu0 0.0
      %730 = vmatpush.msra.mxu0 0.0
      %731 = vmatpush.msra.mxu0 0.0
      %732 = vmatpush.msra.mxu0 0.0
      %733 = vmatpush.msra.mxu0 0.0
      %734 = vmatpush.msra.mxu0 %v484
      %735 = vmatpush.msra.mxu0 %v483
      %736 = vmatpush.msra.mxu0 %v482
      %737 = vmatpush.msra.mxu0 %v481
      %738 = vmatmul.f32.gmra.mxu0 %v720
      %v739 = vpop.f32.mrf.mxu0
      %v740 = vadd.f32 %v515, %v739
      %741 = vdwg.mxu0
      %v743 = vrot.slane %v740, 2
      %v745 = vadd.f32 %v512, %v743
      %v746 = vxor.u32 %v745, 2147483648
      %v747 = vmul.f32 %v746, 1.442695
      %v748 = vpow.pop %v747
      %v749 = vadd.f32 %v748, 1.0
      %v750 = vrcp.pop %v749
      %v751 = vmul.f32 %v749, %v750
      %v752 = vsub.f32 1.0, %v751
      %v753 = vmul.f32 %v750, %v752
      %v754 = vadd.f32 %v750, %v753
      %vm755 = vweird.f32 %v749
      %vm756 = vweird.f32 %v750
      %vm757 = vmor %vm755, %vm756
      %v758 = vsel %vm757, %v750, %v754
      %v759 = vand.u32 2147483647, %v749
      %vm760 = vcmp.eq.f32.partialorder %v759, 8.507059e+37
      %v761 = vand.u32 %v749, 2147483648
      %v762 = vor.u32 1.1754944e-38, %v761
      %v763 = vsel %vm760, %v762, %v758
      %v764 = vmul.f32 1.0, %v763
      %765 = vrot.lane.b32.xlu0 %v743, 64
      %v766 = vpop.permute.xlu0 %765
      %v768 = vmul.f32 %v764, %v766
      %770 = vrot.lane.b32.xlu0 %v768, 64
      %v771 = vpop.permute.xlu0 %770
      %v773 = vadd.f32 %v512, %v771
      %v774 = vtanh.pop %v773
      %v775 = vsub.f32 1.0, %v764
      %777 = vrot.lane.b32.xlu0 %v774, 96
      %v778 = vpop.permute.xlu0 %777
      %v780 = vmul.f32 %v775, %v778
      %v781 = vrot.slane %v715, 6
      %v783 = vmul.f32 %v764, %v781
      %v784 = vadd.f32 %v780, %v783
      %vm786 = vcmask 254976
      %787 = vst.msk [vmem:[#allocation2] sm:$0x3] %vm786, %v581
      %788 = vrot.lane.b32.xlu0 %v646, 96
      %v789 = vpop.permute.xlu0 %788
      %vm791 = vcmask 257026
      %792 = vst.msk [vmem:[#allocation2] sm:$0xc] %vm791, %v789
      %793 = vrot.lane.b32.xlu0 %v715, 96
      %v794 = vpop.permute.xlu0 %793
      %vm796 = vcmask 259076
      %797 = vst.msk [vmem:[#allocation2] sm:$0x30] %vm796, %v794
      %799 = vrot.lane.b32.xlu0 %v784, 96
      %v800 = vpop.permute.xlu0 %799
      %vm802 = vcmask 261126
      %803 = vst.msk [vmem:[#allocation2] sm:$0xc0] %vm802, %v800
      %s804 = scalar_lea.vmem %s440, 32
      %v805 = vld [vmem:[%s804] sm:$0xff]
      %v806 = vld [vmem:[%s804 + $0x8] sm:$0xff]
      %v807 = vld [vmem:[%s804 + $0x10] sm:$0xff]
      %v808 = vld [vmem:[%s804 + $0x18] sm:$0xff]
      %s809 = scalar_lea.vmem %s445, 32
      %v810 = vld [vmem:[%s809] sm:$0xff]
      %v811 = vld [vmem:[%s809 + $0x8] sm:$0xff]
      %v812 = vld [vmem:[%s809 + $0x10] sm:$0xff]
      %v813 = vld [vmem:[%s809 + $0x18] sm:$0xff]
      %s814 = scalar_lea.vmem %s449, 1
      %v815 = vld [vmem:[%s814] sm:$0x1]
      %s816 = scalar_lea.vmem %s453, 1
      %v817 = vld [vmem:[%s816] sm:$0x1]
      %v819 = vperm.slane %v815, 0
      %821 = vmatpush.msra.mxu0 0.0
      %822 = vmatpush.msra.mxu0 0.0
      %823 = vmatpush.msra.mxu0 0.0
      %824 = vmatpush.msra.mxu0 0.0
      %825 = vmatpush.msra.mxu0 0.0
      %826 = vmatpush.msra.mxu0 0.0
      %827 = vmatpush.msra.mxu0 0.0
      %828 = vmatpush.msra.mxu0 0.0
      %829 = vmatpush.msra.mxu0 0.0
      %830 = vmatpush.msra.mxu0 0.0
      %831 = vmatpush.msra.mxu0 0.0
      %832 = vmatpush.msra.mxu0 0.0
      %833 = vmatpush.msra.mxu0 %v808
      %834 = vmatpush.msra.mxu0 %v807
      %835 = vmatpush.msra.mxu0 %v806
      %836 = vmatpush.msra.mxu0 %v805
      %837 = vmatmul.f32.gmra.mxu0 %v492
      %v838 = vpop.f32.mrf.mxu0
      %v839 = vadd.f32 %v819, %v838
      %840 = vdwg.mxu0
      %v842 = vperm.slane %v817, 0
      %844 = vmatpush.msra.mxu0 0.0
      %845 = vmatpush.msra.mxu0 0.0
      %846 = vmatpush.msra.mxu0 0.0
      %847 = vmatpush.msra.mxu0 0.0
      %848 = vmatpush.msra.mxu0 0.0
      %849 = vmatpush.msra.mxu0 0.0
      %850 = vmatpush.msra.mxu0 0.0
      %851 = vmatpush.msra.mxu0 0.0
      %852 = vmatpush.msra.mxu0 0.0
      %853 = vmatpush.msra.mxu0 0.0
      %854 = vmatpush.msra.mxu0 0.0
      %855 = vmatpush.msra.mxu0 0.0
      %856 = vmatpush.msra.mxu0 %v813
      %857 = vmatpush.msra.mxu0 %v812
      %858 = vmatpush.msra.mxu0 %v811
      %859 = vmatpush.msra.mxu0 %v810
      %860 = vmatmul.f32.gmra.mxu0 %v518
      %v861 = vpop.f32.mrf.mxu0
      %v862 = vadd.f32 %v842, %v861
      %863 = vdwg.mxu0
      %v865 = vrot.slane %v862, 2
      %v867 = vadd.f32 %v839, %v865
      %v868 = vxor.u32 %v867, 2147483648
      %v869 = vmul.f32 %v868, 1.442695
      %v870 = vpow.pop %v869
      %v871 = vadd.f32 %v870, 1.0
      %v872 = vrcp.pop %v871
      %v873 = vmul.f32 %v871, %v872
      %v874 = vsub.f32 1.0, %v873
      %v875 = vmul.f32 %v872, %v874
      %v876 = vadd.f32 %v872, %v875
      %vm877 = vweird.f32 %v871
      %vm878 = vweird.f32 %v872
      %vm879 = vmor %vm877, %vm878
      %v880 = vsel %vm879, %v872, %v876
      %v881 = vand.u32 2147483647, %v871
      %vm882 = vcmp.eq.f32.partialorder %v881, 8.507059e+37
      %v883 = vand.u32 %v871, 2147483648
      %v884 = vor.u32 1.1754944e-38, %v883
      %v885 = vsel %vm882, %v884, %v880
      %v886 = vmul.f32 1.0, %v885
      %887 = vrot.lane.b32.xlu0 %v865, 64
      %v888 = vpop.permute.xlu0 %887
      %v890 = vmul.f32 %v886, %v888
      %892 = vrot.lane.b32.xlu0 %v890, 64
      %v893 = vpop.permute.xlu0 %892
      %v895 = vadd.f32 %v839, %v893
      %v896 = vtanh.pop %v895
      %v897 = vsub.f32 1.0, %v886
      %899 = vrot.lane.b32.xlu0 %v896, 96
      %v900 = vpop.permute.xlu0 %899
      %v902 = vmul.f32 %v897, %v900
      %v903 = vmul.f32 %v886, 0.0
      %v904 = vadd.f32 %v902, %v903
      %v906 = vrot.slane %v904, 6
      %907 = vrot.lane.b32.xlu0 %v906, 96
      %v908 = vpop.permute.xlu0 %907
      %v909 = vsel %vm490, %v908, 0
      %911 = vmatpush.msra.mxu0 0.0
      %912 = vmatpush.msra.mxu0 0.0
      %913 = vmatpush.msra.mxu0 0.0
      %914 = vmatpush.msra.mxu0 0.0
      %915 = vmatpush.msra.mxu0 0.0
      %916 = vmatpush.msra.mxu0 0.0
      %917 = vmatpush.msra.mxu0 0.0
      %918 = vmatpush.msra.mxu0 0.0
      %919 = vmatpush.msra.mxu0 0.0
      %920 = vmatpush.msra.mxu0 0.0
      %921 = vmatpush.msra.mxu0 0.0
      %922 = vmatpush.msra.mxu0 0.0
      %923 = vmatpush.msra.mxu0 %v813
      %924 = vmatpush.msra.mxu0 %v812
      %925 = vmatpush.msra.mxu0 %v811
      %926 = vmatpush.msra.mxu0 %v810
      %927 = vmatmul.f32.gmra.mxu0 %v909
      %v928 = vpop.f32.mrf.mxu0
      %v929 = vadd.f32 %v842, %v928
      %930 = vdwg.mxu0
      %v932 = vrot.slane %v929, 4
      %v934 = vadd.f32 %v839, %v932
      %v935 = vxor.u32 %v934, 2147483648
      %v936 = vmul.f32 %v935, 1.442695
      %v937 = vpow.pop %v936
      %v938 = vadd.f32 %v937, 1.0
      %v939 = vrcp.pop %v938
      %v940 = vmul.f32 %v938, %v939
      %v941 = vsub.f32 1.0, %v940
      %v942 = vmul.f32 %v939, %v941
      %v943 = vadd.f32 %v939, %v942
      %vm944 = vweird.f32 %v938
      %vm945 = vweird.f32 %v939
      %vm946 = vmor %vm944, %vm945
      %v947 = vsel %vm946, %v939, %v943
      %v948 = vand.u32 2147483647, %v938
      %vm949 = vcmp.eq.f32.partialorder %v948, 8.507059e+37
      %v950 = vand.u32 %v938, 2147483648
      %v951 = vor.u32 1.1754944e-38, %v950
      %v952 = vsel %vm949, %v951, %v947
      %v953 = vmul.f32 1.0, %v952
      %954 = vrot.lane.b32.xlu0 %v932, 64
      %v955 = vpop.permute.xlu0 %954
      %v957 = vmul.f32 %v953, %v955
      %959 = vrot.lane.b32.xlu0 %v957, 64
      %v960 = vpop.permute.xlu0 %959
      %v962 = vadd.f32 %v839, %v960
      %v963 = vtanh.pop %v962
      %v964 = vsub.f32 1.0, %v953
      %966 = vrot.lane.b32.xlu0 %v963, 96
      %v967 = vpop.permute.xlu0 %966
      %v969 = vmul.f32 %v964, %v967
      %v970 = vrot.slane %v904, 2
      %v972 = vmul.f32 %v953, %v970
      %v973 = vadd.f32 %v969, %v972
      %v975 = vrot.slane %v973, 4
      %976 = vrot.lane.b32.xlu0 %v975, 96
      %v977 = vpop.permute.xlu0 %976
      %v978 = vsel %vm490, %v977, 0
      %980 = vmatpush.msra.mxu0 0.0
      %981 = vmatpush.msra.mxu0 0.0
      %982 = vmatpush.msra.mxu0 0.0
      %983 = vmatpush.msra.mxu0 0.0
      %984 = vmatpush.msra.mxu0 0.0
      %985 = vmatpush.msra.mxu0 0.0
      %986 = vmatpush.msra.mxu0 0.0
      %987 = vmatpush.msra.mxu0 0.0
      %988 = vmatpush.msra.mxu0 0.0
      %989 = vmatpush.msra.mxu0 0.0
      %990 = vmatpush.msra.mxu0 0.0
      %991 = vmatpush.msra.mxu0 0.0
      %992 = vmatpush.msra.mxu0 %v813
      %993 = vmatpush.msra.mxu0 %v812
      %994 = vmatpush.msra.mxu0 %v811
      %995 = vmatpush.msra.mxu0 %v810
      %996 = vmatmul.f32.gmra.mxu0 %v978
      %v997 = vpop.f32.mrf.mxu0
      %v998 = vadd.f32 %v842, %v997
      %999 = vdwg.mxu0
      %v1001 = vrot.slane %v998, 6
      %v1003 = vadd.f32 %v839, %v1001
      %v1004 = vxor.u32 %v1003, 2147483648
      %v1005 = vmul.f32 %v1004, 1.442695
      %v1006 = vpow.pop %v1005
      %v1007 = vadd.f32 %v1006, 1.0
      %v1008 = vrcp.pop %v1007
      %v1009 = vmul.f32 %v1007, %v1008
      %v1010 = vsub.f32 1.0, %v1009
      %v1011 = vmul.f32 %v1008, %v1010
      %v1012 = vadd.f32 %v1008, %v1011
      %vm1013 = vweird.f32 %v1007
      %vm1014 = vweird.f32 %v1008
      %vm1015 = vmor %vm1013, %vm1014
      %v1016 = vsel %vm1015, %v1008, %v1012
      %v1017 = vand.u32 2147483647, %v1007
      %vm1018 = vcmp.eq.f32.partialorder %v1017, 8.507059e+37
      %v1019 = vand.u32 %v1007, 2147483648
      %v1020 = vor.u32 1.1754944e-38, %v1019
      %v1021 = vsel %vm1018, %v1020, %v1016
      %v1022 = vmul.f32 1.0, %v1021
      %1023 = vrot.lane.b32.xlu0 %v1001, 64
      %v1024 = vpop.permute.xlu0 %1023
      %v1026 = vmul.f32 %v1022, %v1024
      %1028 = vrot.lane.b32.xlu0 %v1026, 64
      %v1029 = vpop.permute.xlu0 %1028
      %v1031 = vadd.f32 %v839, %v1029
      %v1032 = vtanh.pop %v1031
      %v1033 = vsub.f32 1.0, %v1022
      %1035 = vrot.lane.b32.xlu0 %v1032, 96
      %v1036 = vpop.permute.xlu0 %1035
      %v1038 = vmul.f32 %v1033, %v1036
      %v1039 = vrot.slane %v973, 2
      %v1041 = vmul.f32 %v1022, %v1039
      %v1042 = vadd.f32 %v1038, %v1041
      %v1044 = vrot.slane %v1042, 2
      %1045 = vrot.lane.b32.xlu0 %v1044, 96
      %v1046 = vpop.permute.xlu0 %1045
      %v1047 = vsel %vm490, %v1046, 0
      %1049 = vmatpush.msra.mxu0 0.0
      %1050 = vmatpush.msra.mxu0 0.0
      %1051 = vmatpush.msra.mxu0 0.0
      %1052 = vmatpush.msra.mxu0 0.0
      %1053 = vmatpush.msra.mxu0 0.0
      %1054 = vmatpush.msra.mxu0 0.0
      %1055 = vmatpush.msra.mxu0 0.0
      %1056 = vmatpush.msra.mxu0 0.0
      %1057 = vmatpush.msra.mxu0 0.0
      %1058 = vmatpush.msra.mxu0 0.0
      %1059 = vmatpush.msra.mxu0 0.0
      %1060 = vmatpush.msra.mxu0 0.0
      %1061 = vmatpush.msra.mxu0 %v813
      %1062 = vmatpush.msra.mxu0 %v812
      %1063 = vmatpush.msra.mxu0 %v811
      %1064 = vmatpush.msra.mxu0 %v810
      %1065 = vmatmul.f32.gmra.mxu0 %v1047
      %v1066 = vpop.f32.mrf.mxu0
      %v1067 = vadd.f32 %v842, %v1066
      %1068 = vdwg.mxu0
      %v1069 = vadd.f32 %v839, %v1067
      %v1070 = vxor.u32 %v1069, 2147483648
      %v1071 = vmul.f32 %v1070, 1.442695
      %v1072 = vpow.pop %v1071
      %v1073 = vadd.f32 %v1072, 1.0
      %v1074 = vrcp.pop %v1073
      %v1075 = vmul.f32 %v1073, %v1074
      %v1076 = vsub.f32 1.0, %v1075
      %v1077 = vmul.f32 %v1074, %v1076
      %v1078 = vadd.f32 %v1074, %v1077
      %vm1079 = vweird.f32 %v1073
      %vm1080 = vweird.f32 %v1074
      %vm1081 = vmor %vm1079, %vm1080
      %v1082 = vsel %vm1081, %v1074, %v1078
      %v1083 = vand.u32 2147483647, %v1073
      %vm1084 = vcmp.eq.f32.partialorder %v1083, 8.507059e+37
      %v1085 = vand.u32 %v1073, 2147483648
      %v1086 = vor.u32 1.1754944e-38, %v1085
      %v1087 = vsel %vm1084, %v1086, %v1082
      %v1088 = vmul.f32 1.0, %v1087
      %1090 = vrot.lane.b32.xlu0 %v1067, 64
      %v1091 = vpop.permute.xlu0 %1090
      %v1093 = vmul.f32 %v1088, %v1091
      %1095 = vrot.lane.b32.xlu0 %v1093, 64
      %v1096 = vpop.permute.xlu0 %1095
      %v1098 = vadd.f32 %v839, %v1096
      %v1099 = vtanh.pop %v1098
      %v1100 = vsub.f32 1.0, %v1088
      %1102 = vrot.lane.b32.xlu0 %v1099, 96
      %v1103 = vpop.permute.xlu0 %1102
      %v1105 = vmul.f32 %v1100, %v1103
      %v1107 = vmul.f32 %v1088, %v1044
      %v1108 = vadd.f32 %v1105, %v1107
      %vm1109 = vcmask 517376
      %1110 = vst.msk [vmem:[#allocation2] sm:$0x3] %vm1109, %v1108
      %vm1111 = vcmask 519426
      %1112 = vst.msk [vmem:[#allocation2] sm:$0xc] %vm1111, %v1042
      %vm1113 = vcmask 521476
      %1114 = vst.msk [vmem:[#allocation2] sm:$0x30] %vm1113, %v973
      %vm1115 = vcmask 523526
      %1116 = vst.msk [vmem:[#allocation2] sm:$0xc0] %vm1115, %v904
      %v1117 = vld [vmem:[#allocation2] sm:$0xff]
      %v1118 = vld [vmem:[%s458] sm:$0xff]
      %v1119 = vld [vmem:[%s458 + $0x8] sm:$0xff]
      %v1120 = vld [vmem:[%s458 + $0x10] sm:$0xff]
      %v1121 = vld [vmem:[%s458 + $0x18] sm:$0xff]
      %v1122 = vld [vmem:[%s458 + $0x20] sm:$0xff]
      %v1123 = vld [vmem:[%s458 + $0x28] sm:$0xff]
      %v1124 = vld [vmem:[%s458 + $0x30] sm:$0xff]
      %v1125 = vld [vmem:[%s458 + $0x38] sm:$0xff]
      %v1126 = vld [vmem:[%s463] sm:$0xff]
      %v1127 = vld [vmem:[%s463 + $0x8] sm:$0xff]
      %v1128 = vld [vmem:[%s463 + $0x10] sm:$0xff]
      %v1129 = vld [vmem:[%s463 + $0x18] sm:$0xff]
      %v1130 = vld [vmem:[%s467] sm:$0x1]
      %v1131 = vld [vmem:[%s471] sm:$0x1]
      %v1133 = vperm.slane %v1130, 0
      %vm1135 = vcmask 523264
      %v1137 = vsel %vm1135, %v1117, 0
      %1139 = vmatpush.msra.mxu0 0.0
      %1140 = vmatpush.msra.mxu0 0.0
      %1141 = vmatpush.msra.mxu0 0.0
      %1142 = vmatpush.msra.mxu0 0.0
      %1143 = vmatpush.msra.mxu0 0.0
      %1144 = vmatpush.msra.mxu0 0.0
      %1145 = vmatpush.msra.mxu0 0.0
      %1146 = vmatpush.msra.mxu0 0.0
      %1147 = vmatpush.msra.mxu0 %v1125
      %1148 = vmatpush.msra.mxu0 %v1124
      %1149 = vmatpush.msra.mxu0 %v1123
      %1150 = vmatpush.msra.mxu0 %v1122
      %1151 = vmatpush.msra.mxu0 %v1121
      %1152 = vmatpush.msra.mxu0 %v1120
      %1153 = vmatpush.msra.mxu0 %v1119
      %1154 = vmatpush.msra.mxu0 %v1118
      %1155 = vmatmul.f32.gmra.mxu0 %v1137
      %v1156 = vpop.f32.mrf.mxu0
      %v1157 = vadd.f32 %v1133, %v1156
      %1158 = vdwg.mxu0
      %v1160 = vperm.slane %v1131, 0
      %1162 = vmatpush.msra.mxu0 0.0
      %1163 = vmatpush.msra.mxu0 0.0
      %1164 = vmatpush.msra.mxu0 0.0
      %1165 = vmatpush.msra.mxu0 0.0
      %1166 = vmatpush.msra.mxu0 0.0
      %1167 = vmatpush.msra.mxu0 0.0
      %1168 = vmatpush.msra.mxu0 0.0
      %1169 = vmatpush.msra.mxu0 0.0
      %1170 = vmatpush.msra.mxu0 0.0
      %1171 = vmatpush.msra.mxu0 0.0
      %1172 = vmatpush.msra.mxu0 0.0
      %1173 = vmatpush.msra.mxu0 0.0
      %1174 = vmatpush.msra.mxu0 %v1129
      %1175 = vmatpush.msra.mxu0 %v1128
      %1176 = vmatpush.msra.mxu0 %v1127
      %1177 = vmatpush.msra.mxu0 %v1126
      %1178 = vmatmul.f32.gmra.mxu0 %v518
      %v1179 = vpop.f32.mrf.mxu0
      %v1180 = vadd.f32 %v1160, %v1179
      %1181 = vdwg.mxu0
      %v1182 = vadd.f32 %v1157, %v1180
      %v1183 = vxor.u32 %v1182, 2147483648
      %v1184 = vmul.f32 %v1183, 1.442695
      %v1185 = vpow.pop %v1184
      %v1186 = vadd.f32 %v1185, 1.0
      %v1187 = vrcp.pop %v1186
      %v1188 = vmul.f32 %v1186, %v1187
      %v1189 = vsub.f32 1.0, %v1188
      %v1190 = vmul.f32 %v1187, %v1189
      %v1191 = vadd.f32 %v1187, %v1190
      %vm1192 = vweird.f32 %v1186
      %vm1193 = vweird.f32 %v1187
      %vm1194 = vmor %vm1192, %vm1193
      %v1195 = vsel %vm1194, %v1187, %v1191
      %v1196 = vand.u32 2147483647, %v1186
      %vm1197 = vcmp.eq.f32.partialorder %v1196, 8.507059e+37
      %v1198 = vand.u32 %v1186, 2147483648
      %v1199 = vor.u32 1.1754944e-38, %v1198
      %v1200 = vsel %vm1197, %v1199, %v1195
      %v1201 = vmul.f32 1.0, %v1200
      %1203 = vrot.lane.b32.xlu0 %v1180, 64
      %v1204 = vpop.permute.xlu0 %1203
      %v1206 = vmul.f32 %v1201, %v1204
      %1208 = vrot.lane.b32.xlu0 %v1206, 64
      %v1209 = vpop.permute.xlu0 %1208
      %v1211 = vadd.f32 %v1157, %v1209
      %v1212 = vtanh.pop %v1211
      %v1213 = vsub.f32 1.0, %v1201
      %1215 = vrot.lane.b32.xlu0 %v1212, 96
      %v1216 = vpop.permute.xlu0 %1215
      %v1218 = vmul.f32 %v1213, %v1216
      %v1219 = vmul.f32 %v1201, 0.0
      %v1220 = vadd.f32 %v1218, %v1219
      %1222 = vrot.lane.b32.xlu0 %v1220, 96
      %v1223 = vpop.permute.xlu0 %1222
      %v1224 = vsel %vm490, %v1223, 0
      %1226 = vmatpush.msra.mxu0 0.0
      %1227 = vmatpush.msra.mxu0 0.0
      %1228 = vmatpush.msra.mxu0 0.0
      %1229 = vmatpush.msra.mxu0 0.0
      %1230 = vmatpush.msra.mxu0 0.0
      %1231 = vmatpush.msra.mxu0 0.0
      %1232 = vmatpush.msra.mxu0 0.0
      %1233 = vmatpush.msra.mxu0 0.0
      %1234 = vmatpush.msra.mxu0 0.0
      %1235 = vmatpush.msra.mxu0 0.0
      %1236 = vmatpush.msra.mxu0 0.0
      %1237 = vmatpush.msra.mxu0 0.0
      %1238 = vmatpush.msra.mxu0 %v1129
      %1239 = vmatpush.msra.mxu0 %v1128
      %1240 = vmatpush.msra.mxu0 %v1127
      %1241 = vmatpush.msra.mxu0 %v1126
      %1242 = vmatmul.f32.gmra.mxu0 %v1224
      %v1243 = vpop.f32.mrf.mxu0
      %v1244 = vadd.f32 %v1160, %v1243
      %1245 = vdwg.mxu0
      %v1247 = vrot.slane %v1244, 6
      %v1249 = vadd.f32 %v1157, %v1247
      %v1250 = vxor.u32 %v1249, 2147483648
      %v1251 = vmul.f32 %v1250, 1.442695
      %v1252 = vpow.pop %v1251
      %v1253 = vadd.f32 %v1252, 1.0
      %v1254 = vrcp.pop %v1253
      %v1255 = vmul.f32 %v1253, %v1254
      %v1256 = vsub.f32 1.0, %v1255
      %v1257 = vmul.f32 %v1254, %v1256
      %v1258 = vadd.f32 %v1254, %v1257
      %vm1259 = vweird.f32 %v1253
      %vm1260 = vweird.f32 %v1254
      %vm1261 = vmor %vm1259, %vm1260
      %v1262 = vsel %vm1261, %v1254, %v1258
      %v1263 = vand.u32 2147483647, %v1253
      %vm1264 = vcmp.eq.f32.partialorder %v1263, 8.507059e+37
      %v1265 = vand.u32 %v1253, 2147483648
      %v1266 = vor.u32 1.1754944e-38, %v1265
      %v1267 = vsel %vm1264, %v1266, %v1262
      %v1268 = vmul.f32 1.0, %v1267
      %1269 = vrot.lane.b32.xlu0 %v1247, 64
      %v1270 = vpop.permute.xlu0 %1269
      %v1272 = vmul.f32 %v1268, %v1270
      %1274 = vrot.lane.b32.xlu0 %v1272, 64
      %v1275 = vpop.permute.xlu0 %1274
      %v1277 = vadd.f32 %v1157, %v1275
      %v1278 = vtanh.pop %v1277
      %v1279 = vsub.f32 1.0, %v1268
      %1281 = vrot.lane.b32.xlu0 %v1278, 96
      %v1282 = vpop.permute.xlu0 %1281
      %v1284 = vmul.f32 %v1279, %v1282
      %v1285 = vrot.slane %v1220, 6
      %v1287 = vmul.f32 %v1268, %v1285
      %v1288 = vadd.f32 %v1284, %v1287
      %v1290 = vrot.slane %v1288, 2
      %1291 = vrot.lane.b32.xlu0 %v1290, 96
      %v1292 = vpop.permute.xlu0 %1291
      %v1293 = vsel %vm490, %v1292, 0
      %1295 = vmatpush.msra.mxu0 0.0
      %1296 = vmatpush.msra.mxu0 0.0
      %1297 = vmatpush.msra.mxu0 0.0
      %1298 = vmatpush.msra.mxu0 0.0
      %1299 = vmatpush.msra.mxu0 0.0
      %1300 = vmatpush.msra.mxu0 0.0
      %1301 = vmatpush.msra.mxu0 0.0
      %1302 = vmatpush.msra.mxu0 0.0
      %1303 = vmatpush.msra.mxu0 0.0
      %1304 = vmatpush.msra.mxu0 0.0
      %1305 = vmatpush.msra.mxu0 0.0
      %1306 = vmatpush.msra.mxu0 0.0
      %1307 = vmatpush.msra.mxu0 %v1129
      %1308 = vmatpush.msra.mxu0 %v1128
      %1309 = vmatpush.msra.mxu0 %v1127
      %1310 = vmatpush.msra.mxu0 %v1126
      %1311 = vmatmul.f32.gmra.mxu0 %v1293
      %v1312 = vpop.f32.mrf.mxu0
      %v1313 = vadd.f32 %v1160, %v1312
      %1314 = vdwg.mxu0
      %v1316 = vrot.slane %v1313, 4
      %v1318 = vadd.f32 %v1157, %v1316
      %v1319 = vxor.u32 %v1318, 2147483648
      %v1320 = vmul.f32 %v1319, 1.442695
      %v1321 = vpow.pop %v1320
      %v1322 = vadd.f32 %v1321, 1.0
      %v1323 = vrcp.pop %v1322
      %v1324 = vmul.f32 %v1322, %v1323
      %v1325 = vsub.f32 1.0, %v1324
      %v1326 = vmul.f32 %v1323, %v1325
      %v1327 = vadd.f32 %v1323, %v1326
      %vm1328 = vweird.f32 %v1322
      %vm1329 = vweird.f32 %v1323
      %vm1330 = vmor %vm1328, %vm1329
      %v1331 = vsel %vm1330, %v1323, %v1327
      %v1332 = vand.u32 2147483647, %v1322
      %vm1333 = vcmp.eq.f32.partialorder %v1332, 8.507059e+37
      %v1334 = vand.u32 %v1322, 2147483648
      %v1335 = vor.u32 1.1754944e-38, %v1334
      %v1336 = vsel %vm1333, %v1335, %v1331
      %v1337 = vmul.f32 1.0, %v1336
      %1338 = vrot.lane.b32.xlu0 %v1316, 64
      %v1339 = vpop.permute.xlu0 %1338
      %v1341 = vmul.f32 %v1337, %v1339
      %1343 = vrot.lane.b32.xlu0 %v1341, 64
      %v1344 = vpop.permute.xlu0 %1343
      %v1346 = vadd.f32 %v1157, %v1344
      %v1347 = vtanh.pop %v1346
      %v1348 = vsub.f32 1.0, %v1337
      %1350 = vrot.lane.b32.xlu0 %v1347, 96
      %v1351 = vpop.permute.xlu0 %1350
      %v1353 = vmul.f32 %v1348, %v1351
      %v1354 = vrot.slane %v1288, 6
      %v1356 = vmul.f32 %v1337, %v1354
      %v1357 = vadd.f32 %v1353, %v1356
      %v1359 = vrot.slane %v1357, 4
      %1360 = vrot.lane.b32.xlu0 %v1359, 96
      %v1361 = vpop.permute.xlu0 %1360
      %v1362 = vsel %vm490, %v1361, 0
      %1364 = vmatpush.msra.mxu0 0.0
      %1365 = vmatpush.msra.mxu0 0.0
      %1366 = vmatpush.msra.mxu0 0.0
      %1367 = vmatpush.msra.mxu0 0.0
      %1368 = vmatpush.msra.mxu0 0.0
      %1369 = vmatpush.msra.mxu0 0.0
      %1370 = vmatpush.msra.mxu0 0.0
      %1371 = vmatpush.msra.mxu0 0.0
      %1372 = vmatpush.msra.mxu0 0.0
      %1373 = vmatpush.msra.mxu0 0.0
      %1374 = vmatpush.msra.mxu0 0.0
      %1375 = vmatpush.msra.mxu0 0.0
      %1376 = vmatpush.msra.mxu0 %v1129
      %1377 = vmatpush.msra.mxu0 %v1128
      %1378 = vmatpush.msra.mxu0 %v1127
      %1379 = vmatpush.msra.mxu0 %v1126
      %1380 = vmatmul.f32.gmra.mxu0 %v1362
      %v1381 = vpop.f32.mrf.mxu0
      %v1382 = vadd.f32 %v1160, %v1381
      %1383 = vdwg.mxu0
      %v1385 = vrot.slane %v1382, 2
      %v1387 = vadd.f32 %v1157, %v1385
      %v1388 = vxor.u32 %v1387, 2147483648
      %v1389 = vmul.f32 %v1388, 1.442695
      %v1390 = vpow.pop %v1389
      %v1391 = vadd.f32 %v1390, 1.0
      %v1392 = vrcp.pop %v1391
      %v1393 = vmul.f32 %v1391, %v1392
      %v1394 = vsub.f32 1.0, %v1393
      %v1395 = vmul.f32 %v1392, %v1394
      %v1396 = vadd.f32 %v1392, %v1395
      %vm1397 = vweird.f32 %v1391
      %vm1398 = vweird.f32 %v1392
      %vm1399 = vmor %vm1397, %vm1398
      %v1400 = vsel %vm1399, %v1392, %v1396
      %v1401 = vand.u32 2147483647, %v1391
      %vm1402 = vcmp.eq.f32.partialorder %v1401, 8.507059e+37
      %v1403 = vand.u32 %v1391, 2147483648
      %v1404 = vor.u32 1.1754944e-38, %v1403
      %v1405 = vsel %vm1402, %v1404, %v1400
      %v1406 = vmul.f32 1.0, %v1405
      %1407 = vrot.lane.b32.xlu0 %v1385, 64
      %v1408 = vpop.permute.xlu0 %1407
      %v1410 = vmul.f32 %v1406, %v1408
      %1412 = vrot.lane.b32.xlu0 %v1410, 64
      %v1413 = vpop.permute.xlu0 %1412
      %v1415 = vadd.f32 %v1157, %v1413
      %v1416 = vtanh.pop %v1415
      %v1417 = vsub.f32 1.0, %v1406
      %1419 = vrot.lane.b32.xlu0 %v1416, 96
      %v1420 = vpop.permute.xlu0 %1419
      %v1422 = vmul.f32 %v1417, %v1420
      %v1423 = vrot.slane %v1357, 6
      %v1425 = vmul.f32 %v1406, %v1423
      %v1426 = vadd.f32 %v1422, %v1425
      %1428 = vst.msk [vmem:[%s475] sm:$0x3] %vm786, %v1223
      %1429 = vrot.lane.b32.xlu0 %v1288, 96
      %v1430 = vpop.permute.xlu0 %1429
      %1432 = vst.msk [vmem:[%s475] sm:$0xc] %vm791, %v1430
      %1433 = vrot.lane.b32.xlu0 %v1357, 96
      %v1434 = vpop.permute.xlu0 %1433
      %1436 = vst.msk [vmem:[%s475] sm:$0x30] %vm796, %v1434
      %1438 = vrot.lane.b32.xlu0 %v1426, 96
      %v1439 = vpop.permute.xlu0 %1438
      %1441 = vst.msk [vmem:[%s475] sm:$0xc0] %vm802, %v1439
      %s1442 = scalar_lea.vmem %s458, 64
      %v1443 = vld [vmem:[%s1442] sm:$0xff]
      %v1444 = vld [vmem:[%s1442 + $0x8] sm:$0xff]
      %v1445 = vld [vmem:[%s1442 + $0x10] sm:$0xff]
      %v1446 = vld [vmem:[%s1442 + $0x18] sm:$0xff]
      %v1447 = vld [vmem:[%s1442 + $0x20] sm:$0xff]
      %v1448 = vld [vmem:[%s1442 + $0x28] sm:$0xff]
      %v1449 = vld [vmem:[%s1442 + $0x30] sm:$0xff]
      %v1450 = vld [vmem:[%s1442 + $0x38] sm:$0xff]
      %s1451 = scalar_lea.vmem %s463, 32
      %v1452 = vld [vmem:[%s1451] sm:$0xff]
      %v1453 = vld [vmem:[%s1451 + $0x8] sm:$0xff]
      %v1454 = vld [vmem:[%s1451 + $0x10] sm:$0xff]
      %v1455 = vld [vmem:[%s1451 + $0x18] sm:$0xff]
      %s1456 = scalar_lea.vmem %s467, 1
      %v1457 = vld [vmem:[%s1456] sm:$0x1]
      %s1458 = scalar_lea.vmem %s471, 1
      %v1459 = vld [vmem:[%s1458] sm:$0x1]
      %v1461 = vperm.slane %v1457, 0
      %1463 = vmatpush.msra.mxu0 0.0
      %1464 = vmatpush.msra.mxu0 0.0
      %1465 = vmatpush.msra.mxu0 0.0
      %1466 = vmatpush.msra.mxu0 0.0
      %1467 = vmatpush.msra.mxu0 0.0
      %1468 = vmatpush.msra.mxu0 0.0
      %1469 = vmatpush.msra.mxu0 0.0
      %1470 = vmatpush.msra.mxu0 0.0
      %1471 = vmatpush.msra.mxu0 %v1450
      %1472 = vmatpush.msra.mxu0 %v1449
      %1473 = vmatpush.msra.mxu0 %v1448
      %1474 = vmatpush.msra.mxu0 %v1447
      %1475 = vmatpush.msra.mxu0 %v1446
      %1476 = vmatpush.msra.mxu0 %v1445
      %1477 = vmatpush.msra.mxu0 %v1444
      %1478 = vmatpush.msra.mxu0 %v1443
      %1479 = vmatmul.f32.gmra.mxu0 %v1137
      %v1480 = vpop.f32.mrf.mxu0
      %v1481 = vadd.f32 %v1461, %v1480
      %1482 = vdwg.mxu0
      %v1484 = vperm.slane %v1459, 0
      %1486 = vmatpush.msra.mxu0 0.0
      %1487 = vmatpush.msra.mxu0 0.0
      %1488 = vmatpush.msra.mxu0 0.0
      %1489 = vmatpush.msra.mxu0 0.0
      %1490 = vmatpush.msra.mxu0 0.0
      %1491 = vmatpush.msra.mxu0 0.0
      %1492 = vmatpush.msra.mxu0 0.0
      %1493 = vmatpush.msra.mxu0 0.0
      %1494 = vmatpush.msra.mxu0 0.0
      %1495 = vmatpush.msra.mxu0 0.0
      %1496 = vmatpush.msra.mxu0 0.0
      %1497 = vmatpush.msra.mxu0 0.0
      %1498 = vmatpush.msra.mxu0 %v1455
      %1499 = vmatpush.msra.mxu0 %v1454
      %1500 = vmatpush.msra.mxu0 %v1453
      %1501 = vmatpush.msra.mxu0 %v1452
      %1502 = vmatmul.f32.gmra.mxu0 %v518
      %v1503 = vpop.f32.mrf.mxu0
      %v1504 = vadd.f32 %v1484, %v1503
      %1505 = vdwg.mxu0
      %v1507 = vrot.slane %v1504, 2
      %v1509 = vadd.f32 %v1481, %v1507
      %v1510 = vxor.u32 %v1509, 2147483648
      %v1511 = vmul.f32 %v1510, 1.442695
      %v1512 = vpow.pop %v1511
      %v1513 = vadd.f32 %v1512, 1.0
      %v1514 = vrcp.pop %v1513
      %v1515 = vmul.f32 %v1513, %v1514
      %v1516 = vsub.f32 1.0, %v1515
      %v1517 = vmul.f32 %v1514, %v1516
      %v1518 = vadd.f32 %v1514, %v1517
      %vm1519 = vweird.f32 %v1513
      %vm1520 = vweird.f32 %v1514
      %vm1521 = vmor %vm1519, %vm1520
      %v1522 = vsel %vm1521, %v1514, %v1518
      %v1523 = vand.u32 2147483647, %v1513
      %vm1524 = vcmp.eq.f32.partialorder %v1523, 8.507059e+37
      %v1525 = vand.u32 %v1513, 2147483648
      %v1526 = vor.u32 1.1754944e-38, %v1525
      %v1527 = vsel %vm1524, %v1526, %v1522
      %v1528 = vmul.f32 1.0, %v1527
      %1529 = vrot.lane.b32.xlu0 %v1507, 64
      %v1530 = vpop.permute.xlu0 %1529
      %v1532 = vmul.f32 %v1528, %v1530
      %1534 = vrot.lane.b32.xlu0 %v1532, 64
      %v1535 = vpop.permute.xlu0 %1534
      %v1537 = vadd.f32 %v1481, %v1535
      %v1538 = vtanh.pop %v1537
      %v1539 = vsub.f32 1.0, %v1528
      %1541 = vrot.lane.b32.xlu0 %v1538, 96
      %v1542 = vpop.permute.xlu0 %1541
      %v1544 = vmul.f32 %v1539, %v1542
      %v1545 = vmul.f32 %v1528, 0.0
      %v1546 = vadd.f32 %v1544, %v1545
      %v1548 = vrot.slane %v1546, 6
      %1549 = vrot.lane.b32.xlu0 %v1548, 96
      %v1550 = vpop.permute.xlu0 %1549
      %v1551 = vsel %vm490, %v1550, 0
      %1553 = vmatpush.msra.mxu0 0.0
      %1554 = vmatpush.msra.mxu0 0.0
      %1555 = vmatpush.msra.mxu0 0.0
      %1556 = vmatpush.msra.mxu0 0.0
      %1557 = vmatpush.msra.mxu0 0.0
      %1558 = vmatpush.msra.mxu0 0.0
      %1559 = vmatpush.msra.mxu0 0.0
      %1560 = vmatpush.msra.mxu0 0.0
      %1561 = vmatpush.msra.mxu0 0.0
      %1562 = vmatpush.msra.mxu0 0.0
      %1563 = vmatpush.msra.mxu0 0.0
      %1564 = vmatpush.msra.mxu0 0.0
      %1565 = vmatpush.msra.mxu0 %v1455
      %1566 = vmatpush.msra.mxu0 %v1454
      %1567 = vmatpush.msra.mxu0 %v1453
      %1568 = vmatpush.msra.mxu0 %v1452
      %1569 = vmatmul.f32.gmra.mxu0 %v1551
      %v1570 = vpop.f32.mrf.mxu0
      %v1571 = vadd.f32 %v1484, %v1570
      %1572 = vdwg.mxu0
      %v1574 = vrot.slane %v1571, 4
      %v1576 = vadd.f32 %v1481, %v1574
      %v1577 = vxor.u32 %v1576, 2147483648
      %v1578 = vmul.f32 %v1577, 1.442695
      %v1579 = vpow.pop %v1578
      %v1580 = vadd.f32 %v1579, 1.0
      %v1581 = vrcp.pop %v1580
      %v1582 = vmul.f32 %v1580, %v1581
      %v1583 = vsub.f32 1.0, %v1582
      %v1584 = vmul.f32 %v1581, %v1583
      %v1585 = vadd.f32 %v1581, %v1584
      %vm1586 = vweird.f32 %v1580
      %vm1587 = vweird.f32 %v1581
      %vm1588 = vmor %vm1586, %vm1587
      %v1589 = vsel %vm1588, %v1581, %v1585
      %v1590 = vand.u32 2147483647, %v1580
      %vm1591 = vcmp.eq.f32.partialorder %v1590, 8.507059e+37
      %v1592 = vand.u32 %v1580, 2147483648
      %v1593 = vor.u32 1.1754944e-38, %v1592
      %v1594 = vsel %vm1591, %v1593, %v1589
      %v1595 = vmul.f32 1.0, %v1594
      %1596 = vrot.lane.b32.xlu0 %v1574, 64
      %v1597 = vpop.permute.xlu0 %1596
      %v1599 = vmul.f32 %v1595, %v1597
      %1601 = vrot.lane.b32.xlu0 %v1599, 64
      %v1602 = vpop.permute.xlu0 %1601
      %v1604 = vadd.f32 %v1481, %v1602
      %v1605 = vtanh.pop %v1604
      %v1606 = vsub.f32 1.0, %v1595
      %1608 = vrot.lane.b32.xlu0 %v1605, 96
      %v1609 = vpop.permute.xlu0 %1608
      %v1611 = vmul.f32 %v1606, %v1609
      %v1612 = vrot.slane %v1546, 2
      %v1614 = vmul.f32 %v1595, %v1612
      %v1615 = vadd.f32 %v1611, %v1614
      %v1617 = vrot.slane %v1615, 4
      %1618 = vrot.lane.b32.xlu0 %v1617, 96
      %v1619 = vpop.permute.xlu0 %1618
      %v1620 = vsel %vm490, %v1619, 0
      %1622 = vmatpush.msra.mxu0 0.0
      %1623 = vmatpush.msra.mxu0 0.0
      %1624 = vmatpush.msra.mxu0 0.0
      %1625 = vmatpush.msra.mxu0 0.0
      %1626 = vmatpush.msra.mxu0 0.0
      %1627 = vmatpush.msra.mxu0 0.0
      %1628 = vmatpush.msra.mxu0 0.0
      %1629 = vmatpush.msra.mxu0 0.0
      %1630 = vmatpush.msra.mxu0 0.0
      %1631 = vmatpush.msra.mxu0 0.0
      %1632 = vmatpush.msra.mxu0 0.0
      %1633 = vmatpush.msra.mxu0 0.0
      %1634 = vmatpush.msra.mxu0 %v1455
      %1635 = vmatpush.msra.mxu0 %v1454
      %1636 = vmatpush.msra.mxu0 %v1453
      %1637 = vmatpush.msra.mxu0 %v1452
      %1638 = vmatmul.f32.gmra.mxu0 %v1620
      %v1639 = vpop.f32.mrf.mxu0
      %v1640 = vadd.f32 %v1484, %v1639
      %1641 = vdwg.mxu0
      %v1643 = vrot.slane %v1640, 6
      %v1645 = vadd.f32 %v1481, %v1643
      %v1646 = vxor.u32 %v1645, 2147483648
      %v1647 = vmul.f32 %v1646, 1.442695
      %v1648 = vpow.pop %v1647
      %v1649 = vadd.f32 %v1648, 1.0
      %v1650 = vrcp.pop %v1649
      %v1651 = vmul.f32 %v1649, %v1650
      %v1652 = vsub.f32 1.0, %v1651
      %v1653 = vmul.f32 %v1650, %v1652
      %v1654 = vadd.f32 %v1650, %v1653
      %vm1655 = vweird.f32 %v1649
      %vm1656 = vweird.f32 %v1650
      %vm1657 = vmor %vm1655, %vm1656
      %v1658 = vsel %vm1657, %v1650, %v1654
      %v1659 = vand.u32 2147483647, %v1649
      %vm1660 = vcmp.eq.f32.partialorder %v1659, 8.507059e+37
      %v1661 = vand.u32 %v1649, 2147483648
      %v1662 = vor.u32 1.1754944e-38, %v1661
      %v1663 = vsel %vm1660, %v1662, %v1658
      %v1664 = vmul.f32 1.0, %v1663
      %1665 = vrot.lane.b32.xlu0 %v1643, 64
      %v1666 = vpop.permute.xlu0 %1665
      %v1668 = vmul.f32 %v1664, %v1666
      %1670 = vrot.lane.b32.xlu0 %v1668, 64
      %v1671 = vpop.permute.xlu0 %1670
      %v1673 = vadd.f32 %v1481, %v1671
      %v1674 = vtanh.pop %v1673
      %v1675 = vsub.f32 1.0, %v1664
      %1677 = vrot.lane.b32.xlu0 %v1674, 96
      %v1678 = vpop.permute.xlu0 %1677
      %v1680 = vmul.f32 %v1675, %v1678
      %v1681 = vrot.slane %v1615, 2
      %v1683 = vmul.f32 %v1664, %v1681
      %v1684 = vadd.f32 %v1680, %v1683
      %v1686 = vrot.slane %v1684, 2
      %1687 = vrot.lane.b32.xlu0 %v1686, 96
      %v1688 = vpop.permute.xlu0 %1687
      %v1689 = vsel %vm490, %v1688, 0
      %1691 = vmatpush.msra.mxu0 0.0
      %1692 = vmatpush.msra.mxu0 0.0
      %1693 = vmatpush.msra.mxu0 0.0
      %1694 = vmatpush.msra.mxu0 0.0
      %1695 = vmatpush.msra.mxu0 0.0
      %1696 = vmatpush.msra.mxu0 0.0
      %1697 = vmatpush.msra.mxu0 0.0
      %1698 = vmatpush.msra.mxu0 0.0
      %1699 = vmatpush.msra.mxu0 0.0
      %1700 = vmatpush.msra.mxu0 0.0
      %1701 = vmatpush.msra.mxu0 0.0
      %1702 = vmatpush.msra.mxu0 0.0
      %1703 = vmatpush.msra.mxu0 %v1455
      %1704 = vmatpush.msra.mxu0 %v1454
      %1705 = vmatpush.msra.mxu0 %v1453
      %1706 = vmatpush.msra.mxu0 %v1452
      %1707 = vmatmul.f32.gmra.mxu0 %v1689
      %v1708 = vpop.f32.mrf.mxu0
      %v1709 = vadd.f32 %v1484, %v1708
      %1710 = vdwg.mxu0
      %v1711 = vadd.f32 %v1481, %v1709
      %v1712 = vxor.u32 %v1711, 2147483648
      %v1713 = vmul.f32 %v1712, 1.442695
      %v1714 = vpow.pop %v1713
      %v1715 = vadd.f32 %v1714, 1.0
      %v1716 = vrcp.pop %v1715
      %v1717 = vmul.f32 %v1715, %v1716
      %v1718 = vsub.f32 1.0, %v1717
      %v1719 = vmul.f32 %v1716, %v1718
      %v1720 = vadd.f32 %v1716, %v1719
      %vm1721 = vweird.f32 %v1715
      %vm1722 = vweird.f32 %v1716
      %vm1723 = vmor %vm1721, %vm1722
      %v1724 = vsel %vm1723, %v1716, %v1720
      %v1725 = vand.u32 2147483647, %v1715
      %vm1726 = vcmp.eq.f32.partialorder %v1725, 8.507059e+37
      %v1727 = vand.u32 %v1715, 2147483648
      %v1728 = vor.u32 1.1754944e-38, %v1727
      %v1729 = vsel %vm1726, %v1728, %v1724
      %v1730 = vmul.f32 1.0, %v1729
      %1732 = vrot.lane.b32.xlu0 %v1709, 64
      %v1733 = vpop.permute.xlu0 %1732
      %v1735 = vmul.f32 %v1730, %v1733
      %1737 = vrot.lane.b32.xlu0 %v1735, 64
      %v1738 = vpop.permute.xlu0 %1737
      %v1740 = vadd.f32 %v1481, %v1738
      %v1741 = vtanh.pop %v1740
      %v1742 = vsub.f32 1.0, %v1730
      %1744 = vrot.lane.b32.xlu0 %v1741, 96
      %v1745 = vpop.permute.xlu0 %1744
      %v1747 = vmul.f32 %v1742, %v1745
      %v1749 = vmul.f32 %v1730, %v1686
      %v1750 = vadd.f32 %v1747, %v1749
      %1751 = vst.msk [vmem:[%s475] sm:$0x3] %vm1109, %v1750
      %1752 = vst.msk [vmem:[%s475] sm:$0xc] %vm1111, %v1684
      %1753 = vst.msk [vmem:[%s475] sm:$0x30] %vm1113, %v1615
      %1754 = vst.msk [vmem:[%s475] sm:$0xc0] %vm1115, %v1546
      %p1755 = scmp.lt.s32.totalorder %s20, 1
      %s1756 = scalar_select %p1755, %s20, 1
      %s1757 = smul.addr %s1756, 8
      %s1758 = scalar_lea.vmem %s9, %s1757
      // Predicated region
      $region57: #{multiview_forward.6} parent=55 // pred_check
        %p1759 = pneg %p272
      $region58: #{multiview_forward.6} parent=55 // pred_check_branch
        %1761 = sbr.rel (%p1759) target = $region60
      $region59: #{multiview_forward.6} parent=55 // pred_region
        _
      $region60: #{multiview_forward.6} parent=55 // pred_fallthru
        _
    $region56: #{multiview_forward.6} parent=5 // pred_fallthru
      _
    %p1762 = scmp.le.s32.totalorder 2, %s15
    // Predicated region
    $region61: #{multiview_forward.6} parent=5 // pred_check
      %p1763 = pneg %p1762
    $region62: #{multiview_forward.6} parent=5 // pred_check_branch
      %1765 = sbr.rel (%p1763) target = $region64
    $region63: #{multiview_forward.6} parent=5 // pred_region
      %s1766 = ssub.s32 %s15, 2
      // Predicated region
      $region65: #{multiview_forward.6} parent=63 // pred_check
        %p1767 = pneg %p278
      $region66: #{multiview_forward.6} parent=63 // pred_check_branch
        %1769 = sbr.rel (%p1767) target = $region68
      $region67: #{multiview_forward.6} parent=63 // pred_region
        %p1770 = scmp.lt.s32.totalorder %s21, 1
        %s1771 = scalar_select %p1770, %s21, 1
        %s1772 = smul.addr %s1771, 8
        %s1773 = scalar_lea.vmem %s9, %s1772
      $region68: #{multiview_forward.6} parent=63 // pred_fallthru
        _
    $region64: #{multiview_forward.6} parent=5 // pred_fallthru
      _
  $region6: #{multiview_forward.6} parent=0 // loop_footer
    %s19 = sadd.s32 1, %s15
  $region7: #{multiview_forward.6} parent=0 // loop_footer_branch
    %14 = sbr.rel target = $region3
  $region8: #{multiview_forward.6} parent=0 // loop_exit
    _

</llo_original>
